<compile_context>
chip_gen: v7x
topology: tpu7x:2x2x1
jax: 0.10.0
libtpu: 0.0.40
codegen_flags: <defaults>
</compile_context>

<pallas_src>
import itertools

import numpy as np
import jax
import jax.numpy as jnp
from jax.experimental import pallas as pl
from jax.experimental.pallas import tpu as pltpu

LANES = 128          # points per sublane-row (lane axis)
SUB = 8              # sublane-rows per dense output store / per sub-tile


def _make_kernel(m, d, lb, ub, nsz, C_pad, ts, lanes):
    n_sub = ts // SUB
    # Lagrange denominator constants prod_{r != j} 1/(j - r)
    denom = []
    for j in range(d + 1):
        c = 1.0
        for r in range(d + 1):
            if r != j:
                c *= 1.0 / (j - r)
        denom.append(c)

    def kernel(x_ref, dig_ref, coe_ref, o_ref):
        # x_ref   : (m, ts, lanes) f32   points (lane-dense)
        # dig_ref : (m, C_pad, lanes) i32  digit table (k-th multi-index of flat c)
        # coe_ref : (C_pad, lanes) f32   lane-broadcast coefficients
        # o_ref   : (ts, lanes) f32

        def process_subtile(row0):
            # ---- per-dim element index and Lagrange basis for 8x128 points ----
            ekd = []                                   # e_k*d : (8, lanes) int32
            basis = []                                 # basis[k][j] : (8, lanes) f32
            for k in range(m):
                xk = x_ref[k, pl.ds(row0, SUB), :]
                scale = float(nsz[k]) / (ub[k] - lb[k])
                sk = (xk - lb[k]) * scale
                sk = jnp.clip(sk, 0.0, float(nsz[k]))
                ek = jnp.floor(sk)
                ek = jnp.minimum(ek, float(nsz[k]) - 1.0)   # integer-style clamp (exact)
                uk = (sk - ek) * float(d)                   # local coord in [0, d]
                ekd.append(ek.astype(jnp.int32) * int(d))

                bk = []
                for j in range(d + 1):
                    val = None
                    for r in range(d + 1):
                        if r == j:
                            continue
                        t = uk if r == 0 else uk - float(r)
                        val = t if val is None else val * t
                    val = jnp.ones_like(uk) if val is None else val * denom[j]
                    bk.append(val)
                basis.append(bk)

            # ---- per 128-point row: factorized one-hot product + reduce ----
            rows = []
            for s in range(SUB):
                G = None
                for k in range(m):
                    # diff == j  <=>  digit_k(c) == e_k*d + j   (mutually exclusive in j)
                    diff = dig_ref[k] - ekd[k][s:s + 1, :]        # (C_pad, lanes) i32
                    Gk = jnp.where(diff == 0, basis[k][0][s:s + 1, :], 0.0)
                    for j in range(1, d + 1):
                        Gk = jnp.where(diff == j, basis[k][j][s:s + 1, :], Gk)
                    G = Gk if G is None else G * Gk
                # lazy coefficient read (cheap VMEM vld; keeps vreg pressure low)
                rows.append(jnp.sum(G * coe_ref[...], axis=0, keepdims=True))

            # single dense (8,128) unmasked store
            o_ref[pl.ds(row0, SUB), :] = jnp.concatenate(rows, axis=0)

        if n_sub == 1:
            process_subtile(0)
        else:
            def body(t, carry):
                process_subtile(pl.multiple_of(t * SUB, SUB))
                return carry
            jax.lax.fori_loop(0, n_sub, body, 0)

    return kernel


def lagrange_interp_pallas(inputs, interp_coe, m, d, mesh_bound, mesh_size):
    size = inputs.shape
    if m == 1 and size[-1] != 1:
        inputs = inputs[..., None]
        size = inputs.shape
    x = inputs.reshape(-1, m).astype(jnp.float32)
    N = x.shape[0]
    R = -(-N // LANES)                               # sublane-rows of points

    # Pick points-per-step: big tiles amortize the ~600-cycle pipeline overhead,
    # but keep >= 2 grid steps when possible (v7x has 2 TensorCores).
    ts = SUB
    for cand in (32, 16):
        if -(-R // cand) >= 2:
            ts = cand
            break
    n_steps = max(1, -(-R // ts))
    R_pad = n_steps * ts
    N_pad = R_pad * LANES

    mb = np.asarray(mesh_bound, dtype=np.float64).reshape(2, m)
    lb = tuple(float(v) for v in mb[0])
    ub = tuple(float(v) for v in mb[1])
    nsz = tuple(int(v) for v in np.asarray(mesh_size).reshape(m))
    coe_shape = tuple(n * d + 1 for n in nsz)
    # node index e_k*d + j (j<=d) stays strictly inside [0, coe_shape[k]):
    # the per-dim one-hots are exact / non-overlapping.
    assert all(d < cs for cs in coe_shape), "degree must be < coe_shape per dim"
    C = int(np.prod(coe_shape))
    C_pad = max(8, ((C + 7) // 8) * 8)
    strides = [1] * m
    for k in range(m - 2, -1, -1):
        strides[k] = strides[k + 1] * coe_shape[k + 1]

    if N_pad > N:
        pad_rows = jnp.broadcast_to(jnp.asarray(lb, jnp.float32), (N_pad - N, m))
        x = jnp.concatenate([x, pad_rows], axis=0)
    xT = x.T.reshape(m, R_pad, LANES)                # point n -> (row n//128, lane n%128)

    # compile-time digit table: digits[k, c] = k-th multi-index of flat coe index c
    cidx = np.arange(C_pad)
    digits = np.empty((m, C_pad), np.int32)
    for k in range(m):
        digits[k] = (cidx // strides[k]) % coe_shape[k]
    digits[:, C:] = -1                               # padded rows never match
    digits_b = jnp.asarray(np.ascontiguousarray(
        np.broadcast_to(digits[:, :, None], (m, C_pad, LANES))), jnp.int32)

    coe_flat = interp_coe.reshape(-1).astype(jnp.float32)
    coe_col = jnp.zeros((C_pad,), jnp.float32).at[:C].set(coe_flat)
    coe_b = jnp.broadcast_to(coe_col[:, None], (C_pad, LANES))   # wrapper-side lane bcast

    kernel = _make_kernel(m, d, lb, ub, nsz, C_pad, ts, LANES)
    out = pl.pallas_call(
        kernel,
        out_shape=jax.ShapeDtypeStruct((R_pad, LANES), jnp.float32),
        grid_spec=pltpu.PrefetchScalarGridSpec(
            num_scalar_prefetch=0,
            grid=(n_steps,),
            in_specs=[
                pl.BlockSpec((m, ts, LANES), lambda i: (0, i, 0)),       # points
                pl.BlockSpec((m, C_pad, LANES), lambda i: (0, 0, 0)),    # digit table (resident)
                pl.BlockSpec((C_pad, LANES), lambda i: (0, 0)),          # coefficients (resident)
            ],
            out_specs=pl.BlockSpec((ts, LANES), lambda i: (i, 0)),       # dense output tiles
        ),
        compiler_params=pltpu.CompilerParams(dimension_semantics=("parallel",)),
    )(xT, digits_b, coe_b)
    return out.reshape(-1)[:N].reshape(size[:-1])


class LagrangeInterpFixInputs:
    """JAX port of the PyTorch module (forward pass only)."""

    def __init__(self, inputs, interp_dim, interp_degree, mesh_bound, mesh_size, key):
        self.m = int(interp_dim)
        self.d = int(interp_degree)
        self.mesh_bound = np.array(mesh_bound, dtype=np.float64).reshape(2, self.m)
        self.mesh_size = np.array(mesh_size, dtype=np.int64).reshape(self.m)
        coe_shape = tuple(int(n) * self.d + 1 for n in self.mesh_size)
        # torch.Tensor(*mesh_size*d+1).normal_() -> deterministic normal init here
        self.interp_coe = jax.random.normal(key, coe_shape, dtype=jnp.float32)
        self.update_inputs(inputs)

    def update_inputs(self, inputs):
        size = inputs.shape
        if self.m == 1 and size[-1] != 1:
            inputs = inputs[..., None]
        self._inputs = inputs

    def forward(self):
        return lagrange_interp_pallas(
            self._inputs, self.interp_coe, self.m, self.d, self.mesh_bound, self.mesh_size
        )


def lagrange_interp_ref(inputs, interp_coe, m, d, mesh_bound, mesh_size):
    """Pure numpy reference (same math as aTEAM lagrangeinterp)."""
    size = inputs.shape
    x = np.asarray(inputs, dtype=np.float64).reshape(-1, m)
    lb = np.asarray(mesh_bound, dtype=np.float64)[0]
    ub = np.asarray(mesh_bound, dtype=np.float64)[1]
    nsz = np.asarray(mesh_size, dtype=np.float64).reshape(m)
    coe = np.asarray(interp_coe, dtype=np.float64)
    s = (x - lb) / (ub - lb) * nsz
    s = np.clip(s, 0.0, nsz - 1e-6)
    e = np.floor(s).astype(np.int64)
    u = (s - e) * d
    out = np.zeros(x.shape[0], dtype=np.float64)
    for combo in itertools.product(range(d + 1), repeat=m):
        w = np.ones(x.shape[0], dtype=np.float64)
        idx = []
        for k in range(m):
            j = combo[k]
            lk = np.ones(x.shape[0], dtype=np.float64)
            for r in range(d + 1):
                if r != j:
                    lk = lk * (u[:, k] - r) / (j - r)
            w = w * lk
            idx.append(e[:, k] * d + j)
        out = out + w * coe[tuple(idx)]
    return out.reshape(size[:-1])


if __name__ == "__main__":
    key = jax.random.PRNGKey(0)
    k_coe, k_x = jax.random.split(key)

    m, d = 2, 2
    mesh_bound = np.array([[0.0, 0.0], [1.0, 1.0]])
    mesh_size = np.array([5, 4])

    # fixed inputs: shape [..., m]  (batch=2, spatial 63x64, m=2) -> 8064 points.
    # Exercises the big-tile path (ts=32, 2 grid steps, fori_loop over 4 sub-tiles)
    # and tail padding (128 padded points).
    inputs = jax.random.uniform(k_x, (2, 63, 64, m), dtype=jnp.float32)
    # exercise the domain boundaries explicitly (upper-edge clamp path)
    inputs = inputs.at[0, 0, 0, :].set(1.0)
    inputs = inputs.at[0, 0, 1, :].set(0.0)

    module = LagrangeInterpFixInputs(inputs, m, d, mesh_bound, mesh_size, k_coe)
    out = module.forward()
    out = jax.block_until_ready(out)

    assert out.shape == inputs.shape[:-1], out.shape
    ref = lagrange_interp_ref(np.asarray(inputs), np.asarray(module.interp_coe),
                              m, d, mesh_bound, mesh_size)
    np.testing.assert_allclose(np.asarray(out, dtype=np.float64), ref, rtol=5e-4, atol=5e-4)
    print("KERNEL_OK")
</pallas_src>

<mosaic_0001>
module attributes {stable_mosaic.version = 11 : i64} {
  func.func @kernel(%arg0: i32, %arg1: memref<2x32x128xf32, #tpu.memory_space<vmem>>, %arg2: memref<2x104x128xi32, #tpu.memory_space<vmem>>, %arg3: memref<104x128xf32, #tpu.memory_space<vmem>>, %arg4: memref<32x128xf32, #tpu.memory_space<vmem>>) attributes {dimension_semantics = [#tpu.dimension_semantics<parallel>], iteration_bounds = array<i64: 2>, scalar_prefetch = 0 : i64, scratch_operands = 0 : i64, tpu.core_type = #tpu.core_type<tc>, window_params = [{transform_indices = @transform_0, window_bounds = array<i64: 2, 32, 128>}, {pipeline_mode = #tpu.pipeline_mode<synchronous>, transform_indices = @transform_1, window_bounds = array<i64: 2, 104, 128>}, {pipeline_mode = #tpu.pipeline_mode<synchronous>, transform_indices = @transform_2, window_bounds = array<i64: 104, 128>}, {transform_indices = @transform_3, window_bounds = array<i64: 32, 128>}]} {
    %c0_i32 = arith.constant 0 : i32
    %c4_i32 = arith.constant 4 : i32
    %0 = arith.addi %c0_i32, %c4_i32 : i32
    %c1_i32 = arith.constant 1 : i32
    scf.for %arg5 = %c0_i32 to %0 step %c1_i32  : i32 {
      %c8_i32 = arith.constant 8 : i32
      %1 = arith.muli %arg5, %c8_i32 : i32
      %2 = tpu.assume_multiple %1, 8 : i32
      %c0 = arith.constant 0 : index
      %3 = arith.index_cast %2 : i32 to index
      %c0_1 = arith.constant 0 : index
      %4 = vector.load %arg1[%c0, %3, %c0_1] : memref<2x32x128xf32, #tpu.memory_space<vmem>>, vector<1x8x128xf32>
      %5 = vector.shape_cast %4 : vector<1x8x128xf32> to vector<8x128xf32>
      %cst = arith.constant 0.000000e+00 : f32
      %6 = vector.broadcast %cst : f32 to vector<8x128xf32>
      %7 = arith.subf %5, %6 : vector<8x128xf32>
      %cst_2 = arith.constant 5.000000e+00 : f32
      %8 = vector.broadcast %cst_2 : f32 to vector<8x128xf32>
      %9 = arith.mulf %7, %8 : vector<8x128xf32>
      %cst_3 = arith.constant 0.000000e+00 : f32
      %cst_4 = arith.constant 5.000000e+00 : f32
      %10 = vector.broadcast %cst_3 : f32 to vector<8x128xf32>
      %11 = arith.maximumf %10, %9 : vector<8x128xf32>
      %12 = vector.broadcast %cst_4 : f32 to vector<8x128xf32>
      %13 = arith.minimumf %12, %11 : vector<8x128xf32>
      %14 = math.floor %13 : vector<8x128xf32>
      %cst_5 = arith.constant 4.000000e+00 : f32
      %15 = vector.broadcast %cst_5 : f32 to vector<8x128xf32>
      %16 = arith.minimumf %14, %15 : vector<8x128xf32>
      %17 = arith.subf %13, %16 : vector<8x128xf32>
      %cst_6 = arith.constant 2.000000e+00 : f32
      %18 = vector.broadcast %cst_6 : f32 to vector<8x128xf32>
      %19 = arith.mulf %17, %18 : vector<8x128xf32>
      %20 = arith.fptosi %16 : vector<8x128xf32> to vector<8x128xi32>
      %c2_i32 = arith.constant 2 : i32
      %21 = vector.broadcast %c2_i32 : i32 to vector<8x128xi32>
      %22 = arith.muli %20, %21 : vector<8x128xi32>
      %cst_7 = arith.constant 1.000000e+00 : f32
      %23 = vector.broadcast %cst_7 : f32 to vector<8x128xf32>
      %24 = arith.subf %19, %23 : vector<8x128xf32>
      %cst_8 = arith.constant 2.000000e+00 : f32
      %25 = vector.broadcast %cst_8 : f32 to vector<8x128xf32>
      %26 = arith.subf %19, %25 : vector<8x128xf32>
      %27 = arith.mulf %24, %26 : vector<8x128xf32>
      %cst_9 = arith.constant 5.000000e-01 : f32
      %28 = vector.broadcast %cst_9 : f32 to vector<8x128xf32>
      %29 = arith.mulf %27, %28 : vector<8x128xf32>
      %cst_10 = arith.constant 2.000000e+00 : f32
      %30 = vector.broadcast %cst_10 : f32 to vector<8x128xf32>
      %31 = arith.subf %19, %30 : vector<8x128xf32>
      %32 = arith.mulf %19, %31 : vector<8x128xf32>
      %cst_11 = arith.constant -1.000000e+00 : f32
      %33 = vector.broadcast %cst_11 : f32 to vector<8x128xf32>
      %34 = arith.mulf %32, %33 : vector<8x128xf32>
      %cst_12 = arith.constant 1.000000e+00 : f32
      %35 = vector.broadcast %cst_12 : f32 to vector<8x128xf32>
      %36 = arith.subf %19, %35 : vector<8x128xf32>
      %37 = arith.mulf %19, %36 : vector<8x128xf32>
      %cst_13 = arith.constant 5.000000e-01 : f32
      %38 = vector.broadcast %cst_13 : f32 to vector<8x128xf32>
      %39 = arith.mulf %37, %38 : vector<8x128xf32>
      %c1 = arith.constant 1 : index
      %40 = arith.index_cast %2 : i32 to index
      %c0_14 = arith.constant 0 : index
      %41 = vector.load %arg1[%c1, %40, %c0_14] : memref<2x32x128xf32, #tpu.memory_space<vmem>>, vector<1x8x128xf32>
      %42 = vector.shape_cast %41 : vector<1x8x128xf32> to vector<8x128xf32>
      %cst_15 = arith.constant 0.000000e+00 : f32
      %43 = vector.broadcast %cst_15 : f32 to vector<8x128xf32>
      %44 = arith.subf %42, %43 : vector<8x128xf32>
      %cst_16 = arith.constant 4.000000e+00 : f32
      %45 = vector.broadcast %cst_16 : f32 to vector<8x128xf32>
      %46 = arith.mulf %44, %45 : vector<8x128xf32>
      %cst_17 = arith.constant 0.000000e+00 : f32
      %cst_18 = arith.constant 4.000000e+00 : f32
      %47 = vector.broadcast %cst_17 : f32 to vector<8x128xf32>
      %48 = arith.maximumf %47, %46 : vector<8x128xf32>
      %49 = vector.broadcast %cst_18 : f32 to vector<8x128xf32>
      %50 = arith.minimumf %49, %48 : vector<8x128xf32>
      %51 = math.floor %50 : vector<8x128xf32>
      %cst_19 = arith.constant 3.000000e+00 : f32
      %52 = vector.broadcast %cst_19 : f32 to vector<8x128xf32>
      %53 = arith.minimumf %51, %52 : vector<8x128xf32>
      %54 = arith.subf %50, %53 : vector<8x128xf32>
      %cst_20 = arith.constant 2.000000e+00 : f32
      %55 = vector.broadcast %cst_20 : f32 to vector<8x128xf32>
      %56 = arith.mulf %54, %55 : vector<8x128xf32>
      %57 = arith.fptosi %53 : vector<8x128xf32> to vector<8x128xi32>
      %c2_i32_21 = arith.constant 2 : i32
      %58 = vector.broadcast %c2_i32_21 : i32 to vector<8x128xi32>
      %59 = arith.muli %57, %58 : vector<8x128xi32>
      %cst_22 = arith.constant 1.000000e+00 : f32
      %60 = vector.broadcast %cst_22 : f32 to vector<8x128xf32>
      %61 = arith.subf %56, %60 : vector<8x128xf32>
      %cst_23 = arith.constant 2.000000e+00 : f32
      %62 = vector.broadcast %cst_23 : f32 to vector<8x128xf32>
      %63 = arith.subf %56, %62 : vector<8x128xf32>
      %64 = arith.mulf %61, %63 : vector<8x128xf32>
      %cst_24 = arith.constant 5.000000e-01 : f32
      %65 = vector.broadcast %cst_24 : f32 to vector<8x128xf32>
      %66 = arith.mulf %64, %65 : vector<8x128xf32>
      %cst_25 = arith.constant 2.000000e+00 : f32
      %67 = vector.broadcast %cst_25 : f32 to vector<8x128xf32>
      %68 = arith.subf %56, %67 : vector<8x128xf32>
      %69 = arith.mulf %56, %68 : vector<8x128xf32>
      %cst_26 = arith.constant -1.000000e+00 : f32
      %70 = vector.broadcast %cst_26 : f32 to vector<8x128xf32>
      %71 = arith.mulf %69, %70 : vector<8x128xf32>
      %cst_27 = arith.constant 1.000000e+00 : f32
      %72 = vector.broadcast %cst_27 : f32 to vector<8x128xf32>
      %73 = arith.subf %56, %72 : vector<8x128xf32>
      %74 = arith.mulf %56, %73 : vector<8x128xf32>
      %cst_28 = arith.constant 5.000000e-01 : f32
      %75 = vector.broadcast %cst_28 : f32 to vector<8x128xf32>
      %76 = arith.mulf %74, %75 : vector<8x128xf32>
      %c0_29 = arith.constant 0 : index
      %c0_30 = arith.constant 0 : index
      %c0_31 = arith.constant 0 : index
      %77 = vector.load %arg2[%c0_29, %c0_30, %c0_31] : memref<2x104x128xi32, #tpu.memory_space<vmem>>, vector<1x104x128xi32>
      %78 = vector.shape_cast %77 : vector<1x104x128xi32> to vector<104x128xi32>
      %79 = vector.extract_strided_slice %22 {offsets = [0, 0], sizes = [1, 128], strides = [1, 1]} : vector<8x128xi32> to vector<1x128xi32>
      %80 = vector.broadcast %79 : vector<1x128xi32> to vector<104x128xi32>
      %81 = arith.subi %78, %80 : vector<104x128xi32>
      %c0_i32_32 = arith.constant 0 : i32
      %82 = vector.broadcast %c0_i32_32 : i32 to vector<104x128xi32>
      %83 = arith.cmpi eq, %81, %82 : vector<104x128xi32>
      %84 = vector.extract_strided_slice %29 {offsets = [0, 0], sizes = [1, 128], strides = [1, 1]} : vector<8x128xf32> to vector<1x128xf32>
      %cst_33 = arith.constant 0.000000e+00 : f32
      %85 = vector.shape_cast %84 : vector<1x128xf32> to vector<1x128xf32>
      %86 = vector.broadcast %85 : vector<1x128xf32> to vector<104x128xf32>
      %87 = vector.broadcast %cst_33 : f32 to vector<104x128xf32>
      %88 = arith.select %83, %86, %87 : vector<104x128xi1>, vector<104x128xf32>
      %c1_i32_34 = arith.constant 1 : i32
      %89 = vector.broadcast %c1_i32_34 : i32 to vector<104x128xi32>
      %90 = arith.cmpi eq, %81, %89 : vector<104x128xi32>
      %91 = vector.extract_strided_slice %34 {offsets = [0, 0], sizes = [1, 128], strides = [1, 1]} : vector<8x128xf32> to vector<1x128xf32>
      %92 = vector.shape_cast %91 : vector<1x128xf32> to vector<1x128xf32>
      %93 = vector.broadcast %92 : vector<1x128xf32> to vector<104x128xf32>
      %94 = arith.select %90, %93, %88 : vector<104x128xi1>, vector<104x128xf32>
      %c2_i32_35 = arith.constant 2 : i32
      %95 = vector.broadcast %c2_i32_35 : i32 to vector<104x128xi32>
      %96 = arith.cmpi eq, %81, %95 : vector<104x128xi32>
      %97 = vector.extract_strided_slice %39 {offsets = [0, 0], sizes = [1, 128], strides = [1, 1]} : vector<8x128xf32> to vector<1x128xf32>
      %98 = vector.shape_cast %97 : vector<1x128xf32> to vector<1x128xf32>
      %99 = vector.broadcast %98 : vector<1x128xf32> to vector<104x128xf32>
      %100 = arith.select %96, %99, %94 : vector<104x128xi1>, vector<104x128xf32>
      %c1_36 = arith.constant 1 : index
      %c0_37 = arith.constant 0 : index
      %c0_38 = arith.constant 0 : index
      %101 = vector.load %arg2[%c1_36, %c0_37, %c0_38] : memref<2x104x128xi32, #tpu.memory_space<vmem>>, vector<1x104x128xi32>
      %102 = vector.shape_cast %101 : vector<1x104x128xi32> to vector<104x128xi32>
      %103 = vector.extract_strided_slice %59 {offsets = [0, 0], sizes = [1, 128], strides = [1, 1]} : vector<8x128xi32> to vector<1x128xi32>
      %104 = vector.broadcast %103 : vector<1x128xi32> to vector<104x128xi32>
      %105 = arith.subi %102, %104 : vector<104x128xi32>
      %c0_i32_39 = arith.constant 0 : i32
      %106 = vector.broadcast %c0_i32_39 : i32 to vector<104x128xi32>
      %107 = arith.cmpi eq, %105, %106 : vector<104x128xi32>
      %108 = vector.extract_strided_slice %66 {offsets = [0, 0], sizes = [1, 128], strides = [1, 1]} : vector<8x128xf32> to vector<1x128xf32>
      %cst_40 = arith.constant 0.000000e+00 : f32
      %109 = vector.shape_cast %108 : vector<1x128xf32> to vector<1x128xf32>
      %110 = vector.broadcast %109 : vector<1x128xf32> to vector<104x128xf32>
      %111 = vector.broadcast %cst_40 : f32 to vector<104x128xf32>
      %112 = arith.select %107, %110, %111 : vector<104x128xi1>, vector<104x128xf32>
      %c1_i32_41 = arith.constant 1 : i32
      %113 = vector.broadcast %c1_i32_41 : i32 to vector<104x128xi32>
      %114 = arith.cmpi eq, %105, %113 : vector<104x128xi32>
      %115 = vector.extract_strided_slice %71 {offsets = [0, 0], sizes = [1, 128], strides = [1, 1]} : vector<8x128xf32> to vector<1x128xf32>
      %116 = vector.shape_cast %115 : vector<1x128xf32> to vector<1x128xf32>
      %117 = vector.broadcast %116 : vector<1x128xf32> to vector<104x128xf32>
      %118 = arith.select %114, %117, %112 : vector<104x128xi1>, vector<104x128xf32>
      %c2_i32_42 = arith.constant 2 : i32
      %119 = vector.broadcast %c2_i32_42 : i32 to vector<104x128xi32>
      %120 = arith.cmpi eq, %105, %119 : vector<104x128xi32>
      %121 = vector.extract_strided_slice %76 {offsets = [0, 0], sizes = [1, 128], strides = [1, 1]} : vector<8x128xf32> to vector<1x128xf32>
      %122 = vector.shape_cast %121 : vector<1x128xf32> to vector<1x128xf32>
      %123 = vector.broadcast %122 : vector<1x128xf32> to vector<104x128xf32>
      %124 = arith.select %120, %123, %118 : vector<104x128xi1>, vector<104x128xf32>
      %125 = arith.mulf %100, %124 : vector<104x128xf32>
      %c0_43 = arith.constant 0 : index
      %c0_44 = arith.constant 0 : index
      %126 = vector.load %arg3[%c0_43, %c0_44] : memref<104x128xf32, #tpu.memory_space<vmem>>, vector<104x128xf32>
      %127 = arith.mulf %125, %126 : vector<104x128xf32>
      %cst_45 = arith.constant dense<0.000000e+00> : vector<128xf32>
      %128 = vector.multi_reduction <add>, %127, %cst_45 [0] : vector<104x128xf32> to vector<128xf32>
      %129 = vector.shape_cast %128 : vector<128xf32> to vector<1x128xf32>
      %c0_46 = arith.constant 0 : index
      %c0_47 = arith.constant 0 : index
      %c0_48 = arith.constant 0 : index
      %130 = vector.load %arg2[%c0_46, %c0_47, %c0_48] : memref<2x104x128xi32, #tpu.memory_space<vmem>>, vector<1x104x128xi32>
      %131 = vector.shape_cast %130 : vector<1x104x128xi32> to vector<104x128xi32>
      %132 = vector.extract_strided_slice %22 {offsets = [1, 0], sizes = [1, 128], strides = [1, 1]} : vector<8x128xi32> to vector<1x128xi32>
      %133 = vector.broadcast %132 : vector<1x128xi32> to vector<104x128xi32>
      %134 = arith.subi %131, %133 : vector<104x128xi32>
      %c0_i32_49 = arith.constant 0 : i32
      %135 = vector.broadcast %c0_i32_49 : i32 to vector<104x128xi32>
      %136 = arith.cmpi eq, %134, %135 : vector<104x128xi32>
      %137 = vector.extract_strided_slice %29 {offsets = [1, 0], sizes = [1, 128], strides = [1, 1]} : vector<8x128xf32> to vector<1x128xf32>
      %cst_50 = arith.constant 0.000000e+00 : f32
      %138 = vector.shape_cast %137 : vector<1x128xf32> to vector<1x128xf32>
      %139 = vector.broadcast %138 : vector<1x128xf32> to vector<104x128xf32>
      %140 = vector.broadcast %cst_50 : f32 to vector<104x128xf32>
      %141 = arith.select %136, %139, %140 : vector<104x128xi1>, vector<104x128xf32>
      %c1_i32_51 = arith.constant 1 : i32
      %142 = vector.broadcast %c1_i32_51 : i32 to vector<104x128xi32>
      %143 = arith.cmpi eq, %134, %142 : vector<104x128xi32>
      %144 = vector.extract_strided_slice %34 {offsets = [1, 0], sizes = [1, 128], strides = [1, 1]} : vector<8x128xf32> to vector<1x128xf32>
      %145 = vector.shape_cast %144 : vector<1x128xf32> to vector<1x128xf32>
      %146 = vector.broadcast %145 : vector<1x128xf32> to vector<104x128xf32>
      %147 = arith.select %143, %146, %141 : vector<104x128xi1>, vector<104x128xf32>
      %c2_i32_52 = arith.constant 2 : i32
      %148 = vector.broadcast %c2_i32_52 : i32 to vector<104x128xi32>
      %149 = arith.cmpi eq, %134, %148 : vector<104x128xi32>
      %150 = vector.extract_strided_slice %39 {offsets = [1, 0], sizes = [1, 128], strides = [1, 1]} : vector<8x128xf32> to vector<1x128xf32>
      %151 = vector.shape_cast %150 : vector<1x128xf32> to vector<1x128xf32>
      %152 = vector.broadcast %151 : vector<1x128xf32> to vector<104x128xf32>
      %153 = arith.select %149, %152, %147 : vector<104x128xi1>, vector<104x128xf32>
      %c1_53 = arith.constant 1 : index
      %c0_54 = arith.constant 0 : index
      %c0_55 = arith.constant 0 : index
      %154 = vector.load %arg2[%c1_53, %c0_54, %c0_55] : memref<2x104x128xi32, #tpu.memory_space<vmem>>, vector<1x104x128xi32>
      %155 = vector.shape_cast %154 : vector<1x104x128xi32> to vector<104x128xi32>
      %156 = vector.extract_strided_slice %59 {offsets = [1, 0], sizes = [1, 128], strides = [1, 1]} : vector<8x128xi32> to vector<1x128xi32>
      %157 = vector.broadcast %156 : vector<1x128xi32> to vector<104x128xi32>
      %158 = arith.subi %155, %157 : vector<104x128xi32>
      %c0_i32_56 = arith.constant 0 : i32
      %159 = vector.broadcast %c0_i32_56 : i32 to vector<104x128xi32>
      %160 = arith.cmpi eq, %158, %159 : vector<104x128xi32>
      %161 = vector.extract_strided_slice %66 {offsets = [1, 0], sizes = [1, 128], strides = [1, 1]} : vector<8x128xf32> to vector<1x128xf32>
      %cst_57 = arith.constant 0.000000e+00 : f32
      %162 = vector.shape_cast %161 : vector<1x128xf32> to vector<1x128xf32>
      %163 = vector.broadcast %162 : vector<1x128xf32> to vector<104x128xf32>
      %164 = vector.broadcast %cst_57 : f32 to vector<104x128xf32>
      %165 = arith.select %160, %163, %164 : vector<104x128xi1>, vector<104x128xf32>
      %c1_i32_58 = arith.constant 1 : i32
      %166 = vector.broadcast %c1_i32_58 : i32 to vector<104x128xi32>
      %167 = arith.cmpi eq, %158, %166 : vector<104x128xi32>
      %168 = vector.extract_strided_slice %71 {offsets = [1, 0], sizes = [1, 128], strides = [1, 1]} : vector<8x128xf32> to vector<1x128xf32>
      %169 = vector.shape_cast %168 : vector<1x128xf32> to vector<1x128xf32>
      %170 = vector.broadcast %169 : vector<1x128xf32> to vector<104x128xf32>
      %171 = arith.select %167, %170, %165 : vector<104x128xi1>, vector<104x128xf32>
      %c2_i32_59 = arith.constant 2 : i32
      %172 = vector.broadcast %c2_i32_59 : i32 to vector<104x128xi32>
      %173 = arith.cmpi eq, %158, %172 : vector<104x128xi32>
      %174 = vector.extract_strided_slice %76 {offsets = [1, 0], sizes = [1, 128], strides = [1, 1]} : vector<8x128xf32> to vector<1x128xf32>
      %175 = vector.shape_cast %174 : vector<1x128xf32> to vector<1x128xf32>
      %176 = vector.broadcast %175 : vector<1x128xf32> to vector<104x128xf32>
      %177 = arith.select %173, %176, %171 : vector<104x128xi1>, vector<104x128xf32>
      %178 = arith.mulf %153, %177 : vector<104x128xf32>
      %c0_60 = arith.constant 0 : index
      %c0_61 = arith.constant 0 : index
      %179 = vector.load %arg3[%c0_60, %c0_61] : memref<104x128xf32, #tpu.memory_space<vmem>>, vector<104x128xf32>
      %180 = arith.mulf %178, %179 : vector<104x128xf32>
      %cst_62 = arith.constant dense<0.000000e+00> : vector<128xf32>
      %181 = vector.multi_reduction <add>, %180, %cst_62 [0] : vector<104x128xf32> to vector<128xf32>
      %182 = vector.shape_cast %181 : vector<128xf32> to vector<1x128xf32>
      %c0_63 = arith.constant 0 : index
      %c0_64 = arith.constant 0 : index
      %c0_65 = arith.constant 0 : index
      %183 = vector.load %arg2[%c0_63, %c0_64, %c0_65] : memref<2x104x128xi32, #tpu.memory_space<vmem>>, vector<1x104x128xi32>
      %184 = vector.shape_cast %183 : vector<1x104x128xi32> to vector<104x128xi32>
      %185 = vector.extract_strided_slice %22 {offsets = [2, 0], sizes = [1, 128], strides = [1, 1]} : vector<8x128xi32> to vector<1x128xi32>
      %186 = vector.broadcast %185 : vector<1x128xi32> to vector<104x128xi32>
      %187 = arith.subi %184, %186 : vector<104x128xi32>
      %c0_i32_66 = arith.constant 0 : i32
      %188 = vector.broadcast %c0_i32_66 : i32 to vector<104x128xi32>
      %189 = arith.cmpi eq, %187, %188 : vector<104x128xi32>
      %190 = vector.extract_strided_slice %29 {offsets = [2, 0], sizes = [1, 128], strides = [1, 1]} : vector<8x128xf32> to vector<1x128xf32>
      %cst_67 = arith.constant 0.000000e+00 : f32
      %191 = vector.shape_cast %190 : vector<1x128xf32> to vector<1x128xf32>
      %192 = vector.broadcast %191 : vector<1x128xf32> to vector<104x128xf32>
      %193 = vector.broadcast %cst_67 : f32 to vector<104x128xf32>
      %194 = arith.select %189, %192, %193 : vector<104x128xi1>, vector<104x128xf32>
      %c1_i32_68 = arith.constant 1 : i32
      %195 = vector.broadcast %c1_i32_68 : i32 to vector<104x128xi32>
      %196 = arith.cmpi eq, %187, %195 : vector<104x128xi32>
      %197 = vector.extract_strided_slice %34 {offsets = [2, 0], sizes = [1, 128], strides = [1, 1]} : vector<8x128xf32> to vector<1x128xf32>
      %198 = vector.shape_cast %197 : vector<1x128xf32> to vector<1x128xf32>
      %199 = vector.broadcast %198 : vector<1x128xf32> to vector<104x128xf32>
      %200 = arith.select %196, %199, %194 : vector<104x128xi1>, vector<104x128xf32>
      %c2_i32_69 = arith.constant 2 : i32
      %201 = vector.broadcast %c2_i32_69 : i32 to vector<104x128xi32>
      %202 = arith.cmpi eq, %187, %201 : vector<104x128xi32>
      %203 = vector.extract_strided_slice %39 {offsets = [2, 0], sizes = [1, 128], strides = [1, 1]} : vector<8x128xf32> to vector<1x128xf32>
      %204 = vector.shape_cast %203 : vector<1x128xf32> to vector<1x128xf32>
      %205 = vector.broadcast %204 : vector<1x128xf32> to vector<104x128xf32>
      %206 = arith.select %202, %205, %200 : vector<104x128xi1>, vector<104x128xf32>
      %c1_70 = arith.constant 1 : index
      %c0_71 = arith.constant 0 : index
      %c0_72 = arith.constant 0 : index
      %207 = vector.load %arg2[%c1_70, %c0_71, %c0_72] : memref<2x104x128xi32, #tpu.memory_space<vmem>>, vector<1x104x128xi32>
      %208 = vector.shape_cast %207 : vector<1x104x128xi32> to vector<104x128xi32>
      %209 = vector.extract_strided_slice %59 {offsets = [2, 0], sizes = [1, 128], strides = [1, 1]} : vector<8x128xi32> to vector<1x128xi32>
      %210 = vector.broadcast %209 : vector<1x128xi32> to vector<104x128xi32>
      %211 = arith.subi %208, %210 : vector<104x128xi32>
      %c0_i32_73 = arith.constant 0 : i32
      %212 = vector.broadcast %c0_i32_73 : i32 to vector<104x128xi32>
      %213 = arith.cmpi eq, %211, %212 : vector<104x128xi32>
      %214 = vector.extract_strided_slice %66 {offsets = [2, 0], sizes = [1, 128], strides = [1, 1]} : vector<8x128xf32> to vector<1x128xf32>
      %cst_74 = arith.constant 0.000000e+00 : f32
      %215 = vector.shape_cast %214 : vector<1x128xf32> to vector<1x128xf32>
      %216 = vector.broadcast %215 : vector<1x128xf32> to vector<104x128xf32>
      %217 = vector.broadcast %cst_74 : f32 to vector<104x128xf32>
      %218 = arith.select %213, %216, %217 : vector<104x128xi1>, vector<104x128xf32>
      %c1_i32_75 = arith.constant 1 : i32
      %219 = vector.broadcast %c1_i32_75 : i32 to vector<104x128xi32>
      %220 = arith.cmpi eq, %211, %219 : vector<104x128xi32>
      %221 = vector.extract_strided_slice %71 {offsets = [2, 0], sizes = [1, 128], strides = [1, 1]} : vector<8x128xf32> to vector<1x128xf32>
      %222 = vector.shape_cast %221 : vector<1x128xf32> to vector<1x128xf32>
      %223 = vector.broadcast %222 : vector<1x128xf32> to vector<104x128xf32>
      %224 = arith.select %220, %223, %218 : vector<104x128xi1>, vector<104x128xf32>
      %c2_i32_76 = arith.constant 2 : i32
      %225 = vector.broadcast %c2_i32_76 : i32 to vector<104x128xi32>
      %226 = arith.cmpi eq, %211, %225 : vector<104x128xi32>
      %227 = vector.extract_strided_slice %76 {offsets = [2, 0], sizes = [1, 128], strides = [1, 1]} : vector<8x128xf32> to vector<1x128xf32>
      %228 = vector.shape_cast %227 : vector<1x128xf32> to vector<1x128xf32>
      %229 = vector.broadcast %228 : vector<1x128xf32> to vector<104x128xf32>
      %230 = arith.select %226, %229, %224 : vector<104x128xi1>, vector<104x128xf32>
      %231 = arith.mulf %206, %230 : vector<104x128xf32>
      %c0_77 = arith.constant 0 : index
      %c0_78 = arith.constant 0 : index
      %232 = vector.load %arg3[%c0_77, %c0_78] : memref<104x128xf32, #tpu.memory_space<vmem>>, vector<104x128xf32>
      %233 = arith.mulf %231, %232 : vector<104x128xf32>
      %cst_79 = arith.constant dense<0.000000e+00> : vector<128xf32>
      %234 = vector.multi_reduction <add>, %233, %cst_79 [0] : vector<104x128xf32> to vector<128xf32>
      %235 = vector.shape_cast %234 : vector<128xf32> to vector<1x128xf32>
      %c0_80 = arith.constant 0 : index
      %c0_81 = arith.constant 0 : index
      %c0_82 = arith.constant 0 : index
      %236 = vector.load %arg2[%c0_80, %c0_81, %c0_82] : memref<2x104x128xi32, #tpu.memory_space<vmem>>, vector<1x104x128xi32>
      %237 = vector.shape_cast %236 : vector<1x104x128xi32> to vector<104x128xi32>
      %238 = vector.extract_strided_slice %22 {offsets = [3, 0], sizes = [1, 128], strides = [1, 1]} : vector<8x128xi32> to vector<1x128xi32>
      %239 = vector.broadcast %238 : vector<1x128xi32> to vector<104x128xi32>
      %240 = arith.subi %237, %239 : vector<104x128xi32>
      %c0_i32_83 = arith.constant 0 : i32
      %241 = vector.broadcast %c0_i32_83 : i32 to vector<104x128xi32>
      %242 = arith.cmpi eq, %240, %241 : vector<104x128xi32>
      %243 = vector.extract_strided_slice %29 {offsets = [3, 0], sizes = [1, 128], strides = [1, 1]} : vector<8x128xf32> to vector<1x128xf32>
      %cst_84 = arith.constant 0.000000e+00 : f32
      %244 = vector.shape_cast %243 : vector<1x128xf32> to vector<1x128xf32>
      %245 = vector.broadcast %244 : vector<1x128xf32> to vector<104x128xf32>
      %246 = vector.broadcast %cst_84 : f32 to vector<104x128xf32>
      %247 = arith.select %242, %245, %246 : vector<104x128xi1>, vector<104x128xf32>
      %c1_i32_85 = arith.constant 1 : i32
      %248 = vector.broadcast %c1_i32_85 : i32 to vector<104x128xi32>
      %249 = arith.cmpi eq, %240, %248 : vector<104x128xi32>
      %250 = vector.extract_strided_slice %34 {offsets = [3, 0], sizes = [1, 128], strides = [1, 1]} : vector<8x128xf32> to vector<1x128xf32>
      %251 = vector.shape_cast %250 : vector<1x128xf32> to vector<1x128xf32>
      %252 = vector.broadcast %251 : vector<1x128xf32> to vector<104x128xf32>
      %253 = arith.select %249, %252, %247 : vector<104x128xi1>, vector<104x128xf32>
      %c2_i32_86 = arith.constant 2 : i32
      %254 = vector.broadcast %c2_i32_86 : i32 to vector<104x128xi32>
      %255 = arith.cmpi eq, %240, %254 : vector<104x128xi32>
      %256 = vector.extract_strided_slice %39 {offsets = [3, 0], sizes = [1, 128], strides = [1, 1]} : vector<8x128xf32> to vector<1x128xf32>
      %257 = vector.shape_cast %256 : vector<1x128xf32> to vector<1x128xf32>
      %258 = vector.broadcast %257 : vector<1x128xf32> to vector<104x128xf32>
      %259 = arith.select %255, %258, %253 : vector<104x128xi1>, vector<104x128xf32>
      %c1_87 = arith.constant 1 : index
      %c0_88 = arith.constant 0 : index
      %c0_89 = arith.constant 0 : index
      %260 = vector.load %arg2[%c1_87, %c0_88, %c0_89] : memref<2x104x128xi32, #tpu.memory_space<vmem>>, vector<1x104x128xi32>
      %261 = vector.shape_cast %260 : vector<1x104x128xi32> to vector<104x128xi32>
      %262 = vector.extract_strided_slice %59 {offsets = [3, 0], sizes = [1, 128], strides = [1, 1]} : vector<8x128xi32> to vector<1x128xi32>
      %263 = vector.broadcast %262 : vector<1x128xi32> to vector<104x128xi32>
      %264 = arith.subi %261, %263 : vector<104x128xi32>
      %c0_i32_90 = arith.constant 0 : i32
      %265 = vector.broadcast %c0_i32_90 : i32 to vector<104x128xi32>
      %266 = arith.cmpi eq, %264, %265 : vector<104x128xi32>
      %267 = vector.extract_strided_slice %66 {offsets = [3, 0], sizes = [1, 128], strides = [1, 1]} : vector<8x128xf32> to vector<1x128xf32>
      %cst_91 = arith.constant 0.000000e+00 : f32
      %268 = vector.shape_cast %267 : vector<1x128xf32> to vector<1x128xf32>
      %269 = vector.broadcast %268 : vector<1x128xf32> to vector<104x128xf32>
      %270 = vector.broadcast %cst_91 : f32 to vector<104x128xf32>
      %271 = arith.select %266, %269, %270 : vector<104x128xi1>, vector<104x128xf32>
      %c1_i32_92 = arith.constant 1 : i32
      %272 = vector.broadcast %c1_i32_92 : i32 to vector<104x128xi32>
      %273 = arith.cmpi eq, %264, %272 : vector<104x128xi32>
      %274 = vector.extract_strided_slice %71 {offsets = [3, 0], sizes = [1, 128], strides = [1, 1]} : vector<8x128xf32> to vector<1x128xf32>
      %275 = vector.shape_cast %274 : vector<1x128xf32> to vector<1x128xf32>
      %276 = vector.broadcast %275 : vector<1x128xf32> to vector<104x128xf32>
      %277 = arith.select %273, %276, %271 : vector<104x128xi1>, vector<104x128xf32>
      %c2_i32_93 = arith.constant 2 : i32
      %278 = vector.broadcast %c2_i32_93 : i32 to vector<104x128xi32>
      %279 = arith.cmpi eq, %264, %278 : vector<104x128xi32>
      %280 = vector.extract_strided_slice %76 {offsets = [3, 0], sizes = [1, 128], strides = [1, 1]} : vector<8x128xf32> to vector<1x128xf32>
      %281 = vector.shape_cast %280 : vector<1x128xf32> to vector<1x128xf32>
      %282 = vector.broadcast %281 : vector<1x128xf32> to vector<104x128xf32>
      %283 = arith.select %279, %282, %277 : vector<104x128xi1>, vector<104x128xf32>
      %284 = arith.mulf %259, %283 : vector<104x128xf32>
      %c0_94 = arith.constant 0 : index
      %c0_95 = arith.constant 0 : index
      %285 = vector.load %arg3[%c0_94, %c0_95] : memref<104x128xf32, #tpu.memory_space<vmem>>, vector<104x128xf32>
      %286 = arith.mulf %284, %285 : vector<104x128xf32>
      %cst_96 = arith.constant dense<0.000000e+00> : vector<128xf32>
      %287 = vector.multi_reduction <add>, %286, %cst_96 [0] : vector<104x128xf32> to vector<128xf32>
      %288 = vector.shape_cast %287 : vector<128xf32> to vector<1x128xf32>
      %c0_97 = arith.constant 0 : index
      %c0_98 = arith.constant 0 : index
      %c0_99 = arith.constant 0 : index
      %289 = vector.load %arg2[%c0_97, %c0_98, %c0_99] : memref<2x104x128xi32, #tpu.memory_space<vmem>>, vector<1x104x128xi32>
      %290 = vector.shape_cast %289 : vector<1x104x128xi32> to vector<104x128xi32>
      %291 = vector.extract_strided_slice %22 {offsets = [4, 0], sizes = [1, 128], strides = [1, 1]} : vector<8x128xi32> to vector<1x128xi32>
      %292 = vector.broadcast %291 : vector<1x128xi32> to vector<104x128xi32>
      %293 = arith.subi %290, %292 : vector<104x128xi32>
      %c0_i32_100 = arith.constant 0 : i32
      %294 = vector.broadcast %c0_i32_100 : i32 to vector<104x128xi32>
      %295 = arith.cmpi eq, %293, %294 : vector<104x128xi32>
      %296 = vector.extract_strided_slice %29 {offsets = [4, 0], sizes = [1, 128], strides = [1, 1]} : vector<8x128xf32> to vector<1x128xf32>
      %cst_101 = arith.constant 0.000000e+00 : f32
      %297 = vector.shape_cast %296 : vector<1x128xf32> to vector<1x128xf32>
      %298 = vector.broadcast %297 : vector<1x128xf32> to vector<104x128xf32>
      %299 = vector.broadcast %cst_101 : f32 to vector<104x128xf32>
      %300 = arith.select %295, %298, %299 : vector<104x128xi1>, vector<104x128xf32>
      %c1_i32_102 = arith.constant 1 : i32
      %301 = vector.broadcast %c1_i32_102 : i32 to vector<104x128xi32>
      %302 = arith.cmpi eq, %293, %301 : vector<104x128xi32>
      %303 = vector.extract_strided_slice %34 {offsets = [4, 0], sizes = [1, 128], strides = [1, 1]} : vector<8x128xf32> to vector<1x128xf32>
      %304 = vector.shape_cast %303 : vector<1x128xf32> to vector<1x128xf32>
      %305 = vector.broadcast %304 : vector<1x128xf32> to vector<104x128xf32>
      %306 = arith.select %302, %305, %300 : vector<104x128xi1>, vector<104x128xf32>
      %c2_i32_103 = arith.constant 2 : i32
      %307 = vector.broadcast %c2_i32_103 : i32 to vector<104x128xi32>
      %308 = arith.cmpi eq, %293, %307 : vector<104x128xi32>
      %309 = vector.extract_strided_slice %39 {offsets = [4, 0], sizes = [1, 128], strides = [1, 1]} : vector<8x128xf32> to vector<1x128xf32>
      %310 = vector.shape_cast %309 : vector<1x128xf32> to vector<1x128xf32>
      %311 = vector.broadcast %310 : vector<1x128xf32> to vector<104x128xf32>
      %312 = arith.select %308, %311, %306 : vector<104x128xi1>, vector<104x128xf32>
      %c1_104 = arith.constant 1 : index
      %c0_105 = arith.constant 0 : index
      %c0_106 = arith.constant 0 : index
      %313 = vector.load %arg2[%c1_104, %c0_105, %c0_106] : memref<2x104x128xi32, #tpu.memory_space<vmem>>, vector<1x104x128xi32>
      %314 = vector.shape_cast %313 : vector<1x104x128xi32> to vector<104x128xi32>
      %315 = vector.extract_strided_slice %59 {offsets = [4, 0], sizes = [1, 128], strides = [1, 1]} : vector<8x128xi32> to vector<1x128xi32>
      %316 = vector.broadcast %315 : vector<1x128xi32> to vector<104x128xi32>
      %317 = arith.subi %314, %316 : vector<104x128xi32>
      %c0_i32_107 = arith.constant 0 : i32
      %318 = vector.broadcast %c0_i32_107 : i32 to vector<104x128xi32>
      %319 = arith.cmpi eq, %317, %318 : vector<104x128xi32>
      %320 = vector.extract_strided_slice %66 {offsets = [4, 0], sizes = [1, 128], strides = [1, 1]} : vector<8x128xf32> to vector<1x128xf32>
      %cst_108 = arith.constant 0.000000e+00 : f32
      %321 = vector.shape_cast %320 : vector<1x128xf32> to vector<1x128xf32>
      %322 = vector.broadcast %321 : vector<1x128xf32> to vector<104x128xf32>
      %323 = vector.broadcast %cst_108 : f32 to vector<104x128xf32>
      %324 = arith.select %319, %322, %323 : vector<104x128xi1>, vector<104x128xf32>
      %c1_i32_109 = arith.constant 1 : i32
      %325 = vector.broadcast %c1_i32_109 : i32 to vector<104x128xi32>
      %326 = arith.cmpi eq, %317, %325 : vector<104x128xi32>
      %327 = vector.extract_strided_slice %71 {offsets = [4, 0], sizes = [1, 128], strides = [1, 1]} : vector<8x128xf32> to vector<1x128xf32>
      %328 = vector.shape_cast %327 : vector<1x128xf32> to vector<1x128xf32>
      %329 = vector.broadcast %328 : vector<1x128xf32> to vector<104x128xf32>
      %330 = arith.select %326, %329, %324 : vector<104x128xi1>, vector<104x128xf32>
      %c2_i32_110 = arith.constant 2 : i32
      %331 = vector.broadcast %c2_i32_110 : i32 to vector<104x128xi32>
      %332 = arith.cmpi eq, %317, %331 : vector<104x128xi32>
      %333 = vector.extract_strided_slice %76 {offsets = [4, 0], sizes = [1, 128], strides = [1, 1]} : vector<8x128xf32> to vector<1x128xf32>
      %334 = vector.shape_cast %333 : vector<1x128xf32> to vector<1x128xf32>
      %335 = vector.broadcast %334 : vector<1x128xf32> to vector<104x128xf32>
      %336 = arith.select %332, %335, %330 : vector<104x128xi1>, vector<104x128xf32>
      %337 = arith.mulf %312, %336 : vector<104x128xf32>
      %c0_111 = arith.constant 0 : index
      %c0_112 = arith.constant 0 : index
      %338 = vector.load %arg3[%c0_111, %c0_112] : memref<104x128xf32, #tpu.memory_space<vmem>>, vector<104x128xf32>
      %339 = arith.mulf %337, %338 : vector<104x128xf32>
      %cst_113 = arith.constant dense<0.000000e+00> : vector<128xf32>
      %340 = vector.multi_reduction <add>, %339, %cst_113 [0] : vector<104x128xf32> to vector<128xf32>
      %341 = vector.shape_cast %340 : vector<128xf32> to vector<1x128xf32>
      %c0_114 = arith.constant 0 : index
      %c0_115 = arith.constant 0 : index
      %c0_116 = arith.constant 0 : index
      %342 = vector.load %arg2[%c0_114, %c0_115, %c0_116] : memref<2x104x128xi32, #tpu.memory_space<vmem>>, vector<1x104x128xi32>
      %343 = vector.shape_cast %342 : vector<1x104x128xi32> to vector<104x128xi32>
      %344 = vector.extract_strided_slice %22 {offsets = [5, 0], sizes = [1, 128], strides = [1, 1]} : vector<8x128xi32> to vector<1x128xi32>
      %345 = vector.broadcast %344 : vector<1x128xi32> to vector<104x128xi32>
      %346 = arith.subi %343, %345 : vector<104x128xi32>
      %c0_i32_117 = arith.constant 0 : i32
      %347 = vector.broadcast %c0_i32_117 : i32 to vector<104x128xi32>
      %348 = arith.cmpi eq, %346, %347 : vector<104x128xi32>
      %349 = vector.extract_strided_slice %29 {offsets = [5, 0], sizes = [1, 128], strides = [1, 1]} : vector<8x128xf32> to vector<1x128xf32>
      %cst_118 = arith.constant 0.000000e+00 : f32
      %350 = vector.shape_cast %349 : vector<1x128xf32> to vector<1x128xf32>
      %351 = vector.broadcast %350 : vector<1x128xf32> to vector<104x128xf32>
      %352 = vector.broadcast %cst_118 : f32 to vector<104x128xf32>
      %353 = arith.select %348, %351, %352 : vector<104x128xi1>, vector<104x128xf32>
      %c1_i32_119 = arith.constant 1 : i32
      %354 = vector.broadcast %c1_i32_119 : i32 to vector<104x128xi32>
      %355 = arith.cmpi eq, %346, %354 : vector<104x128xi32>
      %356 = vector.extract_strided_slice %34 {offsets = [5, 0], sizes = [1, 128], strides = [1, 1]} : vector<8x128xf32> to vector<1x128xf32>
      %357 = vector.shape_cast %356 : vector<1x128xf32> to vector<1x128xf32>
      %358 = vector.broadcast %357 : vector<1x128xf32> to vector<104x128xf32>
      %359 = arith.select %355, %358, %353 : vector<104x128xi1>, vector<104x128xf32>
      %c2_i32_120 = arith.constant 2 : i32
      %360 = vector.broadcast %c2_i32_120 : i32 to vector<104x128xi32>
      %361 = arith.cmpi eq, %346, %360 : vector<104x128xi32>
      %362 = vector.extract_strided_slice %39 {offsets = [5, 0], sizes = [1, 128], strides = [1, 1]} : vector<8x128xf32> to vector<1x128xf32>
      %363 = vector.shape_cast %362 : vector<1x128xf32> to vector<1x128xf32>
      %364 = vector.broadcast %363 : vector<1x128xf32> to vector<104x128xf32>
      %365 = arith.select %361, %364, %359 : vector<104x128xi1>, vector<104x128xf32>
      %c1_121 = arith.constant 1 : index
      %c0_122 = arith.constant 0 : index
      %c0_123 = arith.constant 0 : index
      %366 = vector.load %arg2[%c1_121, %c0_122, %c0_123] : memref<2x104x128xi32, #tpu.memory_space<vmem>>, vector<1x104x128xi32>
      %367 = vector.shape_cast %366 : vector<1x104x128xi32> to vector<104x128xi32>
      %368 = vector.extract_strided_slice %59 {offsets = [5, 0], sizes = [1, 128], strides = [1, 1]} : vector<8x128xi32> to vector<1x128xi32>
      %369 = vector.broadcast %368 : vector<1x128xi32> to vector<104x128xi32>
      %370 = arith.subi %367, %369 : vector<104x128xi32>
      %c0_i32_124 = arith.constant 0 : i32
      %371 = vector.broadcast %c0_i32_124 : i32 to vector<104x128xi32>
      %372 = arith.cmpi eq, %370, %371 : vector<104x128xi32>
      %373 = vector.extract_strided_slice %66 {offsets = [5, 0], sizes = [1, 128], strides = [1, 1]} : vector<8x128xf32> to vector<1x128xf32>
      %cst_125 = arith.constant 0.000000e+00 : f32
      %374 = vector.shape_cast %373 : vector<1x128xf32> to vector<1x128xf32>
      %375 = vector.broadcast %374 : vector<1x128xf32> to vector<104x128xf32>
      %376 = vector.broadcast %cst_125 : f32 to vector<104x128xf32>
      %377 = arith.select %372, %375, %376 : vector<104x128xi1>, vector<104x128xf32>
      %c1_i32_126 = arith.constant 1 : i32
      %378 = vector.broadcast %c1_i32_126 : i32 to vector<104x128xi32>
      %379 = arith.cmpi eq, %370, %378 : vector<104x128xi32>
      %380 = vector.extract_strided_slice %71 {offsets = [5, 0], sizes = [1, 128], strides = [1, 1]} : vector<8x128xf32> to vector<1x128xf32>
      %381 = vector.shape_cast %380 : vector<1x128xf32> to vector<1x128xf32>
      %382 = vector.broadcast %381 : vector<1x128xf32> to vector<104x128xf32>
      %383 = arith.select %379, %382, %377 : vector<104x128xi1>, vector<104x128xf32>
      %c2_i32_127 = arith.constant 2 : i32
      %384 = vector.broadcast %c2_i32_127 : i32 to vector<104x128xi32>
      %385 = arith.cmpi eq, %370, %384 : vector<104x128xi32>
      %386 = vector.extract_strided_slice %76 {offsets = [5, 0], sizes = [1, 128], strides = [1, 1]} : vector<8x128xf32> to vector<1x128xf32>
      %387 = vector.shape_cast %386 : vector<1x128xf32> to vector<1x128xf32>
      %388 = vector.broadcast %387 : vector<1x128xf32> to vector<104x128xf32>
      %389 = arith.select %385, %388, %383 : vector<104x128xi1>, vector<104x128xf32>
      %390 = arith.mulf %365, %389 : vector<104x128xf32>
      %c0_128 = arith.constant 0 : index
      %c0_129 = arith.constant 0 : index
      %391 = vector.load %arg3[%c0_128, %c0_129] : memref<104x128xf32, #tpu.memory_space<vmem>>, vector<104x128xf32>
      %392 = arith.mulf %390, %391 : vector<104x128xf32>
      %cst_130 = arith.constant dense<0.000000e+00> : vector<128xf32>
      %393 = vector.multi_reduction <add>, %392, %cst_130 [0] : vector<104x128xf32> to vector<128xf32>
      %394 = vector.shape_cast %393 : vector<128xf32> to vector<1x128xf32>
      %c0_131 = arith.constant 0 : index
      %c0_132 = arith.constant 0 : index
      %c0_133 = arith.constant 0 : index
      %395 = vector.load %arg2[%c0_131, %c0_132, %c0_133] : memref<2x104x128xi32, #tpu.memory_space<vmem>>, vector<1x104x128xi32>
      %396 = vector.shape_cast %395 : vector<1x104x128xi32> to vector<104x128xi32>
      %397 = vector.extract_strided_slice %22 {offsets = [6, 0], sizes = [1, 128], strides = [1, 1]} : vector<8x128xi32> to vector<1x128xi32>
      %398 = vector.broadcast %397 : vector<1x128xi32> to vector<104x128xi32>
      %399 = arith.subi %396, %398 : vector<104x128xi32>
      %c0_i32_134 = arith.constant 0 : i32
      %400 = vector.broadcast %c0_i32_134 : i32 to vector<104x128xi32>
      %401 = arith.cmpi eq, %399, %400 : vector<104x128xi32>
      %402 = vector.extract_strided_slice %29 {offsets = [6, 0], sizes = [1, 128], strides = [1, 1]} : vector<8x128xf32> to vector<1x128xf32>
      %cst_135 = arith.constant 0.000000e+00 : f32
      %403 = vector.shape_cast %402 : vector<1x128xf32> to vector<1x128xf32>
      %404 = vector.broadcast %403 : vector<1x128xf32> to vector<104x128xf32>
      %405 = vector.broadcast %cst_135 : f32 to vector<104x128xf32>
      %406 = arith.select %401, %404, %405 : vector<104x128xi1>, vector<104x128xf32>
      %c1_i32_136 = arith.constant 1 : i32
      %407 = vector.broadcast %c1_i32_136 : i32 to vector<104x128xi32>
      %408 = arith.cmpi eq, %399, %407 : vector<104x128xi32>
      %409 = vector.extract_strided_slice %34 {offsets = [6, 0], sizes = [1, 128], strides = [1, 1]} : vector<8x128xf32> to vector<1x128xf32>
      %410 = vector.shape_cast %409 : vector<1x128xf32> to vector<1x128xf32>
      %411 = vector.broadcast %410 : vector<1x128xf32> to vector<104x128xf32>
      %412 = arith.select %408, %411, %406 : vector<104x128xi1>, vector<104x128xf32>
      %c2_i32_137 = arith.constant 2 : i32
      %413 = vector.broadcast %c2_i32_137 : i32 to vector<104x128xi32>
      %414 = arith.cmpi eq, %399, %413 : vector<104x128xi32>
      %415 = vector.extract_strided_slice %39 {offsets = [6, 0], sizes = [1, 128], strides = [1, 1]} : vector<8x128xf32> to vector<1x128xf32>
      %416 = vector.shape_cast %415 : vector<1x128xf32> to vector<1x128xf32>
      %417 = vector.broadcast %416 : vector<1x128xf32> to vector<104x128xf32>
      %418 = arith.select %414, %417, %412 : vector<104x128xi1>, vector<104x128xf32>
      %c1_138 = arith.constant 1 : index
      %c0_139 = arith.constant 0 : index
      %c0_140 = arith.constant 0 : index
      %419 = vector.load %arg2[%c1_138, %c0_139, %c0_140] : memref<2x104x128xi32, #tpu.memory_space<vmem>>, vector<1x104x128xi32>
      %420 = vector.shape_cast %419 : vector<1x104x128xi32> to vector<104x128xi32>
      %421 = vector.extract_strided_slice %59 {offsets = [6, 0], sizes = [1, 128], strides = [1, 1]} : vector<8x128xi32> to vector<1x128xi32>
      %422 = vector.broadcast %421 : vector<1x128xi32> to vector<104x128xi32>
      %423 = arith.subi %420, %422 : vector<104x128xi32>
      %c0_i32_141 = arith.constant 0 : i32
      %424 = vector.broadcast %c0_i32_141 : i32 to vector<104x128xi32>
      %425 = arith.cmpi eq, %423, %424 : vector<104x128xi32>
      %426 = vector.extract_strided_slice %66 {offsets = [6, 0], sizes = [1, 128], strides = [1, 1]} : vector<8x128xf32> to vector<1x128xf32>
      %cst_142 = arith.constant 0.000000e+00 : f32
      %427 = vector.shape_cast %426 : vector<1x128xf32> to vector<1x128xf32>
      %428 = vector.broadcast %427 : vector<1x128xf32> to vector<104x128xf32>
      %429 = vector.broadcast %cst_142 : f32 to vector<104x128xf32>
      %430 = arith.select %425, %428, %429 : vector<104x128xi1>, vector<104x128xf32>
      %c1_i32_143 = arith.constant 1 : i32
      %431 = vector.broadcast %c1_i32_143 : i32 to vector<104x128xi32>
      %432 = arith.cmpi eq, %423, %431 : vector<104x128xi32>
      %433 = vector.extract_strided_slice %71 {offsets = [6, 0], sizes = [1, 128], strides = [1, 1]} : vector<8x128xf32> to vector<1x128xf32>
      %434 = vector.shape_cast %433 : vector<1x128xf32> to vector<1x128xf32>
      %435 = vector.broadcast %434 : vector<1x128xf32> to vector<104x128xf32>
      %436 = arith.select %432, %435, %430 : vector<104x128xi1>, vector<104x128xf32>
      %c2_i32_144 = arith.constant 2 : i32
      %437 = vector.broadcast %c2_i32_144 : i32 to vector<104x128xi32>
      %438 = arith.cmpi eq, %423, %437 : vector<104x128xi32>
      %439 = vector.extract_strided_slice %76 {offsets = [6, 0], sizes = [1, 128], strides = [1, 1]} : vector<8x128xf32> to vector<1x128xf32>
      %440 = vector.shape_cast %439 : vector<1x128xf32> to vector<1x128xf32>
      %441 = vector.broadcast %440 : vector<1x128xf32> to vector<104x128xf32>
      %442 = arith.select %438, %441, %436 : vector<104x128xi1>, vector<104x128xf32>
      %443 = arith.mulf %418, %442 : vector<104x128xf32>
      %c0_145 = arith.constant 0 : index
      %c0_146 = arith.constant 0 : index
      %444 = vector.load %arg3[%c0_145, %c0_146] : memref<104x128xf32, #tpu.memory_space<vmem>>, vector<104x128xf32>
      %445 = arith.mulf %443, %444 : vector<104x128xf32>
      %cst_147 = arith.constant dense<0.000000e+00> : vector<128xf32>
      %446 = vector.multi_reduction <add>, %445, %cst_147 [0] : vector<104x128xf32> to vector<128xf32>
      %447 = vector.shape_cast %446 : vector<128xf32> to vector<1x128xf32>
      %c0_148 = arith.constant 0 : index
      %c0_149 = arith.constant 0 : index
      %c0_150 = arith.constant 0 : index
      %448 = vector.load %arg2[%c0_148, %c0_149, %c0_150] : memref<2x104x128xi32, #tpu.memory_space<vmem>>, vector<1x104x128xi32>
      %449 = vector.shape_cast %448 : vector<1x104x128xi32> to vector<104x128xi32>
      %450 = vector.extract_strided_slice %22 {offsets = [7, 0], sizes = [1, 128], strides = [1, 1]} : vector<8x128xi32> to vector<1x128xi32>
      %451 = vector.broadcast %450 : vector<1x128xi32> to vector<104x128xi32>
      %452 = arith.subi %449, %451 : vector<104x128xi32>
      %c0_i32_151 = arith.constant 0 : i32
      %453 = vector.broadcast %c0_i32_151 : i32 to vector<104x128xi32>
      %454 = arith.cmpi eq, %452, %453 : vector<104x128xi32>
      %455 = vector.extract_strided_slice %29 {offsets = [7, 0], sizes = [1, 128], strides = [1, 1]} : vector<8x128xf32> to vector<1x128xf32>
      %cst_152 = arith.constant 0.000000e+00 : f32
      %456 = vector.shape_cast %455 : vector<1x128xf32> to vector<1x128xf32>
      %457 = vector.broadcast %456 : vector<1x128xf32> to vector<104x128xf32>
      %458 = vector.broadcast %cst_152 : f32 to vector<104x128xf32>
      %459 = arith.select %454, %457, %458 : vector<104x128xi1>, vector<104x128xf32>
      %c1_i32_153 = arith.constant 1 : i32
      %460 = vector.broadcast %c1_i32_153 : i32 to vector<104x128xi32>
      %461 = arith.cmpi eq, %452, %460 : vector<104x128xi32>
      %462 = vector.extract_strided_slice %34 {offsets = [7, 0], sizes = [1, 128], strides = [1, 1]} : vector<8x128xf32> to vector<1x128xf32>
      %463 = vector.shape_cast %462 : vector<1x128xf32> to vector<1x128xf32>
      %464 = vector.broadcast %463 : vector<1x128xf32> to vector<104x128xf32>
      %465 = arith.select %461, %464, %459 : vector<104x128xi1>, vector<104x128xf32>
      %c2_i32_154 = arith.constant 2 : i32
      %466 = vector.broadcast %c2_i32_154 : i32 to vector<104x128xi32>
      %467 = arith.cmpi eq, %452, %466 : vector<104x128xi32>
      %468 = vector.extract_strided_slice %39 {offsets = [7, 0], sizes = [1, 128], strides = [1, 1]} : vector<8x128xf32> to vector<1x128xf32>
      %469 = vector.shape_cast %468 : vector<1x128xf32> to vector<1x128xf32>
      %470 = vector.broadcast %469 : vector<1x128xf32> to vector<104x128xf32>
      %471 = arith.select %467, %470, %465 : vector<104x128xi1>, vector<104x128xf32>
      %c1_155 = arith.constant 1 : index
      %c0_156 = arith.constant 0 : index
      %c0_157 = arith.constant 0 : index
      %472 = vector.load %arg2[%c1_155, %c0_156, %c0_157] : memref<2x104x128xi32, #tpu.memory_space<vmem>>, vector<1x104x128xi32>
      %473 = vector.shape_cast %472 : vector<1x104x128xi32> to vector<104x128xi32>
      %474 = vector.extract_strided_slice %59 {offsets = [7, 0], sizes = [1, 128], strides = [1, 1]} : vector<8x128xi32> to vector<1x128xi32>
      %475 = vector.broadcast %474 : vector<1x128xi32> to vector<104x128xi32>
      %476 = arith.subi %473, %475 : vector<104x128xi32>
      %c0_i32_158 = arith.constant 0 : i32
      %477 = vector.broadcast %c0_i32_158 : i32 to vector<104x128xi32>
      %478 = arith.cmpi eq, %476, %477 : vector<104x128xi32>
      %479 = vector.extract_strided_slice %66 {offsets = [7, 0], sizes = [1, 128], strides = [1, 1]} : vector<8x128xf32> to vector<1x128xf32>
      %cst_159 = arith.constant 0.000000e+00 : f32
      %480 = vector.shape_cast %479 : vector<1x128xf32> to vector<1x128xf32>
      %481 = vector.broadcast %480 : vector<1x128xf32> to vector<104x128xf32>
      %482 = vector.broadcast %cst_159 : f32 to vector<104x128xf32>
      %483 = arith.select %478, %481, %482 : vector<104x128xi1>, vector<104x128xf32>
      %c1_i32_160 = arith.constant 1 : i32
      %484 = vector.broadcast %c1_i32_160 : i32 to vector<104x128xi32>
      %485 = arith.cmpi eq, %476, %484 : vector<104x128xi32>
      %486 = vector.extract_strided_slice %71 {offsets = [7, 0], sizes = [1, 128], strides = [1, 1]} : vector<8x128xf32> to vector<1x128xf32>
      %487 = vector.shape_cast %486 : vector<1x128xf32> to vector<1x128xf32>
      %488 = vector.broadcast %487 : vector<1x128xf32> to vector<104x128xf32>
      %489 = arith.select %485, %488, %483 : vector<104x128xi1>, vector<104x128xf32>
      %c2_i32_161 = arith.constant 2 : i32
      %490 = vector.broadcast %c2_i32_161 : i32 to vector<104x128xi32>
      %491 = arith.cmpi eq, %476, %490 : vector<104x128xi32>
      %492 = vector.extract_strided_slice %76 {offsets = [7, 0], sizes = [1, 128], strides = [1, 1]} : vector<8x128xf32> to vector<1x128xf32>
      %493 = vector.shape_cast %492 : vector<1x128xf32> to vector<1x128xf32>
      %494 = vector.broadcast %493 : vector<1x128xf32> to vector<104x128xf32>
      %495 = arith.select %491, %494, %489 : vector<104x128xi1>, vector<104x128xf32>
      %496 = arith.mulf %471, %495 : vector<104x128xf32>
      %c0_162 = arith.constant 0 : index
      %c0_163 = arith.constant 0 : index
      %497 = vector.load %arg3[%c0_162, %c0_163] : memref<104x128xf32, #tpu.memory_space<vmem>>, vector<104x128xf32>
      %498 = arith.mulf %496, %497 : vector<104x128xf32>
      %cst_164 = arith.constant dense<0.000000e+00> : vector<128xf32>
      %499 = vector.multi_reduction <add>, %498, %cst_164 [0] : vector<104x128xf32> to vector<128xf32>
      %500 = vector.shape_cast %499 : vector<128xf32> to vector<1x128xf32>
      %501 = tpu.concatenate %129, %182, %235, %288, %341, %394, %447, %500 in 0 : vector<1x128xf32>, vector<1x128xf32>, vector<1x128xf32>, vector<1x128xf32>, vector<1x128xf32>, vector<1x128xf32>, vector<1x128xf32>, vector<1x128xf32> -> vector<8x128xf32>
      %502 = arith.index_cast %2 : i32 to index
      %c0_165 = arith.constant 0 : index
      %503 = vector.load %arg4[%502, %c0_165] : memref<32x128xf32, #tpu.memory_space<vmem>>, vector<8x128xf32>
      tpu.vector_store %arg4[%502, %c0_165], %501 {strides = array<i32>} : memref<32x128xf32, #tpu.memory_space<vmem>>, vector<8x128xf32>,
    }
    %c4_i32_0 = arith.constant 4 : i32
    return
  }
  func.func @transform_0(%arg0: i32) -> (i32, i32, i32) {
    %c0_i32 = arith.constant 0 : i32
    %c0_i32_0 = arith.constant 0 : i32
    %c0_i32_1 = arith.constant 0 : i32
    return %c0_i32, %arg0, %c0_i32_0 : i32, i32, i32
  }
  func.func @transform_1(%arg0: i32) -> (i32, i32, i32) {
    %c0_i32 = arith.constant 0 : i32
    %c0_i32_0 = arith.constant 0 : i32
    %c0_i32_1 = arith.constant 0 : i32
    %c0_i32_2 = arith.constant 0 : i32
    return %c0_i32, %c0_i32_0, %c0_i32_1 : i32, i32, i32
  }
  func.func @transform_2(%arg0: i32) -> (i32, i32) {
    %c0_i32 = arith.constant 0 : i32
    %c0_i32_0 = arith.constant 0 : i32
    %c0_i32_1 = arith.constant 0 : i32
    return %c0_i32, %c0_i32_0 : i32, i32
  }
  func.func @transform_3(%arg0: i32) -> (i32, i32) {
    %c0_i32 = arith.constant 0 : i32
    %c0_i32_0 = arith.constant 0 : i32
    return %arg0, %c0_i32 : i32, i32
  }
}

</mosaic_0001>

<llo_original>
// kernel: tpu_custom_call.1
$region0: #{tpu_custom_call.1}
  #allocation0 [shape = 'u32[]', space=smem, size = 0x4, offset = 0x4, fixed_abs, tag = 'smem constant byte address 0x4 - core index']
  #allocation1 [shape = 'u32[144,128]{1,0:T(1,128)}', space=vmem, size = 0x12000, scoped, tag = 'internal scratch']
  #allocation9 [shape = 's32[]', space=sflag, size = 0x4, offset = 0, fixed_abs, tag = 'sflag constant byte address 0x0 - dummy sync flag']
  %s0 = inlined_call_operand.hbm [shape: f32[2,64,128], index: 0, kind: input, shape index: {}]
  %s1 = inlined_call_operand.hbm [shape: s32[2,104,128], index: 1, kind: input, shape index: {}]
  %s2 = inlined_call_operand.hbm [shape: f32[104,128], index: 2, kind: input, shape index: {}]
  %s3 = inlined_call_operand.hbm [shape: f32[64,128], index: 3, kind: output, shape index: {}]
  %s4 = sld [smem:[#allocation0]]
  $region64: #{tpu_custom_call.1} parent=0
    _
  %s6 = ssub.s32 1, %s4
  %s7 = scalar_select 0, %s6, %s4
  $region1: #{tpu_custom_call.1} parent=0
    #allocation2 [shape = 'u8[65536]{0}', space=vmem, size = 0x10000, scoped, tag = 'input window, operand 0']
    #allocation3 [shape = 's32[2]{0}', space=sflag, size = 0x8, scoped, tag = 'scoped memory for tpu_custom_call.1']
    #allocation4 [shape = 's32[2]{0}', space=sflag, size = 0x8, scoped, tag = 'scoped memory for tpu_custom_call.1']
    #allocation5 [shape = 'u8[106496]{0}', space=vmem, size = 0x1a000, scoped, tag = 'input window, operand 1, single buffered']
    #allocation6 [shape = 's32[1]{0}', space=sflag, size = 0x4, scoped, tag = 'scoped memory for tpu_custom_call.1']
    #allocation7 [shape = 'u8[53248]{0}', space=vmem, size = 0xd000, scoped, tag = 'input window, operand 2, single buffered']
    #allocation8 [shape = 'u8[32768]{0}', space=vmem, size = 0x8000, scoped, tag = 'output window, operand 0']
    %8 = vsyncpa [#allocation3], 0
    %s9 = scalar_lea.sflag [#allocation3], 1
    %10 = vsyncpa %s9, 0
    %11 = vsyncpa [#allocation6], 0
    %12 = vsyncpa [#allocation4], 0
    %s13 = scalar_lea.sflag [#allocation4], 1
    %14 = vsyncpa %s13, 0
    loop: start=0, step=1, limit=4
    $region2: #{tpu_custom_call.1} parent=1 // loop_pre_header
      _
    $region3: #{tpu_custom_call.1} parent=1 // loop_header
      %s16 = sphi 0, %s20
      %p17 = scmp.ge.s32.totalorder %s16, 4
      %s26 = sphi 0, %s28
      %s29 = sphi 0, %s26
      %s30 = sphi 0, %s29
      %s46 = sphi 0, %s30
      %s50 = sphi 0, %s50
      %s52 = sphi 0, %s50
      %s53 = sphi 0, %s52
      %s67 = sphi 0, %s53
      %s71 = sphi 0, %s71
      %s73 = sphi 0, %s71
      %s74 = sphi 0, %s73
      %s88 = sphi 0, %s74
      %s94 = sphi 0, %s96
      %s97 = sphi 0, %s94
      %s98 = sphi 0, %s97
      %s114 = sphi 0, %s98
    $region4: #{tpu_custom_call.1} parent=1 // loop_header_branch
      %19 = sbr.rel (%p17) target = $region8
    $region5: #{tpu_custom_call.1} parent=1 // loop_body
      %s21 = ssub.s32 %s16, 1
      %s22 = ssub.s32 %s16, 2
      %s23 = sadd.s32 %s16, 1
      %s24 = ssub.s32 %s16, %s23
      %p25 = scmp.eq.s32.totalorder %s24, 0
      %s27 = sadd.s32 %s26, 1
      %s28 = scalar_select %p25, %s26, %s27
      %p31 = pneg %p25
      %p32 = scmp.eq.s32.totalorder %s16, 1
      %p33 = por %p31, %p32
      %p34 = scmp.ne.s32.totalorder %s26, %s29
      %p35 = scmp.eq.s32.totalorder %s16, 0
      %p36 = por %p34, %p35
      %p37 = scmp.ne.s32.totalorder %s26, %s29
      %p38 = scmp.eq.s32.totalorder %s21, 1
      %p39 = por %p37, %p38
      %p40 = scmp.ne.s32.totalorder %s29, %s30
      %p41 = scmp.eq.s32.totalorder %s21, 0
      %p42 = por %p40, %p41
      %p43 = scmp.ne.s32.totalorder %s29, %s30
      %p44 = scmp.eq.s32.totalorder %s22, 1
      %p45 = por %p43, %p44
      %p47 = scmp.ne.s32.totalorder %s30, %s46
      %p48 = scmp.eq.s32.totalorder %s22, 0
      %p49 = por %p47, %p48
      %s51 = sadd.s32 %s50, 1
      %p54 = scmp.eq.s32.totalorder %s16, 1
      %p55 = scmp.ne.s32.totalorder %s50, %s52
      %p56 = scmp.eq.s32.totalorder %s16, 0
      %p57 = por %p55, %p56
      %p58 = scmp.ne.s32.totalorder %s50, %s52
      %p59 = scmp.eq.s32.totalorder %s21, 1
      %p60 = por %p58, %p59
      %p61 = scmp.ne.s32.totalorder %s52, %s53
      %p62 = scmp.eq.s32.totalorder %s21, 0
      %p63 = por %p61, %p62
      %p64 = scmp.ne.s32.totalorder %s52, %s53
      %p65 = scmp.eq.s32.totalorder %s22, 1
      %p66 = por %p64, %p65
      %p68 = scmp.ne.s32.totalorder %s53, %s67
      %p69 = scmp.eq.s32.totalorder %s22, 0
      %p70 = por %p68, %p69
      %s72 = sadd.s32 %s71, 1
      %p75 = scmp.eq.s32.totalorder %s16, 1
      %p76 = scmp.ne.s32.totalorder %s71, %s73
      %p77 = scmp.eq.s32.totalorder %s16, 0
      %p78 = por %p76, %p77
      %p79 = scmp.ne.s32.totalorder %s71, %s73
      %p80 = scmp.eq.s32.totalorder %s21, 1
      %p81 = por %p79, %p80
      %p82 = scmp.ne.s32.totalorder %s73, %s74
      %p83 = scmp.eq.s32.totalorder %s21, 0
      %p84 = por %p82, %p83
      %p85 = scmp.ne.s32.totalorder %s73, %s74
      %p86 = scmp.eq.s32.totalorder %s22, 1
      %p87 = por %p85, %p86
      %p89 = scmp.ne.s32.totalorder %s74, %s88
      %p90 = scmp.eq.s32.totalorder %s22, 0
      %p91 = por %p89, %p90
      %s92 = ssub.s32 %s16, %s23
      %p93 = scmp.eq.s32.totalorder %s92, 0
      %s95 = sadd.s32 %s94, 1
      %s96 = scalar_select %p93, %s94, %s95
      %p99 = pneg %p93
      %p100 = scmp.eq.s32.totalorder %s16, 1
      %p101 = por %p99, %p100
      %p102 = scmp.ne.s32.totalorder %s94, %s97
      %p103 = scmp.eq.s32.totalorder %s16, 0
      %p104 = por %p102, %p103
      %p105 = scmp.ne.s32.totalorder %s94, %s97
      %p106 = scmp.eq.s32.totalorder %s21, 1
      %p107 = por %p105, %p106
      %p108 = scmp.ne.s32.totalorder %s97, %s98
      %p109 = scmp.eq.s32.totalorder %s21, 0
      %p110 = por %p108, %p109
      %p111 = scmp.ne.s32.totalorder %s97, %s98
      %p112 = scmp.eq.s32.totalorder %s22, 1
      %p113 = por %p111, %p112
      %p115 = scmp.ne.s32.totalorder %s98, %s114
      %p116 = scmp.eq.s32.totalorder %s22, 0
      %p117 = por %p115, %p116
      %p118 = scmp.le.s32.totalorder 1, %s16
      %p119 = scmp.lt.s32.totalorder %s16, 3
      %p120 = pnand %p118, %p119
      %p121 = pneg %p120
      // Predicated region
      $region9: #{tpu_custom_call.1} parent=5 // pred_check
        _
      $region10: #{tpu_custom_call.1} parent=5 // pred_check_branch
        %123 = sbr.rel (%p120) target = $region12
      $region11: #{tpu_custom_call.1} parent=5 // pred_region
        %s124 = ssub.s32 %s16, 1
        // Predicated region
        $region13: #{tpu_custom_call.1} parent=11 // pred_check
          %p125 = pneg %p63
        $region14: #{tpu_custom_call.1} parent=11 // pred_check_branch
          %127 = sbr.rel (%p125) target = $region16
        $region15: #{tpu_custom_call.1} parent=11 // pred_region
          %s129 = ssub.s32 3328, 3328
          %130 = vsyncadd [#allocation6], %s129
          %s131 = sshll.u32 [#allocation5], 4
          %s132 = int_to_ptr.vmem [resolvable:$true] %s131
          %137 = dma.hbm_to_vmem [thread:$0]  %s1, 3328, %s132, [#allocation6], 128, 128, 8
        $region16: #{tpu_custom_call.1} parent=11 // pred_fallthru
          _
        // Predicated region
        $region17: #{tpu_custom_call.1} parent=11 // pred_check
          %p138 = pneg %p84
        $region18: #{tpu_custom_call.1} parent=11 // pred_check_branch
          %140 = sbr.rel (%p138) target = $region20
        $region19: #{tpu_custom_call.1} parent=11 // pred_region
          %s142 = ssub.s32 1664, 1664
          %143 = vsyncadd [#allocation6], %s142
          %s144 = sshll.u32 [#allocation7], 4
          %s145 = int_to_ptr.vmem [resolvable:$true] %s144
          %150 = dma.hbm_to_vmem [thread:$0]  %s2, 1664, %s145, [#allocation6], 128, 128, 8
        $region20: #{tpu_custom_call.1} parent=11 // pred_fallthru
          _
      $region12: #{tpu_custom_call.1} parent=5 // pred_fallthru
        _
      %p151 = scmp.lt.s32.totalorder %s16, 2
      // Predicated region
      $region21: #{tpu_custom_call.1} parent=5 // pred_check
        %p152 = pneg %p151
      $region22: #{tpu_custom_call.1} parent=5 // pred_check_branch
        %154 = sbr.rel (%p152) target = $region24
      $region23: #{tpu_custom_call.1} parent=5 // pred_region
        // Predicated region
        $region25: #{tpu_custom_call.1} parent=23 // pred_check
          %p155 = pneg %p36
        $region26: #{tpu_custom_call.1} parent=23 // pred_check_branch
          %157 = sbr.rel (%p155) target = $region28
        $region27: #{tpu_custom_call.1} parent=23 // pred_region
          #allocation10 [shape = 'u32[6]{0}', space=smem, size = 0x18, scoped, tag = 'DMA stride descriptor']
          %s158 = sand.u32 %s26, 1
          %s159 = scalar_lea.sflag [#allocation3], %s158
          %s160 = sand.u32 %s26, 1
          %s161 = smul.addr %s160, 64
          %s162 = scalar_lea.vmem [#allocation2], %s161
          %s163 = smul.u32 4, %s16
          %s165 = ssub.s32 1024, 1024
          %166 = vsyncadd %s159, %s165
          %s167 = smul.addr %s163, 128
          %s168 = scalar_lea.hbm %s0, %s167
          %s170 = sshll.u32 1, 14
          %s171 = sxor.u32 4294967295, %s170
          %s173 = sld [smem:[#allocation0]]
          %s174 = sadd.s32 2, %s173
          %s176 = sshll.u32 7, 26
          %s177 = sxor.u32 4294967295, %s176
          %s178 = sand.u32 0, %s177
          %s179 = sshll.u32 %s174, 26
          %s180 = sor.u32 %s178, %s179
          %s181 = sshll.u32 %s162, 4
          %s182 = int_to_ptr.vmem [resolvable:$true] %s181
          %188 = sst [smem:[#allocation10]] 1024
          %s189 = scalar_lea.smem [#allocation10], 1
          %190 = sst [smem:[%s189]] 512
          %s191 = scalar_lea.smem [#allocation10], 2
          %192 = sst [smem:[%s191]] 4
          %s193 = scalar_lea.smem [#allocation10], 3
          %194 = sst [smem:[%s193]] 128
          %s195 = scalar_lea.smem [#allocation10], 4
          %196 = sst [smem:[%s195]] 128
          %s197 = scalar_lea.smem [#allocation10], 5
          %198 = sst [smem:[%s197]] 8
          %200 = dma.general %s168, 1024, %s182, %s159, [#allocation9], [#allocation10], %s180, 0
        $region28: #{tpu_custom_call.1} parent=23 // pred_fallthru
          _
      $region24: #{tpu_custom_call.1} parent=5 // pred_fallthru
        _
      %p201 = scmp.le.s32.totalorder 1, %s16
      %p202 = scmp.lt.s32.totalorder %s16, 3
      %p203 = pnand %p201, %p202
      %p204 = pneg %p203
      // Predicated region
      $region29: #{tpu_custom_call.1} parent=5 // pred_check
        _
      $region30: #{tpu_custom_call.1} parent=5 // pred_check_branch
        %206 = sbr.rel (%p203) target = $region32
      $region31: #{tpu_custom_call.1} parent=5 // pred_region
        %s207 = ssub.s32 %s16, 1
        %s208 = sand.u32 %s29, 1
        %s209 = scalar_lea.sflag [#allocation3], %s208
        %s210 = sand.u32 %s29, 1
        %s211 = smul.addr %s210, 64
        %s212 = scalar_lea.vmem [#allocation2], %s211
        // Predicated region
        $region33: #{tpu_custom_call.1} parent=31 // pred_check
          %p213 = pneg %p42
        $region34: #{tpu_custom_call.1} parent=31 // pred_check_branch
          %215 = sbr.rel (%p213) target = $region36
        $region35: #{tpu_custom_call.1} parent=31 // pred_region
          %216 = dma.done %s209, 1024
        $region36: #{tpu_custom_call.1} parent=31 // pred_fallthru
          _
        // Predicated region
        $region37: #{tpu_custom_call.1} parent=31 // pred_check
          %p217 = pneg %p63
        $region38: #{tpu_custom_call.1} parent=31 // pred_check_branch
          %219 = sbr.rel (%p217) target = $region40
        $region39: #{tpu_custom_call.1} parent=31 // pred_region
          %220 = dma.done [#allocation6], 3328
        $region40: #{tpu_custom_call.1} parent=31 // pred_fallthru
          _
        // Predicated region
        $region41: #{tpu_custom_call.1} parent=31 // pred_check
          %p221 = pneg %p84
        $region42: #{tpu_custom_call.1} parent=31 // pred_check_branch
          %223 = sbr.rel (%p221) target = $region44
        $region43: #{tpu_custom_call.1} parent=31 // pred_region
          %224 = dma.done [#allocation6], 1664
        $region44: #{tpu_custom_call.1} parent=31 // pred_fallthru
          _
        %s225 = sand.u32 %s29, 1
        %s226 = scalar_lea.sflag [#allocation3], %s225
        %s227 = sand.u32 %s29, 1
        %s228 = smul.addr %s227, 64
        %s229 = scalar_lea.vmem [#allocation2], %s228
        %p230 = pneg %p42
        %p231 = pneg %p39
        %p232 = pneg %p63
        %p233 = pneg %p60
        %p234 = pneg %p84
        %p235 = pneg %p81
        %p236 = pneg %p110
        %p237 = pneg %p107
        %s238 = sand.u32 %s97, 1
        %s239 = scalar_lea.sflag [#allocation4], %s238
        %s240 = sand.u32 %s97, 1
        %s241 = smul.addr %s240, 32
        %s242 = scalar_lea.vmem [#allocation8], %s241
        %s243 = smul.u32 4, %s21
        %s244 = smul.u32 4, %s21
        loop: start=0, step=1, limit=4
        $region45: #{tpu_custom_call.1} parent=31 // loop_pre_header
          _
        $region46: #{tpu_custom_call.1} parent=31 // loop_header
          %s246 = sphi 0, %s250
          %p247 = scmp.ge.s32.totalorder %s246, 4
        $region47: #{tpu_custom_call.1} parent=31 // loop_header_branch
          %249 = sbr.rel (%p247) target = $region51
        $region48: #{tpu_custom_call.1} parent=31 // loop_body
          %s251 = smul.u32 %s246, 8
          %s252 = scalar_lea.vmem %s212, %s251 [#allocation2]
          %v253 = vld [vmem:[%s252] sm:$0xff]
          %v254 = vmul.f32 %v253, 5.0
          %v255 = vmax.f32 %v254, 0.0
          %v256 = vmin.f32 %v255, 5.0
          %v257 = vfloor.f32 %v256
          %v258 = vmin.f32 %v257, 4.0
          %v259 = vsub.f32 %v256, %v258
          %v260 = vmul.f32 %v259, 2.0
          %v261 = vcvt.f32.s32.to.zero.pseudo %v258
          %v262 = vmul.u32 %v261, 2
          %v263 = vsub.f32 %v260, 1.0
          %v264 = vsub.f32 %v260, 2.0
          %v265 = vmul.f32 %v263, %v264
          %v266 = vmul.f32 %v265, 0.5
          %v267 = vmul.f32 %v260, %v264
          %v268 = vmul.f32 %v267, -1.0
          %v269 = vmul.f32 %v260, %v263
          %v270 = vmul.f32 %v269, 0.5
          %s271 = sadd.s32 %s251, 32
          %s272 = scalar_lea.vmem %s212, %s271 [#allocation2]
          %v273 = vld [vmem:[%s272] sm:$0xff]
          %v274 = vmul.f32 %v273, 4.0
          %v275 = vmax.f32 %v274, 0.0
          %v276 = vmin.f32 %v275, 4.0
          %v277 = vfloor.f32 %v276
          %v278 = vmin.f32 %v277, 3.0
          %v279 = vsub.f32 %v276, %v278
          %v280 = vmul.f32 %v279, 2.0
          %v281 = vcvt.f32.s32.to.zero.pseudo %v278
          %v282 = vmul.u32 %v281, 2
          %v283 = vsub.f32 %v280, 1.0
          %v284 = vsub.f32 %v280, 2.0
          %v285 = vmul.f32 %v283, %v284
          %v286 = vmul.f32 %v285, 0.5
          %v287 = vmul.f32 %v280, %v284
          %v288 = vmul.f32 %v287, -1.0
          %v289 = vmul.f32 %v280, %v283
          %v290 = vmul.f32 %v289, 0.5
          %v291 = vld [vmem:[#allocation5] sm:$0xff]
          %v292 = vld [vmem:[#allocation5 + $0x8] sm:$0xff]
          %v293 = vld [vmem:[#allocation5 + $0x10] sm:$0xff]
          %v294 = vld [vmem:[#allocation5 + $0x18] sm:$0xff]
          %v295 = vld [vmem:[#allocation5 + $0x20] sm:$0xff]
          %v296 = vld [vmem:[#allocation5 + $0x28] sm:$0xff]
          %v297 = vld [vmem:[#allocation5 + $0x30] sm:$0xff]
          %v298 = vld [vmem:[#allocation5 + $0x38] sm:$0xff]
          %v299 = vld [vmem:[#allocation5 + $0x40] sm:$0xff]
          %v300 = vld [vmem:[#allocation5 + $0x48] sm:$0xff]
          %v301 = vld [vmem:[#allocation5 + $0x50] sm:$0xff]
          %v302 = vld [vmem:[#allocation5 + $0x58] sm:$0xff]
          %v303 = vld [vmem:[#allocation5 + $0x60] sm:$0xff]
          %v304 = vlaneseq
          %v305 = vshrl.u32 %v304, 7
          %v306 = vsub.s32 0, %v305
          %v307 = vrot.slane %v262, %v306
          %v308 = vsub.s32 %v291, %v307
          %v309 = vsub.s32 %v292, %v307
          %v310 = vsub.s32 %v293, %v307
          %v311 = vsub.s32 %v294, %v307
          %v312 = vsub.s32 %v295, %v307
          %v313 = vsub.s32 %v296, %v307
          %v314 = vsub.s32 %v297, %v307
          %v315 = vsub.s32 %v298, %v307
          %v316 = vsub.s32 %v299, %v307
          %v317 = vsub.s32 %v300, %v307
          %v318 = vsub.s32 %v301, %v307
          %v319 = vsub.s32 %v302, %v307
          %v320 = vsub.s32 %v303, %v307
          %vm321 = vcmp.eq.s32.totalorder %v308, 0
          %vm322 = vcmp.eq.s32.totalorder %v309, 0
          %vm323 = vcmp.eq.s32.totalorder %v310, 0
          %vm324 = vcmp.eq.s32.totalorder %v311, 0
          %vm325 = vcmp.eq.s32.totalorder %v312, 0
          %vm326 = vcmp.eq.s32.totalorder %v313, 0
          %vm327 = vcmp.eq.s32.totalorder %v314, 0
          %vm328 = vcmp.eq.s32.totalorder %v315, 0
          %vm329 = vcmp.eq.s32.totalorder %v316, 0
          %vm330 = vcmp.eq.s32.totalorder %v317, 0
          %vm331 = vcmp.eq.s32.totalorder %v318, 0
          %vm332 = vcmp.eq.s32.totalorder %v319, 0
          %vm333 = vcmp.eq.s32.totalorder %v320, 0
          %v334 = vlaneseq
          %v335 = vshrl.u32 %v334, 7
          %v336 = vsub.s32 0, %v335
          %v337 = vrot.slane %v266, %v336
          %v338 = vsel %vm321, %v337, 0.0
          %v339 = vsel %vm322, %v337, 0.0
          %v340 = vsel %vm323, %v337, 0.0
          %v341 = vsel %vm324, %v337, 0.0
          %v342 = vsel %vm325, %v337, 0.0
          %v343 = vsel %vm326, %v337, 0.0
          %v344 = vsel %vm327, %v337, 0.0
          %v345 = vsel %vm328, %v337, 0.0
          %v346 = vsel %vm329, %v337, 0.0
          %v347 = vsel %vm330, %v337, 0.0
          %v348 = vsel %vm331, %v337, 0.0
          %v349 = vsel %vm332, %v337, 0.0
          %v350 = vsel %vm333, %v337, 0.0
          %vm351 = vcmp.eq.s32.totalorder %v308, 1
          %vm352 = vcmp.eq.s32.totalorder %v309, 1
          %vm353 = vcmp.eq.s32.totalorder %v310, 1
          %vm354 = vcmp.eq.s32.totalorder %v311, 1
          %vm355 = vcmp.eq.s32.totalorder %v312, 1
          %vm356 = vcmp.eq.s32.totalorder %v313, 1
          %vm357 = vcmp.eq.s32.totalorder %v314, 1
          %vm358 = vcmp.eq.s32.totalorder %v315, 1
          %vm359 = vcmp.eq.s32.totalorder %v316, 1
          %vm360 = vcmp.eq.s32.totalorder %v317, 1
          %vm361 = vcmp.eq.s32.totalorder %v318, 1
          %vm362 = vcmp.eq.s32.totalorder %v319, 1
          %vm363 = vcmp.eq.s32.totalorder %v320, 1
          %v364 = vlaneseq
          %v365 = vshrl.u32 %v364, 7
          %v366 = vsub.s32 0, %v365
          %v367 = vrot.slane %v268, %v366
          %v368 = vsel %vm351, %v367, %v338
          %v369 = vsel %vm352, %v367, %v339
          %v370 = vsel %vm353, %v367, %v340
          %v371 = vsel %vm354, %v367, %v341
          %v372 = vsel %vm355, %v367, %v342
          %v373 = vsel %vm356, %v367, %v343
          %v374 = vsel %vm357, %v367, %v344
          %v375 = vsel %vm358, %v367, %v345
          %v376 = vsel %vm359, %v367, %v346
          %v377 = vsel %vm360, %v367, %v347
          %v378 = vsel %vm361, %v367, %v348
          %v379 = vsel %vm362, %v367, %v349
          %v380 = vsel %vm363, %v367, %v350
          %vm381 = vcmp.eq.s32.totalorder %v308, 2
          %vm382 = vcmp.eq.s32.totalorder %v309, 2
          %vm383 = vcmp.eq.s32.totalorder %v310, 2
          %vm384 = vcmp.eq.s32.totalorder %v311, 2
          %vm385 = vcmp.eq.s32.totalorder %v312, 2
          %vm386 = vcmp.eq.s32.totalorder %v313, 2
          %vm387 = vcmp.eq.s32.totalorder %v314, 2
          %vm388 = vcmp.eq.s32.totalorder %v315, 2
          %vm389 = vcmp.eq.s32.totalorder %v316, 2
          %vm390 = vcmp.eq.s32.totalorder %v317, 2
          %vm391 = vcmp.eq.s32.totalorder %v318, 2
          %vm392 = vcmp.eq.s32.totalorder %v319, 2
          %vm393 = vcmp.eq.s32.totalorder %v320, 2
          %v394 = vlaneseq
          %v395 = vshrl.u32 %v394, 7
          %v396 = vsub.s32 0, %v395
          %v397 = vrot.slane %v270, %v396
          %v398 = vsel %vm381, %v397, %v368
          %v399 = vsel %vm382, %v397, %v369
          %v400 = vsel %vm383, %v397, %v370
          %v401 = vsel %vm384, %v397, %v371
          %v402 = vsel %vm385, %v397, %v372
          %v403 = vsel %vm386, %v397, %v373
          %v404 = vsel %vm387, %v397, %v374
          %v405 = vsel %vm388, %v397, %v375
          %v406 = vsel %vm389, %v397, %v376
          %v407 = vsel %vm390, %v397, %v377
          %v408 = vsel %vm391, %v397, %v378
          %v409 = vsel %vm392, %v397, %v379
          %v410 = vsel %vm393, %v397, %v380
          %s411 = scalar_lea.vmem [#allocation5], 104
          %v412 = vld [vmem:[%s411] sm:$0xff]
          %v413 = vld [vmem:[%s411 + $0x8] sm:$0xff]
          %v414 = vld [vmem:[%s411 + $0x10] sm:$0xff]
          %v415 = vld [vmem:[%s411 + $0x18] sm:$0xff]
          %v416 = vld [vmem:[%s411 + $0x20] sm:$0xff]
          %v417 = vld [vmem:[%s411 + $0x28] sm:$0xff]
          %v418 = vld [vmem:[%s411 + $0x30] sm:$0xff]
          %v419 = vld [vmem:[%s411 + $0x38] sm:$0xff]
          %v420 = vld [vmem:[%s411 + $0x40] sm:$0xff]
          %v421 = vld [vmem:[%s411 + $0x48] sm:$0xff]
          %v422 = vld [vmem:[%s411 + $0x50] sm:$0xff]
          %v423 = vld [vmem:[%s411 + $0x58] sm:$0xff]
          %v424 = vld [vmem:[%s411 + $0x60] sm:$0xff]
          %v425 = vlaneseq
          %v426 = vshrl.u32 %v425, 7
          %v427 = vsub.s32 0, %v426
          %v428 = vrot.slane %v282, %v427
          %v429 = vsub.s32 %v412, %v428
          %v430 = vsub.s32 %v413, %v428
          %v431 = vsub.s32 %v414, %v428
          %v432 = vsub.s32 %v415, %v428
          %v433 = vsub.s32 %v416, %v428
          %v434 = vsub.s32 %v417, %v428
          %v435 = vsub.s32 %v418, %v428
          %v436 = vsub.s32 %v419, %v428
          %v437 = vsub.s32 %v420, %v428
          %v438 = vsub.s32 %v421, %v428
          %v439 = vsub.s32 %v422, %v428
          %v440 = vsub.s32 %v423, %v428
          %v441 = vsub.s32 %v424, %v428
          %vm442 = vcmp.eq.s32.totalorder %v429, 0
          %vm443 = vcmp.eq.s32.totalorder %v430, 0
          %vm444 = vcmp.eq.s32.totalorder %v431, 0
          %vm445 = vcmp.eq.s32.totalorder %v432, 0
          %vm446 = vcmp.eq.s32.totalorder %v433, 0
          %vm447 = vcmp.eq.s32.totalorder %v434, 0
          %vm448 = vcmp.eq.s32.totalorder %v435, 0
          %vm449 = vcmp.eq.s32.totalorder %v436, 0
          %vm450 = vcmp.eq.s32.totalorder %v437, 0
          %vm451 = vcmp.eq.s32.totalorder %v438, 0
          %vm452 = vcmp.eq.s32.totalorder %v439, 0
          %vm453 = vcmp.eq.s32.totalorder %v440, 0
          %vm454 = vcmp.eq.s32.totalorder %v441, 0
          %v455 = vlaneseq
          %v456 = vshrl.u32 %v455, 7
          %v457 = vsub.s32 0, %v456
          %v458 = vrot.slane %v286, %v457
          %v459 = vsel %vm442, %v458, 0.0
          %v460 = vsel %vm443, %v458, 0.0
          %v461 = vsel %vm444, %v458, 0.0
          %v462 = vsel %vm445, %v458, 0.0
          %v463 = vsel %vm446, %v458, 0.0
          %v464 = vsel %vm447, %v458, 0.0
          %v465 = vsel %vm448, %v458, 0.0
          %v466 = vsel %vm449, %v458, 0.0
          %v467 = vsel %vm450, %v458, 0.0
          %v468 = vsel %vm451, %v458, 0.0
          %v469 = vsel %vm452, %v458, 0.0
          %v470 = vsel %vm453, %v458, 0.0
          %v471 = vsel %vm454, %v458, 0.0
          %vm472 = vcmp.eq.s32.totalorder %v429, 1
          %vm473 = vcmp.eq.s32.totalorder %v430, 1
          %vm474 = vcmp.eq.s32.totalorder %v431, 1
          %vm475 = vcmp.eq.s32.totalorder %v432, 1
          %vm476 = vcmp.eq.s32.totalorder %v433, 1
          %vm477 = vcmp.eq.s32.totalorder %v434, 1
          %vm478 = vcmp.eq.s32.totalorder %v435, 1
          %vm479 = vcmp.eq.s32.totalorder %v436, 1
          %vm480 = vcmp.eq.s32.totalorder %v437, 1
          %vm481 = vcmp.eq.s32.totalorder %v438, 1
          %vm482 = vcmp.eq.s32.totalorder %v439, 1
          %vm483 = vcmp.eq.s32.totalorder %v440, 1
          %vm484 = vcmp.eq.s32.totalorder %v441, 1
          %v485 = vlaneseq
          %v486 = vshrl.u32 %v485, 7
          %v487 = vsub.s32 0, %v486
          %v488 = vrot.slane %v288, %v487
          %v489 = vsel %vm472, %v488, %v459
          %v490 = vsel %vm473, %v488, %v460
          %v491 = vsel %vm474, %v488, %v461
          %v492 = vsel %vm475, %v488, %v462
          %v493 = vsel %vm476, %v488, %v463
          %v494 = vsel %vm477, %v488, %v464
          %v495 = vsel %vm478, %v488, %v465
          %v496 = vsel %vm479, %v488, %v466
          %v497 = vsel %vm480, %v488, %v467
          %v498 = vsel %vm481, %v488, %v468
          %v499 = vsel %vm482, %v488, %v469
          %v500 = vsel %vm483, %v488, %v470
          %v501 = vsel %vm484, %v488, %v471
          %vm502 = vcmp.eq.s32.totalorder %v429, 2
          %vm503 = vcmp.eq.s32.totalorder %v430, 2
          %vm504 = vcmp.eq.s32.totalorder %v431, 2
          %vm505 = vcmp.eq.s32.totalorder %v432, 2
          %vm506 = vcmp.eq.s32.totalorder %v433, 2
          %vm507 = vcmp.eq.s32.totalorder %v434, 2
          %vm508 = vcmp.eq.s32.totalorder %v435, 2
          %vm509 = vcmp.eq.s32.totalorder %v436, 2
          %vm510 = vcmp.eq.s32.totalorder %v437, 2
          %vm511 = vcmp.eq.s32.totalorder %v438, 2
          %vm512 = vcmp.eq.s32.totalorder %v439, 2
          %vm513 = vcmp.eq.s32.totalorder %v440, 2
          %vm514 = vcmp.eq.s32.totalorder %v441, 2
          %v515 = vlaneseq
          %v516 = vshrl.u32 %v515, 7
          %v517 = vsub.s32 0, %v516
          %v518 = vrot.slane %v290, %v517
          %v519 = vsel %vm502, %v518, %v489
          %v520 = vsel %vm503, %v518, %v490
          %v521 = vsel %vm504, %v518, %v491
          %v522 = vsel %vm505, %v518, %v492
          %v523 = vsel %vm506, %v518, %v493
          %v524 = vsel %vm507, %v518, %v494
          %v525 = vsel %vm508, %v518, %v495
          %v526 = vsel %vm509, %v518, %v496
          %v527 = vsel %vm510, %v518, %v497
          %v528 = vsel %vm511, %v518, %v498
          %v529 = vsel %vm512, %v518, %v499
          %v530 = vsel %vm513, %v518, %v500
          %v531 = vsel %vm514, %v518, %v501
          %v532 = vmul.f32 %v398, %v519
          %v533 = vmul.f32 %v399, %v520
          %v534 = vmul.f32 %v400, %v521
          %v535 = vmul.f32 %v401, %v522
          %v536 = vmul.f32 %v402, %v523
          %v537 = vmul.f32 %v403, %v524
          %v538 = vmul.f32 %v404, %v525
          %v539 = vmul.f32 %v405, %v526
          %v540 = vmul.f32 %v406, %v527
          %v541 = vmul.f32 %v407, %v528
          %v542 = vmul.f32 %v408, %v529
          %v543 = vmul.f32 %v409, %v530
          %v544 = vmul.f32 %v410, %v531
          %v545 = vld [vmem:[#allocation7] sm:$0xff]
          %v546 = vld [vmem:[#allocation7 + $0x8] sm:$0xff]
          %v547 = vld [vmem:[#allocation7 + $0x10] sm:$0xff]
          %v548 = vld [vmem:[#allocation7 + $0x18] sm:$0xff]
          %v549 = vld [vmem:[#allocation7 + $0x20] sm:$0xff]
          %v550 = vld [vmem:[#allocation7 + $0x28] sm:$0xff]
          %v551 = vld [vmem:[#allocation7 + $0x30] sm:$0xff]
          %v552 = vld [vmem:[#allocation7 + $0x38] sm:$0xff]
          %v553 = vld [vmem:[#allocation7 + $0x40] sm:$0xff]
          %v554 = vld [vmem:[#allocation7 + $0x48] sm:$0xff]
          %v555 = vld [vmem:[#allocation7 + $0x50] sm:$0xff]
          %v556 = vld [vmem:[#allocation7 + $0x58] sm:$0xff]
          %v557 = vld [vmem:[#allocation7 + $0x60] sm:$0xff]
          %v558 = vmul.f32 %v532, %v545
          %v559 = vmul.f32 %v533, %v546
          %v560 = vmul.f32 %v534, %v547
          %v561 = vmul.f32 %v535, %v548
          %v562 = vmul.f32 %v536, %v549
          %v563 = vmul.f32 %v537, %v550
          %v564 = vmul.f32 %v538, %v551
          %v565 = vmul.f32 %v539, %v552
          %v566 = vmul.f32 %v540, %v553
          %v567 = vmul.f32 %v541, %v554
          %v568 = vmul.f32 %v542, %v555
          %v569 = vmul.f32 %v543, %v556
          %v570 = vmul.f32 %v544, %v557
          %v571 = vadd.f32 %v558, %v559
          %v572 = vadd.f32 %v571, %v560
          %v573 = vadd.f32 %v572, %v561
          %v574 = vadd.f32 %v573, %v562
          %v575 = vadd.f32 %v574, %v563
          %v576 = vadd.f32 %v575, %v564
          %v577 = vadd.f32 %v576, %v565
          %v578 = vadd.f32 %v577, %v566
          %v579 = vadd.f32 %v578, %v567
          %v580 = vadd.f32 %v579, %v568
          %v581 = vadd.f32 %v580, %v569
          %v582 = vadd.f32 %v581, %v570
          %v583 = vrot.slane %v582, 4
          %v584 = vadd.f32 %v582, %v583
          %v585 = vrot.slane %v584, 2
          %v586 = vadd.f32 %v584, %v585
          %v587 = vrot.slane %v586, 1
          %v588 = vadd.f32 %v586, %v587
          %v589 = vlaneseq
          %v590 = vshrl.u32 %v589, 7
          %v591 = vsub.s32 1, %v590
          %v592 = vrot.slane %v262, %v591
          %v593 = vsub.s32 %v291, %v592
          %v594 = vsub.s32 %v292, %v592
          %v595 = vsub.s32 %v293, %v592
          %v596 = vsub.s32 %v294, %v592
          %v597 = vsub.s32 %v295, %v592
          %v598 = vsub.s32 %v296, %v592
          %v599 = vsub.s32 %v297, %v592
          %v600 = vsub.s32 %v298, %v592
          %v601 = vsub.s32 %v299, %v592
          %v602 = vsub.s32 %v300, %v592
          %v603 = vsub.s32 %v301, %v592
          %v604 = vsub.s32 %v302, %v592
          %v605 = vsub.s32 %v303, %v592
          %vm606 = vcmp.eq.s32.totalorder %v593, 0
          %vm607 = vcmp.eq.s32.totalorder %v594, 0
          %vm608 = vcmp.eq.s32.totalorder %v595, 0
          %vm609 = vcmp.eq.s32.totalorder %v596, 0
          %vm610 = vcmp.eq.s32.totalorder %v597, 0
          %vm611 = vcmp.eq.s32.totalorder %v598, 0
          %vm612 = vcmp.eq.s32.totalorder %v599, 0
          %vm613 = vcmp.eq.s32.totalorder %v600, 0
          %vm614 = vcmp.eq.s32.totalorder %v601, 0
          %vm615 = vcmp.eq.s32.totalorder %v602, 0
          %vm616 = vcmp.eq.s32.totalorder %v603, 0
          %vm617 = vcmp.eq.s32.totalorder %v604, 0
          %vm618 = vcmp.eq.s32.totalorder %v605, 0
          %v619 = vlaneseq
          %v620 = vshrl.u32 %v619, 7
          %v621 = vsub.s32 1, %v620
          %v622 = vrot.slane %v266, %v621
          %v623 = vsel %vm606, %v622, 0.0
          %v624 = vsel %vm607, %v622, 0.0
          %v625 = vsel %vm608, %v622, 0.0
          %v626 = vsel %vm609, %v622, 0.0
          %v627 = vsel %vm610, %v622, 0.0
          %v628 = vsel %vm611, %v622, 0.0
          %v629 = vsel %vm612, %v622, 0.0
          %v630 = vsel %vm613, %v622, 0.0
          %v631 = vsel %vm614, %v622, 0.0
          %v632 = vsel %vm615, %v622, 0.0
          %v633 = vsel %vm616, %v622, 0.0
          %v634 = vsel %vm617, %v622, 0.0
          %v635 = vsel %vm618, %v622, 0.0
          %vm636 = vcmp.eq.s32.totalorder %v593, 1
          %vm637 = vcmp.eq.s32.totalorder %v594, 1
          %vm638 = vcmp.eq.s32.totalorder %v595, 1
          %vm639 = vcmp.eq.s32.totalorder %v596, 1
          %vm640 = vcmp.eq.s32.totalorder %v597, 1
          %vm641 = vcmp.eq.s32.totalorder %v598, 1
          %vm642 = vcmp.eq.s32.totalorder %v599, 1
          %vm643 = vcmp.eq.s32.totalorder %v600, 1
          %vm644 = vcmp.eq.s32.totalorder %v601, 1
          %vm645 = vcmp.eq.s32.totalorder %v602, 1
          %vm646 = vcmp.eq.s32.totalorder %v603, 1
          %vm647 = vcmp.eq.s32.totalorder %v604, 1
          %vm648 = vcmp.eq.s32.totalorder %v605, 1
          %v649 = vlaneseq
          %v650 = vshrl.u32 %v649, 7
          %v651 = vsub.s32 1, %v650
          %v652 = vrot.slane %v268, %v651
          %v653 = vsel %vm636, %v652, %v623
          %v654 = vsel %vm637, %v652, %v624
          %v655 = vsel %vm638, %v652, %v625
          %v656 = vsel %vm639, %v652, %v626
          %v657 = vsel %vm640, %v652, %v627
          %v658 = vsel %vm641, %v652, %v628
          %v659 = vsel %vm642, %v652, %v629
          %v660 = vsel %vm643, %v652, %v630
          %v661 = vsel %vm644, %v652, %v631
          %v662 = vsel %vm645, %v652, %v632
          %v663 = vsel %vm646, %v652, %v633
          %v664 = vsel %vm647, %v652, %v634
          %v665 = vsel %vm648, %v652, %v635
          %vm666 = vcmp.eq.s32.totalorder %v593, 2
          %vm667 = vcmp.eq.s32.totalorder %v594, 2
          %vm668 = vcmp.eq.s32.totalorder %v595, 2
          %vm669 = vcmp.eq.s32.totalorder %v596, 2
          %vm670 = vcmp.eq.s32.totalorder %v597, 2
          %vm671 = vcmp.eq.s32.totalorder %v598, 2
          %vm672 = vcmp.eq.s32.totalorder %v599, 2
          %vm673 = vcmp.eq.s32.totalorder %v600, 2
          %vm674 = vcmp.eq.s32.totalorder %v601, 2
          %vm675 = vcmp.eq.s32.totalorder %v602, 2
          %vm676 = vcmp.eq.s32.totalorder %v603, 2
          %vm677 = vcmp.eq.s32.totalorder %v604, 2
          %vm678 = vcmp.eq.s32.totalorder %v605, 2
          %v679 = vlaneseq
          %v680 = vshrl.u32 %v679, 7
          %v681 = vsub.s32 1, %v680
          %v682 = vrot.slane %v270, %v681
          %v683 = vsel %vm666, %v682, %v653
          %v684 = vsel %vm667, %v682, %v654
          %v685 = vsel %vm668, %v682, %v655
          %v686 = vsel %vm669, %v682, %v656
          %v687 = vsel %vm670, %v682, %v657
          %v688 = vsel %vm671, %v682, %v658
          %v689 = vsel %vm672, %v682, %v659
          %v690 = vsel %vm673, %v682, %v660
          %v691 = vsel %vm674, %v682, %v661
          %v692 = vsel %vm675, %v682, %v662
          %v693 = vsel %vm676, %v682, %v663
          %v694 = vsel %vm677, %v682, %v664
          %v695 = vsel %vm678, %v682, %v665
          %v696 = vlaneseq
          %v697 = vshrl.u32 %v696, 7
          %v698 = vsub.s32 1, %v697
          %v699 = vrot.slane %v282, %v698
          %v700 = vsub.s32 %v412, %v699
          %v701 = vsub.s32 %v413, %v699
          %v702 = vsub.s32 %v414, %v699
          %v703 = vsub.s32 %v415, %v699
          %v704 = vsub.s32 %v416, %v699
          %v705 = vsub.s32 %v417, %v699
          %v706 = vsub.s32 %v418, %v699
          %v707 = vsub.s32 %v419, %v699
          %v708 = vsub.s32 %v420, %v699
          %v709 = vsub.s32 %v421, %v699
          %v710 = vsub.s32 %v422, %v699
          %v711 = vsub.s32 %v423, %v699
          %v712 = vsub.s32 %v424, %v699
          %vm713 = vcmp.eq.s32.totalorder %v700, 0
          %vm714 = vcmp.eq.s32.totalorder %v701, 0
          %vm715 = vcmp.eq.s32.totalorder %v702, 0
          %vm716 = vcmp.eq.s32.totalorder %v703, 0
          %vm717 = vcmp.eq.s32.totalorder %v704, 0
          %vm718 = vcmp.eq.s32.totalorder %v705, 0
          %vm719 = vcmp.eq.s32.totalorder %v706, 0
          %vm720 = vcmp.eq.s32.totalorder %v707, 0
          %vm721 = vcmp.eq.s32.totalorder %v708, 0
          %vm722 = vcmp.eq.s32.totalorder %v709, 0
          %vm723 = vcmp.eq.s32.totalorder %v710, 0
          %vm724 = vcmp.eq.s32.totalorder %v711, 0
          %vm725 = vcmp.eq.s32.totalorder %v712, 0
          %v726 = vlaneseq
          %v727 = vshrl.u32 %v726, 7
          %v728 = vsub.s32 1, %v727
          %v729 = vrot.slane %v286, %v728
          %v730 = vsel %vm713, %v729, 0.0
          %v731 = vsel %vm714, %v729, 0.0
          %v732 = vsel %vm715, %v729, 0.0
          %v733 = vsel %vm716, %v729, 0.0
          %v734 = vsel %vm717, %v729, 0.0
          %v735 = vsel %vm718, %v729, 0.0
          %v736 = vsel %vm719, %v729, 0.0
          %v737 = vsel %vm720, %v729, 0.0
          %v738 = vsel %vm721, %v729, 0.0
          %v739 = vsel %vm722, %v729, 0.0
          %v740 = vsel %vm723, %v729, 0.0
          %v741 = vsel %vm724, %v729, 0.0
          %v742 = vsel %vm725, %v729, 0.0
          %vm743 = vcmp.eq.s32.totalorder %v700, 1
          %vm744 = vcmp.eq.s32.totalorder %v701, 1
          %vm745 = vcmp.eq.s32.totalorder %v702, 1
          %vm746 = vcmp.eq.s32.totalorder %v703, 1
          %vm747 = vcmp.eq.s32.totalorder %v704, 1
          %vm748 = vcmp.eq.s32.totalorder %v705, 1
          %vm749 = vcmp.eq.s32.totalorder %v706, 1
          %vm750 = vcmp.eq.s32.totalorder %v707, 1
          %vm751 = vcmp.eq.s32.totalorder %v708, 1
          %vm752 = vcmp.eq.s32.totalorder %v709, 1
          %vm753 = vcmp.eq.s32.totalorder %v710, 1
          %vm754 = vcmp.eq.s32.totalorder %v711, 1
          %vm755 = vcmp.eq.s32.totalorder %v712, 1
          %v756 = vlaneseq
          %v757 = vshrl.u32 %v756, 7
          %v758 = vsub.s32 1, %v757
          %v759 = vrot.slane %v288, %v758
          %v760 = vsel %vm743, %v759, %v730
          %v761 = vsel %vm744, %v759, %v731
          %v762 = vsel %vm745, %v759, %v732
          %v763 = vsel %vm746, %v759, %v733
          %v764 = vsel %vm747, %v759, %v734
          %v765 = vsel %vm748, %v759, %v735
          %v766 = vsel %vm749, %v759, %v736
          %v767 = vsel %vm750, %v759, %v737
          %v768 = vsel %vm751, %v759, %v738
          %v769 = vsel %vm752, %v759, %v739
          %v770 = vsel %vm753, %v759, %v740
          %v771 = vsel %vm754, %v759, %v741
          %v772 = vsel %vm755, %v759, %v742
          %vm773 = vcmp.eq.s32.totalorder %v700, 2
          %vm774 = vcmp.eq.s32.totalorder %v701, 2
          %vm775 = vcmp.eq.s32.totalorder %v702, 2
          %vm776 = vcmp.eq.s32.totalorder %v703, 2
          %vm777 = vcmp.eq.s32.totalorder %v704, 2
          %vm778 = vcmp.eq.s32.totalorder %v705, 2
          %vm779 = vcmp.eq.s32.totalorder %v706, 2
          %vm780 = vcmp.eq.s32.totalorder %v707, 2
          %vm781 = vcmp.eq.s32.totalorder %v708, 2
          %vm782 = vcmp.eq.s32.totalorder %v709, 2
          %vm783 = vcmp.eq.s32.totalorder %v710, 2
          %vm784 = vcmp.eq.s32.totalorder %v711, 2
          %vm785 = vcmp.eq.s32.totalorder %v712, 2
          %v786 = vlaneseq
          %v787 = vshrl.u32 %v786, 7
          %v788 = vsub.s32 1, %v787
          %v789 = vrot.slane %v290, %v788
          %v790 = vsel %vm773, %v789, %v760
          %v791 = vsel %vm774, %v789, %v761
          %v792 = vsel %vm775, %v789, %v762
          %v793 = vsel %vm776, %v789, %v763
          %v794 = vsel %vm777, %v789, %v764
          %v795 = vsel %vm778, %v789, %v765
          %v796 = vsel %vm779, %v789, %v766
          %v797 = vsel %vm780, %v789, %v767
          %v798 = vsel %vm781, %v789, %v768
          %v799 = vsel %vm782, %v789, %v769
          %v800 = vsel %vm783, %v789, %v770
          %v801 = vsel %vm784, %v789, %v771
          %v802 = vsel %vm785, %v789, %v772
          %v803 = vmul.f32 %v683, %v790
          %v804 = vmul.f32 %v684, %v791
          %v805 = vmul.f32 %v685, %v792
          %v806 = vmul.f32 %v686, %v793
          %v807 = vmul.f32 %v687, %v794
          %v808 = vmul.f32 %v688, %v795
          %v809 = vmul.f32 %v689, %v796
          %v810 = vmul.f32 %v690, %v797
          %v811 = vmul.f32 %v691, %v798
          %v812 = vmul.f32 %v692, %v799
          %v813 = vmul.f32 %v693, %v800
          %v814 = vmul.f32 %v694, %v801
          %v815 = vmul.f32 %v695, %v802
          %v816 = vmul.f32 %v803, %v545
          %v817 = vmul.f32 %v804, %v546
          %v818 = vmul.f32 %v805, %v547
          %v819 = vmul.f32 %v806, %v548
          %v820 = vmul.f32 %v807, %v549
          %v821 = vmul.f32 %v808, %v550
          %v822 = vmul.f32 %v809, %v551
          %v823 = vmul.f32 %v810, %v552
          %v824 = vmul.f32 %v811, %v553
          %v825 = vmul.f32 %v812, %v554
          %v826 = vmul.f32 %v813, %v555
          %v827 = vmul.f32 %v814, %v556
          %v828 = vmul.f32 %v815, %v557
          %v829 = vadd.f32 %v816, %v817
          %v830 = vadd.f32 %v829, %v818
          %v831 = vadd.f32 %v830, %v819
          %v832 = vadd.f32 %v831, %v820
          %v833 = vadd.f32 %v832, %v821
          %v834 = vadd.f32 %v833, %v822
          %v835 = vadd.f32 %v834, %v823
          %v836 = vadd.f32 %v835, %v824
          %v837 = vadd.f32 %v836, %v825
          %v838 = vadd.f32 %v837, %v826
          %v839 = vadd.f32 %v838, %v827
          %v840 = vadd.f32 %v839, %v828
          %v841 = vrot.slane %v840, 4
          %v842 = vadd.f32 %v840, %v841
          %v843 = vrot.slane %v842, 2
          %v844 = vadd.f32 %v842, %v843
          %v845 = vrot.slane %v844, 1
          %v846 = vadd.f32 %v844, %v845
          %v847 = vlaneseq
          %v848 = vshrl.u32 %v847, 7
          %v849 = vsub.s32 2, %v848
          %v850 = vrot.slane %v262, %v849
          %v851 = vsub.s32 %v291, %v850
          %v852 = vsub.s32 %v292, %v850
          %v853 = vsub.s32 %v293, %v850
          %v854 = vsub.s32 %v294, %v850
          %v855 = vsub.s32 %v295, %v850
          %v856 = vsub.s32 %v296, %v850
          %v857 = vsub.s32 %v297, %v850
          %v858 = vsub.s32 %v298, %v850
          %v859 = vsub.s32 %v299, %v850
          %v860 = vsub.s32 %v300, %v850
          %v861 = vsub.s32 %v301, %v850
          %v862 = vsub.s32 %v302, %v850
          %v863 = vsub.s32 %v303, %v850
          %vm864 = vcmp.eq.s32.totalorder %v851, 0
          %vm865 = vcmp.eq.s32.totalorder %v852, 0
          %vm866 = vcmp.eq.s32.totalorder %v853, 0
          %vm867 = vcmp.eq.s32.totalorder %v854, 0
          %vm868 = vcmp.eq.s32.totalorder %v855, 0
          %vm869 = vcmp.eq.s32.totalorder %v856, 0
          %vm870 = vcmp.eq.s32.totalorder %v857, 0
          %vm871 = vcmp.eq.s32.totalorder %v858, 0
          %vm872 = vcmp.eq.s32.totalorder %v859, 0
          %vm873 = vcmp.eq.s32.totalorder %v860, 0
          %vm874 = vcmp.eq.s32.totalorder %v861, 0
          %vm875 = vcmp.eq.s32.totalorder %v862, 0
          %vm876 = vcmp.eq.s32.totalorder %v863, 0
          %v877 = vlaneseq
          %v878 = vshrl.u32 %v877, 7
          %v879 = vsub.s32 2, %v878
          %v880 = vrot.slane %v266, %v879
          %v881 = vsel %vm864, %v880, 0.0
          %v882 = vsel %vm865, %v880, 0.0
          %v883 = vsel %vm866, %v880, 0.0
          %v884 = vsel %vm867, %v880, 0.0
          %v885 = vsel %vm868, %v880, 0.0
          %v886 = vsel %vm869, %v880, 0.0
          %v887 = vsel %vm870, %v880, 0.0
          %v888 = vsel %vm871, %v880, 0.0
          %v889 = vsel %vm872, %v880, 0.0
          %v890 = vsel %vm873, %v880, 0.0
          %v891 = vsel %vm874, %v880, 0.0
          %v892 = vsel %vm875, %v880, 0.0
          %v893 = vsel %vm876, %v880, 0.0
          %vm894 = vcmp.eq.s32.totalorder %v851, 1
          %vm895 = vcmp.eq.s32.totalorder %v852, 1
          %vm896 = vcmp.eq.s32.totalorder %v853, 1
          %vm897 = vcmp.eq.s32.totalorder %v854, 1
          %vm898 = vcmp.eq.s32.totalorder %v855, 1
          %vm899 = vcmp.eq.s32.totalorder %v856, 1
          %vm900 = vcmp.eq.s32.totalorder %v857, 1
          %vm901 = vcmp.eq.s32.totalorder %v858, 1
          %vm902 = vcmp.eq.s32.totalorder %v859, 1
          %vm903 = vcmp.eq.s32.totalorder %v860, 1
          %vm904 = vcmp.eq.s32.totalorder %v861, 1
          %vm905 = vcmp.eq.s32.totalorder %v862, 1
          %vm906 = vcmp.eq.s32.totalorder %v863, 1
          %v907 = vlaneseq
          %v908 = vshrl.u32 %v907, 7
          %v909 = vsub.s32 2, %v908
          %v910 = vrot.slane %v268, %v909
          %v911 = vsel %vm894, %v910, %v881
          %v912 = vsel %vm895, %v910, %v882
          %v913 = vsel %vm896, %v910, %v883
          %v914 = vsel %vm897, %v910, %v884
          %v915 = vsel %vm898, %v910, %v885
          %v916 = vsel %vm899, %v910, %v886
          %v917 = vsel %vm900, %v910, %v887
          %v918 = vsel %vm901, %v910, %v888
          %v919 = vsel %vm902, %v910, %v889
          %v920 = vsel %vm903, %v910, %v890
          %v921 = vsel %vm904, %v910, %v891
          %v922 = vsel %vm905, %v910, %v892
          %v923 = vsel %vm906, %v910, %v893
          %vm924 = vcmp.eq.s32.totalorder %v851, 2
          %vm925 = vcmp.eq.s32.totalorder %v852, 2
          %vm926 = vcmp.eq.s32.totalorder %v853, 2
          %vm927 = vcmp.eq.s32.totalorder %v854, 2
          %vm928 = vcmp.eq.s32.totalorder %v855, 2
          %vm929 = vcmp.eq.s32.totalorder %v856, 2
          %vm930 = vcmp.eq.s32.totalorder %v857, 2
          %vm931 = vcmp.eq.s32.totalorder %v858, 2
          %vm932 = vcmp.eq.s32.totalorder %v859, 2
          %vm933 = vcmp.eq.s32.totalorder %v860, 2
          %vm934 = vcmp.eq.s32.totalorder %v861, 2
          %vm935 = vcmp.eq.s32.totalorder %v862, 2
          %vm936 = vcmp.eq.s32.totalorder %v863, 2
          %v937 = vlaneseq
          %v938 = vshrl.u32 %v937, 7
          %v939 = vsub.s32 2, %v938
          %v940 = vrot.slane %v270, %v939
          %v941 = vsel %vm924, %v940, %v911
          %v942 = vsel %vm925, %v940, %v912
          %v943 = vsel %vm926, %v940, %v913
          %v944 = vsel %vm927, %v940, %v914
          %v945 = vsel %vm928, %v940, %v915
          %v946 = vsel %vm929, %v940, %v916
          %v947 = vsel %vm930, %v940, %v917
          %v948 = vsel %vm931, %v940, %v918
          %v949 = vsel %vm932, %v940, %v919
          %v950 = vsel %vm933, %v940, %v920
          %v951 = vsel %vm934, %v940, %v921
          %v952 = vsel %vm935, %v940, %v922
          %v953 = vsel %vm936, %v940, %v923
          %v954 = vlaneseq
          %v955 = vshrl.u32 %v954, 7
          %v956 = vsub.s32 2, %v955
          %v957 = vrot.slane %v282, %v956
          %v958 = vsub.s32 %v412, %v957
          %v959 = vsub.s32 %v413, %v957
          %v960 = vsub.s32 %v414, %v957
          %v961 = vsub.s32 %v415, %v957
          %v962 = vsub.s32 %v416, %v957
          %v963 = vsub.s32 %v417, %v957
          %v964 = vsub.s32 %v418, %v957
          %v965 = vsub.s32 %v419, %v957
          %v966 = vsub.s32 %v420, %v957
          %v967 = vsub.s32 %v421, %v957
          %v968 = vsub.s32 %v422, %v957
          %v969 = vsub.s32 %v423, %v957
          %v970 = vsub.s32 %v424, %v957
          %vm971 = vcmp.eq.s32.totalorder %v958, 0
          %vm972 = vcmp.eq.s32.totalorder %v959, 0
          %vm973 = vcmp.eq.s32.totalorder %v960, 0
          %vm974 = vcmp.eq.s32.totalorder %v961, 0
          %vm975 = vcmp.eq.s32.totalorder %v962, 0
          %vm976 = vcmp.eq.s32.totalorder %v963, 0
          %vm977 = vcmp.eq.s32.totalorder %v964, 0
          %vm978 = vcmp.eq.s32.totalorder %v965, 0
          %vm979 = vcmp.eq.s32.totalorder %v966, 0
          %vm980 = vcmp.eq.s32.totalorder %v967, 0
          %vm981 = vcmp.eq.s32.totalorder %v968, 0
          %vm982 = vcmp.eq.s32.totalorder %v969, 0
          %vm983 = vcmp.eq.s32.totalorder %v970, 0
          %v984 = vlaneseq
          %v985 = vshrl.u32 %v984, 7
          %v986 = vsub.s32 2, %v985
          %v987 = vrot.slane %v286, %v986
          %v988 = vsel %vm971, %v987, 0.0
          %v989 = vsel %vm972, %v987, 0.0
          %v990 = vsel %vm973, %v987, 0.0
          %v991 = vsel %vm974, %v987, 0.0
          %v992 = vsel %vm975, %v987, 0.0
          %v993 = vsel %vm976, %v987, 0.0
          %v994 = vsel %vm977, %v987, 0.0
          %v995 = vsel %vm978, %v987, 0.0
          %v996 = vsel %vm979, %v987, 0.0
          %v997 = vsel %vm980, %v987, 0.0
          %v998 = vsel %vm981, %v987, 0.0
          %v999 = vsel %vm982, %v987, 0.0
          %v1000 = vsel %vm983, %v987, 0.0
          %vm1001 = vcmp.eq.s32.totalorder %v958, 1
          %vm1002 = vcmp.eq.s32.totalorder %v959, 1
          %vm1003 = vcmp.eq.s32.totalorder %v960, 1
          %vm1004 = vcmp.eq.s32.totalorder %v961, 1
          %vm1005 = vcmp.eq.s32.totalorder %v962, 1
          %vm1006 = vcmp.eq.s32.totalorder %v963, 1
          %vm1007 = vcmp.eq.s32.totalorder %v964, 1
          %vm1008 = vcmp.eq.s32.totalorder %v965, 1
          %vm1009 = vcmp.eq.s32.totalorder %v966, 1
          %vm1010 = vcmp.eq.s32.totalorder %v967, 1
          %vm1011 = vcmp.eq.s32.totalorder %v968, 1
          %vm1012 = vcmp.eq.s32.totalorder %v969, 1
          %vm1013 = vcmp.eq.s32.totalorder %v970, 1
          %v1014 = vlaneseq
          %v1015 = vshrl.u32 %v1014, 7
          %v1016 = vsub.s32 2, %v1015
          %v1017 = vrot.slane %v288, %v1016
          %v1018 = vsel %vm1001, %v1017, %v988
          %v1019 = vsel %vm1002, %v1017, %v989
          %v1020 = vsel %vm1003, %v1017, %v990
          %v1021 = vsel %vm1004, %v1017, %v991
          %v1022 = vsel %vm1005, %v1017, %v992
          %v1023 = vsel %vm1006, %v1017, %v993
          %v1024 = vsel %vm1007, %v1017, %v994
          %v1025 = vsel %vm1008, %v1017, %v995
          %v1026 = vsel %vm1009, %v1017, %v996
          %v1027 = vsel %vm1010, %v1017, %v997
          %v1028 = vsel %vm1011, %v1017, %v998
          %v1029 = vsel %vm1012, %v1017, %v999
          %v1030 = vsel %vm1013, %v1017, %v1000
          %vm1031 = vcmp.eq.s32.totalorder %v958, 2
          %vm1032 = vcmp.eq.s32.totalorder %v959, 2
          %vm1033 = vcmp.eq.s32.totalorder %v960, 2
          %vm1034 = vcmp.eq.s32.totalorder %v961, 2
          %vm1035 = vcmp.eq.s32.totalorder %v962, 2
          %vm1036 = vcmp.eq.s32.totalorder %v963, 2
          %vm1037 = vcmp.eq.s32.totalorder %v964, 2
          %vm1038 = vcmp.eq.s32.totalorder %v965, 2
          %vm1039 = vcmp.eq.s32.totalorder %v966, 2
          %vm1040 = vcmp.eq.s32.totalorder %v967, 2
          %vm1041 = vcmp.eq.s32.totalorder %v968, 2
          %vm1042 = vcmp.eq.s32.totalorder %v969, 2
          %vm1043 = vcmp.eq.s32.totalorder %v970, 2
          %v1044 = vlaneseq
          %v1045 = vshrl.u32 %v1044, 7
          %v1046 = vsub.s32 2, %v1045
          %v1047 = vrot.slane %v290, %v1046
          %v1048 = vsel %vm1031, %v1047, %v1018
          %v1049 = vsel %vm1032, %v1047, %v1019
          %v1050 = vsel %vm1033, %v1047, %v1020
          %v1051 = vsel %vm1034, %v1047, %v1021
          %v1052 = vsel %vm1035, %v1047, %v1022
          %v1053 = vsel %vm1036, %v1047, %v1023
          %v1054 = vsel %vm1037, %v1047, %v1024
          %v1055 = vsel %vm1038, %v1047, %v1025
          %v1056 = vsel %vm1039, %v1047, %v1026
          %v1057 = vsel %vm1040, %v1047, %v1027
          %v1058 = vsel %vm1041, %v1047, %v1028
          %v1059 = vsel %vm1042, %v1047, %v1029
          %v1060 = vsel %vm1043, %v1047, %v1030
          %v1061 = vmul.f32 %v941, %v1048
          %v1062 = vmul.f32 %v942, %v1049
          %v1063 = vmul.f32 %v943, %v1050
          %v1064 = vmul.f32 %v944, %v1051
          %v1065 = vmul.f32 %v945, %v1052
          %v1066 = vmul.f32 %v946, %v1053
          %v1067 = vmul.f32 %v947, %v1054
          %v1068 = vmul.f32 %v948, %v1055
          %v1069 = vmul.f32 %v949, %v1056
          %v1070 = vmul.f32 %v950, %v1057
          %v1071 = vmul.f32 %v951, %v1058
          %v1072 = vmul.f32 %v952, %v1059
          %v1073 = vmul.f32 %v953, %v1060
          %v1074 = vmul.f32 %v1061, %v545
          %v1075 = vmul.f32 %v1062, %v546
          %v1076 = vmul.f32 %v1063, %v547
          %v1077 = vmul.f32 %v1064, %v548
          %v1078 = vmul.f32 %v1065, %v549
          %v1079 = vmul.f32 %v1066, %v550
          %v1080 = vmul.f32 %v1067, %v551
          %v1081 = vmul.f32 %v1068, %v552
          %v1082 = vmul.f32 %v1069, %v553
          %v1083 = vmul.f32 %v1070, %v554
          %v1084 = vmul.f32 %v1071, %v555
          %v1085 = vmul.f32 %v1072, %v556
          %v1086 = vmul.f32 %v1073, %v557
          %v1087 = vadd.f32 %v1074, %v1075
          %v1088 = vadd.f32 %v1087, %v1076
          %v1089 = vadd.f32 %v1088, %v1077
          %v1090 = vadd.f32 %v1089, %v1078
          %v1091 = vadd.f32 %v1090, %v1079
          %v1092 = vadd.f32 %v1091, %v1080
          %v1093 = vadd.f32 %v1092, %v1081
          %v1094 = vadd.f32 %v1093, %v1082
          %v1095 = vadd.f32 %v1094, %v1083
          %v1096 = vadd.f32 %v1095, %v1084
          %v1097 = vadd.f32 %v1096, %v1085
          %v1098 = vadd.f32 %v1097, %v1086
          %v1099 = vrot.slane %v1098, 4
          %v1100 = vadd.f32 %v1098, %v1099
          %v1101 = vrot.slane %v1100, 2
          %v1102 = vadd.f32 %v1100, %v1101
          %v1103 = vrot.slane %v1102, 1
          %v1104 = vadd.f32 %v1102, %v1103
          %v1105 = vlaneseq
          %v1106 = vshrl.u32 %v1105, 7
          %v1107 = vsub.s32 3, %v1106
          %v1108 = vrot.slane %v262, %v1107
          %v1109 = vsub.s32 %v291, %v1108
          %v1110 = vsub.s32 %v292, %v1108
          %v1111 = vsub.s32 %v293, %v1108
          %v1112 = vsub.s32 %v294, %v1108
          %v1113 = vsub.s32 %v295, %v1108
          %v1114 = vsub.s32 %v296, %v1108
          %v1115 = vsub.s32 %v297, %v1108
          %v1116 = vsub.s32 %v298, %v1108
          %v1117 = vsub.s32 %v299, %v1108
          %v1118 = vsub.s32 %v300, %v1108
          %v1119 = vsub.s32 %v301, %v1108
          %v1120 = vsub.s32 %v302, %v1108
          %v1121 = vsub.s32 %v303, %v1108
          %vm1122 = vcmp.eq.s32.totalorder %v1109, 0
          %vm1123 = vcmp.eq.s32.totalorder %v1110, 0
          %vm1124 = vcmp.eq.s32.totalorder %v1111, 0
          %vm1125 = vcmp.eq.s32.totalorder %v1112, 0
          %vm1126 = vcmp.eq.s32.totalorder %v1113, 0
          %vm1127 = vcmp.eq.s32.totalorder %v1114, 0
          %vm1128 = vcmp.eq.s32.totalorder %v1115, 0
          %vm1129 = vcmp.eq.s32.totalorder %v1116, 0
          %vm1130 = vcmp.eq.s32.totalorder %v1117, 0
          %vm1131 = vcmp.eq.s32.totalorder %v1118, 0
          %vm1132 = vcmp.eq.s32.totalorder %v1119, 0
          %vm1133 = vcmp.eq.s32.totalorder %v1120, 0
          %vm1134 = vcmp.eq.s32.totalorder %v1121, 0
          %v1135 = vlaneseq
          %v1136 = vshrl.u32 %v1135, 7
          %v1137 = vsub.s32 3, %v1136
          %v1138 = vrot.slane %v266, %v1137
          %v1139 = vsel %vm1122, %v1138, 0.0
          %v1140 = vsel %vm1123, %v1138, 0.0
          %v1141 = vsel %vm1124, %v1138, 0.0
          %v1142 = vsel %vm1125, %v1138, 0.0
          %v1143 = vsel %vm1126, %v1138, 0.0
          %v1144 = vsel %vm1127, %v1138, 0.0
          %v1145 = vsel %vm1128, %v1138, 0.0
          %v1146 = vsel %vm1129, %v1138, 0.0
          %v1147 = vsel %vm1130, %v1138, 0.0
          %v1148 = vsel %vm1131, %v1138, 0.0
          %v1149 = vsel %vm1132, %v1138, 0.0
          %v1150 = vsel %vm1133, %v1138, 0.0
          %v1151 = vsel %vm1134, %v1138, 0.0
          %vm1152 = vcmp.eq.s32.totalorder %v1109, 1
          %vm1153 = vcmp.eq.s32.totalorder %v1110, 1
          %vm1154 = vcmp.eq.s32.totalorder %v1111, 1
          %vm1155 = vcmp.eq.s32.totalorder %v1112, 1
          %vm1156 = vcmp.eq.s32.totalorder %v1113, 1
          %vm1157 = vcmp.eq.s32.totalorder %v1114, 1
          %vm1158 = vcmp.eq.s32.totalorder %v1115, 1
          %vm1159 = vcmp.eq.s32.totalorder %v1116, 1
          %vm1160 = vcmp.eq.s32.totalorder %v1117, 1
          %vm1161 = vcmp.eq.s32.totalorder %v1118, 1
          %vm1162 = vcmp.eq.s32.totalorder %v1119, 1
          %vm1163 = vcmp.eq.s32.totalorder %v1120, 1
          %vm1164 = vcmp.eq.s32.totalorder %v1121, 1
          %v1165 = vlaneseq
          %v1166 = vshrl.u32 %v1165, 7
          %v1167 = vsub.s32 3, %v1166
          %v1168 = vrot.slane %v268, %v1167
          %v1169 = vsel %vm1152, %v1168, %v1139
          %v1170 = vsel %vm1153, %v1168, %v1140
          %v1171 = vsel %vm1154, %v1168, %v1141
          %v1172 = vsel %vm1155, %v1168, %v1142
          %v1173 = vsel %vm1156, %v1168, %v1143
          %v1174 = vsel %vm1157, %v1168, %v1144
          %v1175 = vsel %vm1158, %v1168, %v1145
          %v1176 = vsel %vm1159, %v1168, %v1146
          %v1177 = vsel %vm1160, %v1168, %v1147
          %v1178 = vsel %vm1161, %v1168, %v1148
          %v1179 = vsel %vm1162, %v1168, %v1149
          %v1180 = vsel %vm1163, %v1168, %v1150
          %v1181 = vsel %vm1164, %v1168, %v1151
          %vm1182 = vcmp.eq.s32.totalorder %v1109, 2
          %vm1183 = vcmp.eq.s32.totalorder %v1110, 2
          %vm1184 = vcmp.eq.s32.totalorder %v1111, 2
          %vm1185 = vcmp.eq.s32.totalorder %v1112, 2
          %vm1186 = vcmp.eq.s32.totalorder %v1113, 2
          %vm1187 = vcmp.eq.s32.totalorder %v1114, 2
          %vm1188 = vcmp.eq.s32.totalorder %v1115, 2
          %vm1189 = vcmp.eq.s32.totalorder %v1116, 2
          %vm1190 = vcmp.eq.s32.totalorder %v1117, 2
          %vm1191 = vcmp.eq.s32.totalorder %v1118, 2
          %vm1192 = vcmp.eq.s32.totalorder %v1119, 2
          %vm1193 = vcmp.eq.s32.totalorder %v1120, 2
          %vm1194 = vcmp.eq.s32.totalorder %v1121, 2
          %v1195 = vlaneseq
          %v1196 = vshrl.u32 %v1195, 7
          %v1197 = vsub.s32 3, %v1196
          %v1198 = vrot.slane %v270, %v1197
          %v1199 = vsel %vm1182, %v1198, %v1169
          %v1200 = vsel %vm1183, %v1198, %v1170
          %v1201 = vsel %vm1184, %v1198, %v1171
          %v1202 = vsel %vm1185, %v1198, %v1172
          %v1203 = vsel %vm1186, %v1198, %v1173
          %v1204 = vsel %vm1187, %v1198, %v1174
          %v1205 = vsel %vm1188, %v1198, %v1175
          %v1206 = vsel %vm1189, %v1198, %v1176
          %v1207 = vsel %vm1190, %v1198, %v1177
          %v1208 = vsel %vm1191, %v1198, %v1178
          %v1209 = vsel %vm1192, %v1198, %v1179
          %v1210 = vsel %vm1193, %v1198, %v1180
          %v1211 = vsel %vm1194, %v1198, %v1181
          %v1212 = vlaneseq
          %v1213 = vshrl.u32 %v1212, 7
          %v1214 = vsub.s32 3, %v1213
          %v1215 = vrot.slane %v282, %v1214
          %v1216 = vsub.s32 %v412, %v1215
          %v1217 = vsub.s32 %v413, %v1215
          %v1218 = vsub.s32 %v414, %v1215
          %v1219 = vsub.s32 %v415, %v1215
          %v1220 = vsub.s32 %v416, %v1215
          %v1221 = vsub.s32 %v417, %v1215
          %v1222 = vsub.s32 %v418, %v1215
          %v1223 = vsub.s32 %v419, %v1215
          %v1224 = vsub.s32 %v420, %v1215
          %v1225 = vsub.s32 %v421, %v1215
          %v1226 = vsub.s32 %v422, %v1215
          %v1227 = vsub.s32 %v423, %v1215
          %v1228 = vsub.s32 %v424, %v1215
          %vm1229 = vcmp.eq.s32.totalorder %v1216, 0
          %vm1230 = vcmp.eq.s32.totalorder %v1217, 0
          %vm1231 = vcmp.eq.s32.totalorder %v1218, 0
          %vm1232 = vcmp.eq.s32.totalorder %v1219, 0
          %vm1233 = vcmp.eq.s32.totalorder %v1220, 0
          %vm1234 = vcmp.eq.s32.totalorder %v1221, 0
          %vm1235 = vcmp.eq.s32.totalorder %v1222, 0
          %vm1236 = vcmp.eq.s32.totalorder %v1223, 0
          %vm1237 = vcmp.eq.s32.totalorder %v1224, 0
          %vm1238 = vcmp.eq.s32.totalorder %v1225, 0
          %vm1239 = vcmp.eq.s32.totalorder %v1226, 0
          %vm1240 = vcmp.eq.s32.totalorder %v1227, 0
          %vm1241 = vcmp.eq.s32.totalorder %v1228, 0
          %v1242 = vlaneseq
          %v1243 = vshrl.u32 %v1242, 7
          %v1244 = vsub.s32 3, %v1243
          %v1245 = vrot.slane %v286, %v1244
          %v1246 = vsel %vm1229, %v1245, 0.0
          %v1247 = vsel %vm1230, %v1245, 0.0
          %v1248 = vsel %vm1231, %v1245, 0.0
          %v1249 = vsel %vm1232, %v1245, 0.0
          %v1250 = vsel %vm1233, %v1245, 0.0
          %v1251 = vsel %vm1234, %v1245, 0.0
          %v1252 = vsel %vm1235, %v1245, 0.0
          %v1253 = vsel %vm1236, %v1245, 0.0
          %v1254 = vsel %vm1237, %v1245, 0.0
          %v1255 = vsel %vm1238, %v1245, 0.0
          %v1256 = vsel %vm1239, %v1245, 0.0
          %v1257 = vsel %vm1240, %v1245, 0.0
          %v1258 = vsel %vm1241, %v1245, 0.0
          %vm1259 = vcmp.eq.s32.totalorder %v1216, 1
          %vm1260 = vcmp.eq.s32.totalorder %v1217, 1
          %vm1261 = vcmp.eq.s32.totalorder %v1218, 1
          %vm1262 = vcmp.eq.s32.totalorder %v1219, 1
          %vm1263 = vcmp.eq.s32.totalorder %v1220, 1
          %vm1264 = vcmp.eq.s32.totalorder %v1221, 1
          %vm1265 = vcmp.eq.s32.totalorder %v1222, 1
          %vm1266 = vcmp.eq.s32.totalorder %v1223, 1
          %vm1267 = vcmp.eq.s32.totalorder %v1224, 1
          %vm1268 = vcmp.eq.s32.totalorder %v1225, 1
          %vm1269 = vcmp.eq.s32.totalorder %v1226, 1
          %vm1270 = vcmp.eq.s32.totalorder %v1227, 1
          %vm1271 = vcmp.eq.s32.totalorder %v1228, 1
          %v1272 = vlaneseq
          %v1273 = vshrl.u32 %v1272, 7
          %v1274 = vsub.s32 3, %v1273
          %v1275 = vrot.slane %v288, %v1274
          %v1276 = vsel %vm1259, %v1275, %v1246
          %v1277 = vsel %vm1260, %v1275, %v1247
          %v1278 = vsel %vm1261, %v1275, %v1248
          %v1279 = vsel %vm1262, %v1275, %v1249
          %v1280 = vsel %vm1263, %v1275, %v1250
          %v1281 = vsel %vm1264, %v1275, %v1251
          %v1282 = vsel %vm1265, %v1275, %v1252
          %v1283 = vsel %vm1266, %v1275, %v1253
          %v1284 = vsel %vm1267, %v1275, %v1254
          %v1285 = vsel %vm1268, %v1275, %v1255
          %v1286 = vsel %vm1269, %v1275, %v1256
          %v1287 = vsel %vm1270, %v1275, %v1257
          %v1288 = vsel %vm1271, %v1275, %v1258
          %vm1289 = vcmp.eq.s32.totalorder %v1216, 2
          %vm1290 = vcmp.eq.s32.totalorder %v1217, 2
          %vm1291 = vcmp.eq.s32.totalorder %v1218, 2
          %vm1292 = vcmp.eq.s32.totalorder %v1219, 2
          %vm1293 = vcmp.eq.s32.totalorder %v1220, 2
          %vm1294 = vcmp.eq.s32.totalorder %v1221, 2
          %vm1295 = vcmp.eq.s32.totalorder %v1222, 2
          %vm1296 = vcmp.eq.s32.totalorder %v1223, 2
          %vm1297 = vcmp.eq.s32.totalorder %v1224, 2
          %vm1298 = vcmp.eq.s32.totalorder %v1225, 2
          %vm1299 = vcmp.eq.s32.totalorder %v1226, 2
          %vm1300 = vcmp.eq.s32.totalorder %v1227, 2
          %vm1301 = vcmp.eq.s32.totalorder %v1228, 2
          %v1302 = vlaneseq
          %v1303 = vshrl.u32 %v1302, 7
          %v1304 = vsub.s32 3, %v1303
          %v1305 = vrot.slane %v290, %v1304
          %v1306 = vsel %vm1289, %v1305, %v1276
          %v1307 = vsel %vm1290, %v1305, %v1277
          %v1308 = vsel %vm1291, %v1305, %v1278
          %v1309 = vsel %vm1292, %v1305, %v1279
          %v1310 = vsel %vm1293, %v1305, %v1280
          %v1311 = vsel %vm1294, %v1305, %v1281
          %v1312 = vsel %vm1295, %v1305, %v1282
          %v1313 = vsel %vm1296, %v1305, %v1283
          %v1314 = vsel %vm1297, %v1305, %v1284
          %v1315 = vsel %vm1298, %v1305, %v1285
          %v1316 = vsel %vm1299, %v1305, %v1286
          %v1317 = vsel %vm1300, %v1305, %v1287
          %v1318 = vsel %vm1301, %v1305, %v1288
          %v1319 = vmul.f32 %v1199, %v1306
          %v1320 = vmul.f32 %v1200, %v1307
          %v1321 = vmul.f32 %v1201, %v1308
          %v1322 = vmul.f32 %v1202, %v1309
          %v1323 = vmul.f32 %v1203, %v1310
          %v1324 = vmul.f32 %v1204, %v1311
          %v1325 = vmul.f32 %v1205, %v1312
          %v1326 = vmul.f32 %v1206, %v1313
          %v1327 = vmul.f32 %v1207, %v1314
          %v1328 = vmul.f32 %v1208, %v1315
          %v1329 = vmul.f32 %v1209, %v1316
          %v1330 = vmul.f32 %v1210, %v1317
          %v1331 = vmul.f32 %v1211, %v1318
          %v1332 = vmul.f32 %v1319, %v545
          %v1333 = vmul.f32 %v1320, %v546
          %v1334 = vmul.f32 %v1321, %v547
          %v1335 = vmul.f32 %v1322, %v548
          %v1336 = vmul.f32 %v1323, %v549
          %v1337 = vmul.f32 %v1324, %v550
          %v1338 = vmul.f32 %v1325, %v551
          %v1339 = vmul.f32 %v1326, %v552
          %v1340 = vmul.f32 %v1327, %v553
          %v1341 = vmul.f32 %v1328, %v554
          %v1342 = vmul.f32 %v1329, %v555
          %v1343 = vmul.f32 %v1330, %v556
          %v1344 = vmul.f32 %v1331, %v557
          %v1345 = vadd.f32 %v1332, %v1333
          %v1346 = vadd.f32 %v1345, %v1334
          %v1347 = vadd.f32 %v1346, %v1335
          %v1348 = vadd.f32 %v1347, %v1336
          %v1349 = vadd.f32 %v1348, %v1337
          %v1350 = vadd.f32 %v1349, %v1338
          %v1351 = vadd.f32 %v1350, %v1339
          %v1352 = vadd.f32 %v1351, %v1340
          %v1353 = vadd.f32 %v1352, %v1341
          %v1354 = vadd.f32 %v1353, %v1342
          %v1355 = vadd.f32 %v1354, %v1343
          %v1356 = vadd.f32 %v1355, %v1344
          %v1357 = vrot.slane %v1356, 4
          %v1358 = vadd.f32 %v1356, %v1357
          %v1359 = vrot.slane %v1358, 2
          %v1360 = vadd.f32 %v1358, %v1359
          %v1361 = vrot.slane %v1360, 1
          %v1362 = vadd.f32 %v1360, %v1361
          %v1363 = vlaneseq
          %v1364 = vshrl.u32 %v1363, 7
          %v1365 = vsub.s32 4, %v1364
          %v1366 = vrot.slane %v262, %v1365
          %v1367 = vsub.s32 %v291, %v1366
          %v1368 = vsub.s32 %v292, %v1366
          %v1369 = vsub.s32 %v293, %v1366
          %v1370 = vsub.s32 %v294, %v1366
          %v1371 = vsub.s32 %v295, %v1366
          %v1372 = vsub.s32 %v296, %v1366
          %v1373 = vsub.s32 %v297, %v1366
          %v1374 = vsub.s32 %v298, %v1366
          %v1375 = vsub.s32 %v299, %v1366
          %v1376 = vsub.s32 %v300, %v1366
          %v1377 = vsub.s32 %v301, %v1366
          %v1378 = vsub.s32 %v302, %v1366
          %v1379 = vsub.s32 %v303, %v1366
          %vm1380 = vcmp.eq.s32.totalorder %v1367, 0
          %vm1381 = vcmp.eq.s32.totalorder %v1368, 0
          %vm1382 = vcmp.eq.s32.totalorder %v1369, 0
          %vm1383 = vcmp.eq.s32.totalorder %v1370, 0
          %vm1384 = vcmp.eq.s32.totalorder %v1371, 0
          %vm1385 = vcmp.eq.s32.totalorder %v1372, 0
          %vm1386 = vcmp.eq.s32.totalorder %v1373, 0
          %vm1387 = vcmp.eq.s32.totalorder %v1374, 0
          %vm1388 = vcmp.eq.s32.totalorder %v1375, 0
          %vm1389 = vcmp.eq.s32.totalorder %v1376, 0
          %vm1390 = vcmp.eq.s32.totalorder %v1377, 0
          %vm1391 = vcmp.eq.s32.totalorder %v1378, 0
          %vm1392 = vcmp.eq.s32.totalorder %v1379, 0
          %v1393 = vlaneseq
          %v1394 = vshrl.u32 %v1393, 7
          %v1395 = vsub.s32 4, %v1394
          %v1396 = vrot.slane %v266, %v1395
          %v1397 = vsel %vm1380, %v1396, 0.0
          %v1398 = vsel %vm1381, %v1396, 0.0
          %v1399 = vsel %vm1382, %v1396, 0.0
          %v1400 = vsel %vm1383, %v1396, 0.0
          %v1401 = vsel %vm1384, %v1396, 0.0
          %v1402 = vsel %vm1385, %v1396, 0.0
          %v1403 = vsel %vm1386, %v1396, 0.0
          %v1404 = vsel %vm1387, %v1396, 0.0
          %v1405 = vsel %vm1388, %v1396, 0.0
          %v1406 = vsel %vm1389, %v1396, 0.0
          %v1407 = vsel %vm1390, %v1396, 0.0
          %v1408 = vsel %vm1391, %v1396, 0.0
          %v1409 = vsel %vm1392, %v1396, 0.0
          %vm1410 = vcmp.eq.s32.totalorder %v1367, 1
          %vm1411 = vcmp.eq.s32.totalorder %v1368, 1
          %vm1412 = vcmp.eq.s32.totalorder %v1369, 1
          %vm1413 = vcmp.eq.s32.totalorder %v1370, 1
          %vm1414 = vcmp.eq.s32.totalorder %v1371, 1
          %vm1415 = vcmp.eq.s32.totalorder %v1372, 1
          %vm1416 = vcmp.eq.s32.totalorder %v1373, 1
          %vm1417 = vcmp.eq.s32.totalorder %v1374, 1
          %vm1418 = vcmp.eq.s32.totalorder %v1375, 1
          %vm1419 = vcmp.eq.s32.totalorder %v1376, 1
          %vm1420 = vcmp.eq.s32.totalorder %v1377, 1
          %vm1421 = vcmp.eq.s32.totalorder %v1378, 1
          %vm1422 = vcmp.eq.s32.totalorder %v1379, 1
          %v1423 = vlaneseq
          %v1424 = vshrl.u32 %v1423, 7
          %v1425 = vsub.s32 4, %v1424
          %v1426 = vrot.slane %v268, %v1425
          %v1427 = vsel %vm1410, %v1426, %v1397
          %v1428 = vsel %vm1411, %v1426, %v1398
          %v1429 = vsel %vm1412, %v1426, %v1399
          %v1430 = vsel %vm1413, %v1426, %v1400
          %v1431 = vsel %vm1414, %v1426, %v1401
          %v1432 = vsel %vm1415, %v1426, %v1402
          %v1433 = vsel %vm1416, %v1426, %v1403
          %v1434 = vsel %vm1417, %v1426, %v1404
          %v1435 = vsel %vm1418, %v1426, %v1405
          %v1436 = vsel %vm1419, %v1426, %v1406
          %v1437 = vsel %vm1420, %v1426, %v1407
          %v1438 = vsel %vm1421, %v1426, %v1408
          %v1439 = vsel %vm1422, %v1426, %v1409
          %vm1440 = vcmp.eq.s32.totalorder %v1367, 2
          %vm1441 = vcmp.eq.s32.totalorder %v1368, 2
          %vm1442 = vcmp.eq.s32.totalorder %v1369, 2
          %vm1443 = vcmp.eq.s32.totalorder %v1370, 2
          %vm1444 = vcmp.eq.s32.totalorder %v1371, 2
          %vm1445 = vcmp.eq.s32.totalorder %v1372, 2
          %vm1446 = vcmp.eq.s32.totalorder %v1373, 2
          %vm1447 = vcmp.eq.s32.totalorder %v1374, 2
          %vm1448 = vcmp.eq.s32.totalorder %v1375, 2
          %vm1449 = vcmp.eq.s32.totalorder %v1376, 2
          %vm1450 = vcmp.eq.s32.totalorder %v1377, 2
          %vm1451 = vcmp.eq.s32.totalorder %v1378, 2
          %vm1452 = vcmp.eq.s32.totalorder %v1379, 2
          %v1453 = vlaneseq
          %v1454 = vshrl.u32 %v1453, 7
          %v1455 = vsub.s32 4, %v1454
          %v1456 = vrot.slane %v270, %v1455
          %v1457 = vsel %vm1440, %v1456, %v1427
          %v1458 = vsel %vm1441, %v1456, %v1428
          %v1459 = vsel %vm1442, %v1456, %v1429
          %v1460 = vsel %vm1443, %v1456, %v1430
          %v1461 = vsel %vm1444, %v1456, %v1431
          %v1462 = vsel %vm1445, %v1456, %v1432
          %v1463 = vsel %vm1446, %v1456, %v1433
          %v1464 = vsel %vm1447, %v1456, %v1434
          %v1465 = vsel %vm1448, %v1456, %v1435
          %v1466 = vsel %vm1449, %v1456, %v1436
          %v1467 = vsel %vm1450, %v1456, %v1437
          %v1468 = vsel %vm1451, %v1456, %v1438
          %v1469 = vsel %vm1452, %v1456, %v1439
          %v1470 = vlaneseq
          %v1471 = vshrl.u32 %v1470, 7
          %v1472 = vsub.s32 4, %v1471
          %v1473 = vrot.slane %v282, %v1472
          %v1474 = vsub.s32 %v412, %v1473
          %v1475 = vsub.s32 %v413, %v1473
          %v1476 = vsub.s32 %v414, %v1473
          %v1477 = vsub.s32 %v415, %v1473
          %v1478 = vsub.s32 %v416, %v1473
          %v1479 = vsub.s32 %v417, %v1473
          %v1480 = vsub.s32 %v418, %v1473
          %v1481 = vsub.s32 %v419, %v1473
          %v1482 = vsub.s32 %v420, %v1473
          %v1483 = vsub.s32 %v421, %v1473
          %v1484 = vsub.s32 %v422, %v1473
          %v1485 = vsub.s32 %v423, %v1473
          %v1486 = vsub.s32 %v424, %v1473
          %vm1487 = vcmp.eq.s32.totalorder %v1474, 0
          %vm1488 = vcmp.eq.s32.totalorder %v1475, 0
          %vm1489 = vcmp.eq.s32.totalorder %v1476, 0
          %vm1490 = vcmp.eq.s32.totalorder %v1477, 0
          %vm1491 = vcmp.eq.s32.totalorder %v1478, 0
          %vm1492 = vcmp.eq.s32.totalorder %v1479, 0
          %vm1493 = vcmp.eq.s32.totalorder %v1480, 0
          %vm1494 = vcmp.eq.s32.totalorder %v1481, 0
          %vm1495 = vcmp.eq.s32.totalorder %v1482, 0
          %vm1496 = vcmp.eq.s32.totalorder %v1483, 0
          %vm1497 = vcmp.eq.s32.totalorder %v1484, 0
          %vm1498 = vcmp.eq.s32.totalorder %v1485, 0
          %vm1499 = vcmp.eq.s32.totalorder %v1486, 0
          %v1500 = vlaneseq
          %v1501 = vshrl.u32 %v1500, 7
          %v1502 = vsub.s32 4, %v1501
          %v1503 = vrot.slane %v286, %v1502
          %v1504 = vsel %vm1487, %v1503, 0.0
          %v1505 = vsel %vm1488, %v1503, 0.0
          %v1506 = vsel %vm1489, %v1503, 0.0
          %v1507 = vsel %vm1490, %v1503, 0.0
          %v1508 = vsel %vm1491, %v1503, 0.0
          %v1509 = vsel %vm1492, %v1503, 0.0
          %v1510 = vsel %vm1493, %v1503, 0.0
          %v1511 = vsel %vm1494, %v1503, 0.0
          %v1512 = vsel %vm1495, %v1503, 0.0
          %v1513 = vsel %vm1496, %v1503, 0.0
          %v1514 = vsel %vm1497, %v1503, 0.0
          %v1515 = vsel %vm1498, %v1503, 0.0
          %v1516 = vsel %vm1499, %v1503, 0.0
          %vm1517 = vcmp.eq.s32.totalorder %v1474, 1
          %vm1518 = vcmp.eq.s32.totalorder %v1475, 1
          %vm1519 = vcmp.eq.s32.totalorder %v1476, 1
          %vm1520 = vcmp.eq.s32.totalorder %v1477, 1
          %vm1521 = vcmp.eq.s32.totalorder %v1478, 1
          %vm1522 = vcmp.eq.s32.totalorder %v1479, 1
          %vm1523 = vcmp.eq.s32.totalorder %v1480, 1
          %vm1524 = vcmp.eq.s32.totalorder %v1481, 1
          %vm1525 = vcmp.eq.s32.totalorder %v1482, 1
          %vm1526 = vcmp.eq.s32.totalorder %v1483, 1
          %vm1527 = vcmp.eq.s32.totalorder %v1484, 1
          %vm1528 = vcmp.eq.s32.totalorder %v1485, 1
          %vm1529 = vcmp.eq.s32.totalorder %v1486, 1
          %v1530 = vlaneseq
          %v1531 = vshrl.u32 %v1530, 7
          %v1532 = vsub.s32 4, %v1531
          %v1533 = vrot.slane %v288, %v1532
          %v1534 = vsel %vm1517, %v1533, %v1504
          %v1535 = vsel %vm1518, %v1533, %v1505
          %v1536 = vsel %vm1519, %v1533, %v1506
          %v1537 = vsel %vm1520, %v1533, %v1507
          %v1538 = vsel %vm1521, %v1533, %v1508
          %v1539 = vsel %vm1522, %v1533, %v1509
          %v1540 = vsel %vm1523, %v1533, %v1510
          %v1541 = vsel %vm1524, %v1533, %v1511
          %v1542 = vsel %vm1525, %v1533, %v1512
          %v1543 = vsel %vm1526, %v1533, %v1513
          %v1544 = vsel %vm1527, %v1533, %v1514
          %v1545 = vsel %vm1528, %v1533, %v1515
          %v1546 = vsel %vm1529, %v1533, %v1516
          %vm1547 = vcmp.eq.s32.totalorder %v1474, 2
          %vm1548 = vcmp.eq.s32.totalorder %v1475, 2
          %vm1549 = vcmp.eq.s32.totalorder %v1476, 2
          %vm1550 = vcmp.eq.s32.totalorder %v1477, 2
          %vm1551 = vcmp.eq.s32.totalorder %v1478, 2
          %vm1552 = vcmp.eq.s32.totalorder %v1479, 2
          %vm1553 = vcmp.eq.s32.totalorder %v1480, 2
          %vm1554 = vcmp.eq.s32.totalorder %v1481, 2
          %vm1555 = vcmp.eq.s32.totalorder %v1482, 2
          %vm1556 = vcmp.eq.s32.totalorder %v1483, 2
          %vm1557 = vcmp.eq.s32.totalorder %v1484, 2
          %vm1558 = vcmp.eq.s32.totalorder %v1485, 2
          %vm1559 = vcmp.eq.s32.totalorder %v1486, 2
          %v1560 = vlaneseq
          %v1561 = vshrl.u32 %v1560, 7
          %v1562 = vsub.s32 4, %v1561
          %v1563 = vrot.slane %v290, %v1562
          %v1564 = vsel %vm1547, %v1563, %v1534
          %v1565 = vsel %vm1548, %v1563, %v1535
          %v1566 = vsel %vm1549, %v1563, %v1536
          %v1567 = vsel %vm1550, %v1563, %v1537
          %v1568 = vsel %vm1551, %v1563, %v1538
          %v1569 = vsel %vm1552, %v1563, %v1539
          %v1570 = vsel %vm1553, %v1563, %v1540
          %v1571 = vsel %vm1554, %v1563, %v1541
          %v1572 = vsel %vm1555, %v1563, %v1542
          %v1573 = vsel %vm1556, %v1563, %v1543
          %v1574 = vsel %vm1557, %v1563, %v1544
          %v1575 = vsel %vm1558, %v1563, %v1545
          %v1576 = vsel %vm1559, %v1563, %v1546
          %v1577 = vmul.f32 %v1457, %v1564
          %v1578 = vmul.f32 %v1458, %v1565
          %v1579 = vmul.f32 %v1459, %v1566
          %v1580 = vmul.f32 %v1460, %v1567
          %v1581 = vmul.f32 %v1461, %v1568
          %v1582 = vmul.f32 %v1462, %v1569
          %v1583 = vmul.f32 %v1463, %v1570
          %v1584 = vmul.f32 %v1464, %v1571
          %v1585 = vmul.f32 %v1465, %v1572
          %v1586 = vmul.f32 %v1466, %v1573
          %v1587 = vmul.f32 %v1467, %v1574
          %v1588 = vmul.f32 %v1468, %v1575
          %v1589 = vmul.f32 %v1469, %v1576
          %v1590 = vmul.f32 %v1577, %v545
          %v1591 = vmul.f32 %v1578, %v546
          %v1592 = vmul.f32 %v1579, %v547
          %v1593 = vmul.f32 %v1580, %v548
          %v1594 = vmul.f32 %v1581, %v549
          %v1595 = vmul.f32 %v1582, %v550
          %v1596 = vmul.f32 %v1583, %v551
          %v1597 = vmul.f32 %v1584, %v552
          %v1598 = vmul.f32 %v1585, %v553
          %v1599 = vmul.f32 %v1586, %v554
          %v1600 = vmul.f32 %v1587, %v555
          %v1601 = vmul.f32 %v1588, %v556
          %v1602 = vmul.f32 %v1589, %v557
          %v1603 = vadd.f32 %v1590, %v1591
          %v1604 = vadd.f32 %v1603, %v1592
          %v1605 = vadd.f32 %v1604, %v1593
          %v1606 = vadd.f32 %v1605, %v1594
          %v1607 = vadd.f32 %v1606, %v1595
          %v1608 = vadd.f32 %v1607, %v1596
          %v1609 = vadd.f32 %v1608, %v1597
          %v1610 = vadd.f32 %v1609, %v1598
          %v1611 = vadd.f32 %v1610, %v1599
          %v1612 = vadd.f32 %v1611, %v1600
          %v1613 = vadd.f32 %v1612, %v1601
          %v1614 = vadd.f32 %v1613, %v1602
          %v1615 = vrot.slane %v1614, 4
          %v1616 = vadd.f32 %v1614, %v1615
          %v1617 = vrot.slane %v1616, 2
          %v1618 = vadd.f32 %v1616, %v1617
          %v1619 = vrot.slane %v1618, 1
          %v1620 = vadd.f32 %v1618, %v1619
          %v1621 = vlaneseq
          %v1622 = vshrl.u32 %v1621, 7
          %v1623 = vsub.s32 5, %v1622
          %v1624 = vrot.slane %v262, %v1623
          %v1625 = vsub.s32 %v291, %v1624
          %v1626 = vsub.s32 %v292, %v1624
          %v1627 = vsub.s32 %v293, %v1624
          %v1628 = vsub.s32 %v294, %v1624
          %v1629 = vsub.s32 %v295, %v1624
          %v1630 = vsub.s32 %v296, %v1624
          %v1631 = vsub.s32 %v297, %v1624
          %v1632 = vsub.s32 %v298, %v1624
          %v1633 = vsub.s32 %v299, %v1624
          %v1634 = vsub.s32 %v300, %v1624
          %v1635 = vsub.s32 %v301, %v1624
          %v1636 = vsub.s32 %v302, %v1624
          %v1637 = vsub.s32 %v303, %v1624
          %vm1638 = vcmp.eq.s32.totalorder %v1625, 0
          %vm1639 = vcmp.eq.s32.totalorder %v1626, 0
          %vm1640 = vcmp.eq.s32.totalorder %v1627, 0
          %vm1641 = vcmp.eq.s32.totalorder %v1628, 0
          %vm1642 = vcmp.eq.s32.totalorder %v1629, 0
          %vm1643 = vcmp.eq.s32.totalorder %v1630, 0
          %vm1644 = vcmp.eq.s32.totalorder %v1631, 0
          %vm1645 = vcmp.eq.s32.totalorder %v1632, 0
          %vm1646 = vcmp.eq.s32.totalorder %v1633, 0
          %vm1647 = vcmp.eq.s32.totalorder %v1634, 0
          %vm1648 = vcmp.eq.s32.totalorder %v1635, 0
          %vm1649 = vcmp.eq.s32.totalorder %v1636, 0
          %vm1650 = vcmp.eq.s32.totalorder %v1637, 0
          %v1651 = vlaneseq
          %v1652 = vshrl.u32 %v1651, 7
          %v1653 = vsub.s32 5, %v1652
          %v1654 = vrot.slane %v266, %v1653
          %v1655 = vsel %vm1638, %v1654, 0.0
          %v1656 = vsel %vm1639, %v1654, 0.0
          %v1657 = vsel %vm1640, %v1654, 0.0
          %v1658 = vsel %vm1641, %v1654, 0.0
          %v1659 = vsel %vm1642, %v1654, 0.0
          %v1660 = vsel %vm1643, %v1654, 0.0
          %v1661 = vsel %vm1644, %v1654, 0.0
          %v1662 = vsel %vm1645, %v1654, 0.0
          %v1663 = vsel %vm1646, %v1654, 0.0
          %v1664 = vsel %vm1647, %v1654, 0.0
          %v1665 = vsel %vm1648, %v1654, 0.0
          %v1666 = vsel %vm1649, %v1654, 0.0
          %v1667 = vsel %vm1650, %v1654, 0.0
          %vm1668 = vcmp.eq.s32.totalorder %v1625, 1
          %vm1669 = vcmp.eq.s32.totalorder %v1626, 1
          %vm1670 = vcmp.eq.s32.totalorder %v1627, 1
          %vm1671 = vcmp.eq.s32.totalorder %v1628, 1
          %vm1672 = vcmp.eq.s32.totalorder %v1629, 1
          %vm1673 = vcmp.eq.s32.totalorder %v1630, 1
          %vm1674 = vcmp.eq.s32.totalorder %v1631, 1
          %vm1675 = vcmp.eq.s32.totalorder %v1632, 1
          %vm1676 = vcmp.eq.s32.totalorder %v1633, 1
          %vm1677 = vcmp.eq.s32.totalorder %v1634, 1
          %vm1678 = vcmp.eq.s32.totalorder %v1635, 1
          %vm1679 = vcmp.eq.s32.totalorder %v1636, 1
          %vm1680 = vcmp.eq.s32.totalorder %v1637, 1
          %v1681 = vlaneseq
          %v1682 = vshrl.u32 %v1681, 7
          %v1683 = vsub.s32 5, %v1682
          %v1684 = vrot.slane %v268, %v1683
          %v1685 = vsel %vm1668, %v1684, %v1655
          %v1686 = vsel %vm1669, %v1684, %v1656
          %v1687 = vsel %vm1670, %v1684, %v1657
          %v1688 = vsel %vm1671, %v1684, %v1658
          %v1689 = vsel %vm1672, %v1684, %v1659
          %v1690 = vsel %vm1673, %v1684, %v1660
          %v1691 = vsel %vm1674, %v1684, %v1661
          %v1692 = vsel %vm1675, %v1684, %v1662
          %v1693 = vsel %vm1676, %v1684, %v1663
          %v1694 = vsel %vm1677, %v1684, %v1664
          %v1695 = vsel %vm1678, %v1684, %v1665
          %v1696 = vsel %vm1679, %v1684, %v1666
          %v1697 = vsel %vm1680, %v1684, %v1667
          %vm1698 = vcmp.eq.s32.totalorder %v1625, 2
          %vm1699 = vcmp.eq.s32.totalorder %v1626, 2
          %vm1700 = vcmp.eq.s32.totalorder %v1627, 2
          %vm1701 = vcmp.eq.s32.totalorder %v1628, 2
          %vm1702 = vcmp.eq.s32.totalorder %v1629, 2
          %vm1703 = vcmp.eq.s32.totalorder %v1630, 2
          %vm1704 = vcmp.eq.s32.totalorder %v1631, 2
          %vm1705 = vcmp.eq.s32.totalorder %v1632, 2
          %vm1706 = vcmp.eq.s32.totalorder %v1633, 2
          %vm1707 = vcmp.eq.s32.totalorder %v1634, 2
          %vm1708 = vcmp.eq.s32.totalorder %v1635, 2
          %vm1709 = vcmp.eq.s32.totalorder %v1636, 2
          %vm1710 = vcmp.eq.s32.totalorder %v1637, 2
          %v1711 = vlaneseq
          %v1712 = vshrl.u32 %v1711, 7
          %v1713 = vsub.s32 5, %v1712
          %v1714 = vrot.slane %v270, %v1713
          %v1715 = vsel %vm1698, %v1714, %v1685
          %v1716 = vsel %vm1699, %v1714, %v1686
          %v1717 = vsel %vm1700, %v1714, %v1687
          %v1718 = vsel %vm1701, %v1714, %v1688
          %v1719 = vsel %vm1702, %v1714, %v1689
          %v1720 = vsel %vm1703, %v1714, %v1690
          %v1721 = vsel %vm1704, %v1714, %v1691
          %v1722 = vsel %vm1705, %v1714, %v1692
          %v1723 = vsel %vm1706, %v1714, %v1693
          %v1724 = vsel %vm1707, %v1714, %v1694
          %v1725 = vsel %vm1708, %v1714, %v1695
          %v1726 = vsel %vm1709, %v1714, %v1696
          %v1727 = vsel %vm1710, %v1714, %v1697
          %v1728 = vlaneseq
          %v1729 = vshrl.u32 %v1728, 7
          %v1730 = vsub.s32 5, %v1729
          %v1731 = vrot.slane %v282, %v1730
          %v1732 = vsub.s32 %v412, %v1731
          %v1733 = vsub.s32 %v413, %v1731
          %v1734 = vsub.s32 %v414, %v1731
          %v1735 = vsub.s32 %v415, %v1731
          %v1736 = vsub.s32 %v416, %v1731
          %v1737 = vsub.s32 %v417, %v1731
          %v1738 = vsub.s32 %v418, %v1731
          %v1739 = vsub.s32 %v419, %v1731
          %v1740 = vsub.s32 %v420, %v1731
          %v1741 = vsub.s32 %v421, %v1731
          %v1742 = vsub.s32 %v422, %v1731
          %v1743 = vsub.s32 %v423, %v1731
          %v1744 = vsub.s32 %v424, %v1731
          %vm1745 = vcmp.eq.s32.totalorder %v1732, 0
          %vm1746 = vcmp.eq.s32.totalorder %v1733, 0
          %vm1747 = vcmp.eq.s32.totalorder %v1734, 0
          %vm1748 = vcmp.eq.s32.totalorder %v1735, 0
          %vm1749 = vcmp.eq.s32.totalorder %v1736, 0
          %vm1750 = vcmp.eq.s32.totalorder %v1737, 0
          %vm1751 = vcmp.eq.s32.totalorder %v1738, 0
          %vm1752 = vcmp.eq.s32.totalorder %v1739, 0
          %vm1753 = vcmp.eq.s32.totalorder %v1740, 0
          %vm1754 = vcmp.eq.s32.totalorder %v1741, 0
          %vm1755 = vcmp.eq.s32.totalorder %v1742, 0
          %vm1756 = vcmp.eq.s32.totalorder %v1743, 0
          %vm1757 = vcmp.eq.s32.totalorder %v1744, 0
          %v1758 = vlaneseq
          %v1759 = vshrl.u32 %v1758, 7
          %v1760 = vsub.s32 5, %v1759
          %v1761 = vrot.slane %v286, %v1760
          %v1762 = vsel %vm1745, %v1761, 0.0
          %v1763 = vsel %vm1746, %v1761, 0.0
          %v1764 = vsel %vm1747, %v1761, 0.0
          %v1765 = vsel %vm1748, %v1761, 0.0
          %v1766 = vsel %vm1749, %v1761, 0.0
          %v1767 = vsel %vm1750, %v1761, 0.0
          %v1768 = vsel %vm1751, %v1761, 0.0
          %v1769 = vsel %vm1752, %v1761, 0.0
          %v1770 = vsel %vm1753, %v1761, 0.0
          %v1771 = vsel %vm1754, %v1761, 0.0
          %v1772 = vsel %vm1755, %v1761, 0.0
          %v1773 = vsel %vm1756, %v1761, 0.0
          %v1774 = vsel %vm1757, %v1761, 0.0
          %vm1775 = vcmp.eq.s32.totalorder %v1732, 1
          %vm1776 = vcmp.eq.s32.totalorder %v1733, 1
          %vm1777 = vcmp.eq.s32.totalorder %v1734, 1
          %vm1778 = vcmp.eq.s32.totalorder %v1735, 1
          %vm1779 = vcmp.eq.s32.totalorder %v1736, 1
          %vm1780 = vcmp.eq.s32.totalorder %v1737, 1
          %vm1781 = vcmp.eq.s32.totalorder %v1738, 1
          %vm1782 = vcmp.eq.s32.totalorder %v1739, 1
          %vm1783 = vcmp.eq.s32.totalorder %v1740, 1
          %vm1784 = vcmp.eq.s32.totalorder %v1741, 1
          %vm1785 = vcmp.eq.s32.totalorder %v1742, 1
          %vm1786 = vcmp.eq.s32.totalorder %v1743, 1
          %vm1787 = vcmp.eq.s32.totalorder %v1744, 1
          %v1788 = vlaneseq
          %v1789 = vshrl.u32 %v1788, 7
          %v1790 = vsub.s32 5, %v1789
          %v1791 = vrot.slane %v288, %v1790
          %v1792 = vsel %vm1775, %v1791, %v1762
          %v1793 = vsel %vm1776, %v1791, %v1763
          %v1794 = vsel %vm1777, %v1791, %v1764
          %v1795 = vsel %vm1778, %v1791, %v1765
          %v1796 = vsel %vm1779, %v1791, %v1766
          %v1797 = vsel %vm1780, %v1791, %v1767
          %v1798 = vsel %vm1781, %v1791, %v1768
          %v1799 = vsel %vm1782, %v1791, %v1769
          %v1800 = vsel %vm1783, %v1791, %v1770
          %v1801 = vsel %vm1784, %v1791, %v1771
          %v1802 = vsel %vm1785, %v1791, %v1772
          %v1803 = vsel %vm1786, %v1791, %v1773
          %v1804 = vsel %vm1787, %v1791, %v1774
          %vm1805 = vcmp.eq.s32.totalorder %v1732, 2
          %vm1806 = vcmp.eq.s32.totalorder %v1733, 2
          %vm1807 = vcmp.eq.s32.totalorder %v1734, 2
          %vm1808 = vcmp.eq.s32.totalorder %v1735, 2
          %vm1809 = vcmp.eq.s32.totalorder %v1736, 2
          %vm1810 = vcmp.eq.s32.totalorder %v1737, 2
          %vm1811 = vcmp.eq.s32.totalorder %v1738, 2
          %vm1812 = vcmp.eq.s32.totalorder %v1739, 2
          %vm1813 = vcmp.eq.s32.totalorder %v1740, 2
          %vm1814 = vcmp.eq.s32.totalorder %v1741, 2
          %vm1815 = vcmp.eq.s32.totalorder %v1742, 2
          %vm1816 = vcmp.eq.s32.totalorder %v1743, 2
          %vm1817 = vcmp.eq.s32.totalorder %v1744, 2
          %v1818 = vlaneseq
          %v1819 = vshrl.u32 %v1818, 7
          %v1820 = vsub.s32 5, %v1819
          %v1821 = vrot.slane %v290, %v1820
          %v1822 = vsel %vm1805, %v1821, %v1792
          %v1823 = vsel %vm1806, %v1821, %v1793
          %v1824 = vsel %vm1807, %v1821, %v1794
          %v1825 = vsel %vm1808, %v1821, %v1795
          %v1826 = vsel %vm1809, %v1821, %v1796
          %v1827 = vsel %vm1810, %v1821, %v1797
          %v1828 = vsel %vm1811, %v1821, %v1798
          %v1829 = vsel %vm1812, %v1821, %v1799
          %v1830 = vsel %vm1813, %v1821, %v1800
          %v1831 = vsel %vm1814, %v1821, %v1801
          %v1832 = vsel %vm1815, %v1821, %v1802
          %v1833 = vsel %vm1816, %v1821, %v1803
          %v1834 = vsel %vm1817, %v1821, %v1804
          %v1835 = vmul.f32 %v1715, %v1822
          %v1836 = vmul.f32 %v1716, %v1823
          %v1837 = vmul.f32 %v1717, %v1824
          %v1838 = vmul.f32 %v1718, %v1825
          %v1839 = vmul.f32 %v1719, %v1826
          %v1840 = vmul.f32 %v1720, %v1827
          %v1841 = vmul.f32 %v1721, %v1828
          %v1842 = vmul.f32 %v1722, %v1829
          %v1843 = vmul.f32 %v1723, %v1830
          %v1844 = vmul.f32 %v1724, %v1831
          %v1845 = vmul.f32 %v1725, %v1832
          %v1846 = vmul.f32 %v1726, %v1833
          %v1847 = vmul.f32 %v1727, %v1834
          %v1848 = vmul.f32 %v1835, %v545
          %v1849 = vmul.f32 %v1836, %v546
          %v1850 = vmul.f32 %v1837, %v547
          %v1851 = vmul.f32 %v1838, %v548
          %v1852 = vmul.f32 %v1839, %v549
          %v1853 = vmul.f32 %v1840, %v550
          %v1854 = vmul.f32 %v1841, %v551
          %v1855 = vmul.f32 %v1842, %v552
          %v1856 = vmul.f32 %v1843, %v553
          %v1857 = vmul.f32 %v1844, %v554
          %v1858 = vmul.f32 %v1845, %v555
          %v1859 = vmul.f32 %v1846, %v556
          %v1860 = vmul.f32 %v1847, %v557
          %v1861 = vadd.f32 %v1848, %v1849
          %v1862 = vadd.f32 %v1861, %v1850
          %v1863 = vadd.f32 %v1862, %v1851
          %v1864 = vadd.f32 %v1863, %v1852
          %v1865 = vadd.f32 %v1864, %v1853
          %v1866 = vadd.f32 %v1865, %v1854
          %v1867 = vadd.f32 %v1866, %v1855
          %v1868 = vadd.f32 %v1867, %v1856
          %v1869 = vadd.f32 %v1868, %v1857
          %v1870 = vadd.f32 %v1869, %v1858
          %v1871 = vadd.f32 %v1870, %v1859
          %v1872 = vadd.f32 %v1871, %v1860
          %v1873 = vrot.slane %v1872, 4
          %v1874 = vadd.f32 %v1872, %v1873
          %v1875 = vrot.slane %v1874, 2
          %v1876 = vadd.f32 %v1874, %v1875
          %v1877 = vrot.slane %v1876, 1
          %v1878 = vadd.f32 %v1876, %v1877
          %v1879 = vlaneseq
          %v1880 = vshrl.u32 %v1879, 7
          %v1881 = vsub.s32 6, %v1880
          %v1882 = vrot.slane %v262, %v1881
          %v1883 = vsub.s32 %v291, %v1882
          %v1884 = vsub.s32 %v292, %v1882
          %v1885 = vsub.s32 %v293, %v1882
          %v1886 = vsub.s32 %v294, %v1882
          %v1887 = vsub.s32 %v295, %v1882
          %v1888 = vsub.s32 %v296, %v1882
          %v1889 = vsub.s32 %v297, %v1882
          %v1890 = vsub.s32 %v298, %v1882
          %v1891 = vsub.s32 %v299, %v1882
          %v1892 = vsub.s32 %v300, %v1882
          %v1893 = vsub.s32 %v301, %v1882
          %v1894 = vsub.s32 %v302, %v1882
          %v1895 = vsub.s32 %v303, %v1882
          %vm1896 = vcmp.eq.s32.totalorder %v1883, 0
          %vm1897 = vcmp.eq.s32.totalorder %v1884, 0
          %vm1898 = vcmp.eq.s32.totalorder %v1885, 0
          %vm1899 = vcmp.eq.s32.totalorder %v1886, 0
          %vm1900 = vcmp.eq.s32.totalorder %v1887, 0
          %vm1901 = vcmp.eq.s32.totalorder %v1888, 0
          %vm1902 = vcmp.eq.s32.totalorder %v1889, 0
          %vm1903 = vcmp.eq.s32.totalorder %v1890, 0
          %vm1904 = vcmp.eq.s32.totalorder %v1891, 0
          %vm1905 = vcmp.eq.s32.totalorder %v1892, 0
          %vm1906 = vcmp.eq.s32.totalorder %v1893, 0
          %vm1907 = vcmp.eq.s32.totalorder %v1894, 0
          %vm1908 = vcmp.eq.s32.totalorder %v1895, 0
          %v1909 = vlaneseq
          %v1910 = vshrl.u32 %v1909, 7
          %v1911 = vsub.s32 6, %v1910
          %v1912 = vrot.slane %v266, %v1911
          %v1913 = vsel %vm1896, %v1912, 0.0
          %v1914 = vsel %vm1897, %v1912, 0.0
          %v1915 = vsel %vm1898, %v1912, 0.0
          %v1916 = vsel %vm1899, %v1912, 0.0
          %v1917 = vsel %vm1900, %v1912, 0.0
          %v1918 = vsel %vm1901, %v1912, 0.0
          %v1919 = vsel %vm1902, %v1912, 0.0
          %v1920 = vsel %vm1903, %v1912, 0.0
          %v1921 = vsel %vm1904, %v1912, 0.0
          %v1922 = vsel %vm1905, %v1912, 0.0
          %v1923 = vsel %vm1906, %v1912, 0.0
          %v1924 = vsel %vm1907, %v1912, 0.0
          %v1925 = vsel %vm1908, %v1912, 0.0
          %vm1926 = vcmp.eq.s32.totalorder %v1883, 1
          %vm1927 = vcmp.eq.s32.totalorder %v1884, 1
          %vm1928 = vcmp.eq.s32.totalorder %v1885, 1
          %vm1929 = vcmp.eq.s32.totalorder %v1886, 1
          %vm1930 = vcmp.eq.s32.totalorder %v1887, 1
          %vm1931 = vcmp.eq.s32.totalorder %v1888, 1
          %vm1932 = vcmp.eq.s32.totalorder %v1889, 1
          %vm1933 = vcmp.eq.s32.totalorder %v1890, 1
          %vm1934 = vcmp.eq.s32.totalorder %v1891, 1
          %vm1935 = vcmp.eq.s32.totalorder %v1892, 1
          %vm1936 = vcmp.eq.s32.totalorder %v1893, 1
          %vm1937 = vcmp.eq.s32.totalorder %v1894, 1
          %vm1938 = vcmp.eq.s32.totalorder %v1895, 1
          %v1939 = vlaneseq
          %v1940 = vshrl.u32 %v1939, 7
          %v1941 = vsub.s32 6, %v1940
          %v1942 = vrot.slane %v268, %v1941
          %v1943 = vsel %vm1926, %v1942, %v1913
          %v1944 = vsel %vm1927, %v1942, %v1914
          %v1945 = vsel %vm1928, %v1942, %v1915
          %v1946 = vsel %vm1929, %v1942, %v1916
          %v1947 = vsel %vm1930, %v1942, %v1917
          %v1948 = vsel %vm1931, %v1942, %v1918
          %v1949 = vsel %vm1932, %v1942, %v1919
          %v1950 = vsel %vm1933, %v1942, %v1920
          %v1951 = vsel %vm1934, %v1942, %v1921
          %v1952 = vsel %vm1935, %v1942, %v1922
          %v1953 = vsel %vm1936, %v1942, %v1923
          %v1954 = vsel %vm1937, %v1942, %v1924
          %v1955 = vsel %vm1938, %v1942, %v1925
          %vm1956 = vcmp.eq.s32.totalorder %v1883, 2
          %vm1957 = vcmp.eq.s32.totalorder %v1884, 2
          %vm1958 = vcmp.eq.s32.totalorder %v1885, 2
          %vm1959 = vcmp.eq.s32.totalorder %v1886, 2
          %vm1960 = vcmp.eq.s32.totalorder %v1887, 2
          %vm1961 = vcmp.eq.s32.totalorder %v1888, 2
          %vm1962 = vcmp.eq.s32.totalorder %v1889, 2
          %vm1963 = vcmp.eq.s32.totalorder %v1890, 2
          %vm1964 = vcmp.eq.s32.totalorder %v1891, 2
          %vm1965 = vcmp.eq.s32.totalorder %v1892, 2
          %vm1966 = vcmp.eq.s32.totalorder %v1893, 2
          %vm1967 = vcmp.eq.s32.totalorder %v1894, 2
          %vm1968 = vcmp.eq.s32.totalorder %v1895, 2
          %v1969 = vlaneseq
          %v1970 = vshrl.u32 %v1969, 7
          %v1971 = vsub.s32 6, %v1970
          %v1972 = vrot.slane %v270, %v1971
          %v1973 = vsel %vm1956, %v1972, %v1943
          %v1974 = vsel %vm1957, %v1972, %v1944
          %v1975 = vsel %vm1958, %v1972, %v1945
          %v1976 = vsel %vm1959, %v1972, %v1946
          %v1977 = vsel %vm1960, %v1972, %v1947
          %v1978 = vsel %vm1961, %v1972, %v1948
          %v1979 = vsel %vm1962, %v1972, %v1949
          %v1980 = vsel %vm1963, %v1972, %v1950
          %v1981 = vsel %vm1964, %v1972, %v1951
          %v1982 = vsel %vm1965, %v1972, %v1952
          %v1983 = vsel %vm1966, %v1972, %v1953
          %v1984 = vsel %vm1967, %v1972, %v1954
          %v1985 = vsel %vm1968, %v1972, %v1955
          %v1986 = vlaneseq
          %v1987 = vshrl.u32 %v1986, 7
          %v1988 = vsub.s32 6, %v1987
          %v1989 = vrot.slane %v282, %v1988
          %v1990 = vsub.s32 %v412, %v1989
          %v1991 = vsub.s32 %v413, %v1989
          %v1992 = vsub.s32 %v414, %v1989
          %v1993 = vsub.s32 %v415, %v1989
          %v1994 = vsub.s32 %v416, %v1989
          %v1995 = vsub.s32 %v417, %v1989
          %v1996 = vsub.s32 %v418, %v1989
          %v1997 = vsub.s32 %v419, %v1989
          %v1998 = vsub.s32 %v420, %v1989
          %v1999 = vsub.s32 %v421, %v1989
          %v2000 = vsub.s32 %v422, %v1989
          %v2001 = vsub.s32 %v423, %v1989
          %v2002 = vsub.s32 %v424, %v1989
          %vm2003 = vcmp.eq.s32.totalorder %v1990, 0
          %vm2004 = vcmp.eq.s32.totalorder %v1991, 0
          %vm2005 = vcmp.eq.s32.totalorder %v1992, 0
          %vm2006 = vcmp.eq.s32.totalorder %v1993, 0
          %vm2007 = vcmp.eq.s32.totalorder %v1994, 0
          %vm2008 = vcmp.eq.s32.totalorder %v1995, 0
          %vm2009 = vcmp.eq.s32.totalorder %v1996, 0
          %vm2010 = vcmp.eq.s32.totalorder %v1997, 0
          %vm2011 = vcmp.eq.s32.totalorder %v1998, 0
          %vm2012 = vcmp.eq.s32.totalorder %v1999, 0
          %vm2013 = vcmp.eq.s32.totalorder %v2000, 0
          %vm2014 = vcmp.eq.s32.totalorder %v2001, 0
          %vm2015 = vcmp.eq.s32.totalorder %v2002, 0
          %v2016 = vlaneseq
          %v2017 = vshrl.u32 %v2016, 7
          %v2018 = vsub.s32 6, %v2017
          %v2019 = vrot.slane %v286, %v2018
          %v2020 = vsel %vm2003, %v2019, 0.0
          %v2021 = vsel %vm2004, %v2019, 0.0
          %v2022 = vsel %vm2005, %v2019, 0.0
          %v2023 = vsel %vm2006, %v2019, 0.0
          %v2024 = vsel %vm2007, %v2019, 0.0
          %v2025 = vsel %vm2008, %v2019, 0.0
          %v2026 = vsel %vm2009, %v2019, 0.0
          %v2027 = vsel %vm2010, %v2019, 0.0
          %v2028 = vsel %vm2011, %v2019, 0.0
          %v2029 = vsel %vm2012, %v2019, 0.0
          %v2030 = vsel %vm2013, %v2019, 0.0
          %v2031 = vsel %vm2014, %v2019, 0.0
          %v2032 = vsel %vm2015, %v2019, 0.0
          %vm2033 = vcmp.eq.s32.totalorder %v1990, 1
          %vm2034 = vcmp.eq.s32.totalorder %v1991, 1
          %vm2035 = vcmp.eq.s32.totalorder %v1992, 1
          %vm2036 = vcmp.eq.s32.totalorder %v1993, 1
          %vm2037 = vcmp.eq.s32.totalorder %v1994, 1
          %vm2038 = vcmp.eq.s32.totalorder %v1995, 1
          %vm2039 = vcmp.eq.s32.totalorder %v1996, 1
          %vm2040 = vcmp.eq.s32.totalorder %v1997, 1
          %vm2041 = vcmp.eq.s32.totalorder %v1998, 1
          %vm2042 = vcmp.eq.s32.totalorder %v1999, 1
          %vm2043 = vcmp.eq.s32.totalorder %v2000, 1
          %vm2044 = vcmp.eq.s32.totalorder %v2001, 1
          %vm2045 = vcmp.eq.s32.totalorder %v2002, 1
          %v2046 = vlaneseq
          %v2047 = vshrl.u32 %v2046, 7
          %v2048 = vsub.s32 6, %v2047
          %v2049 = vrot.slane %v288, %v2048
          %v2050 = vsel %vm2033, %v2049, %v2020
          %v2051 = vsel %vm2034, %v2049, %v2021
          %v2052 = vsel %vm2035, %v2049, %v2022
          %v2053 = vsel %vm2036, %v2049, %v2023
          %v2054 = vsel %vm2037, %v2049, %v2024
          %v2055 = vsel %vm2038, %v2049, %v2025
          %v2056 = vsel %vm2039, %v2049, %v2026
          %v2057 = vsel %vm2040, %v2049, %v2027
          %v2058 = vsel %vm2041, %v2049, %v2028
          %v2059 = vsel %vm2042, %v2049, %v2029
          %v2060 = vsel %vm2043, %v2049, %v2030
          %v2061 = vsel %vm2044, %v2049, %v2031
          %v2062 = vsel %vm2045, %v2049, %v2032
          %vm2063 = vcmp.eq.s32.totalorder %v1990, 2
          %vm2064 = vcmp.eq.s32.totalorder %v1991, 2
          %vm2065 = vcmp.eq.s32.totalorder %v1992, 2
          %vm2066 = vcmp.eq.s32.totalorder %v1993, 2
          %vm2067 = vcmp.eq.s32.totalorder %v1994, 2
          %vm2068 = vcmp.eq.s32.totalorder %v1995, 2
          %vm2069 = vcmp.eq.s32.totalorder %v1996, 2
          %vm2070 = vcmp.eq.s32.totalorder %v1997, 2
          %vm2071 = vcmp.eq.s32.totalorder %v1998, 2
          %vm2072 = vcmp.eq.s32.totalorder %v1999, 2
          %vm2073 = vcmp.eq.s32.totalorder %v2000, 2
          %vm2074 = vcmp.eq.s32.totalorder %v2001, 2
          %vm2075 = vcmp.eq.s32.totalorder %v2002, 2
          %v2076 = vlaneseq
          %v2077 = vshrl.u32 %v2076, 7
          %v2078 = vsub.s32 6, %v2077
          %v2079 = vrot.slane %v290, %v2078
          %v2080 = vsel %vm2063, %v2079, %v2050
          %v2081 = vsel %vm2064, %v2079, %v2051
          %v2082 = vsel %vm2065, %v2079, %v2052
          %v2083 = vsel %vm2066, %v2079, %v2053
          %v2084 = vsel %vm2067, %v2079, %v2054
          %v2085 = vsel %vm2068, %v2079, %v2055
          %v2086 = vsel %vm2069, %v2079, %v2056
          %v2087 = vsel %vm2070, %v2079, %v2057
          %v2088 = vsel %vm2071, %v2079, %v2058
          %v2089 = vsel %vm2072, %v2079, %v2059
          %v2090 = vsel %vm2073, %v2079, %v2060
          %v2091 = vsel %vm2074, %v2079, %v2061
          %v2092 = vsel %vm2075, %v2079, %v2062
          %v2093 = vmul.f32 %v1973, %v2080
          %v2094 = vmul.f32 %v1974, %v2081
          %v2095 = vmul.f32 %v1975, %v2082
          %v2096 = vmul.f32 %v1976, %v2083
          %v2097 = vmul.f32 %v1977, %v2084
          %v2098 = vmul.f32 %v1978, %v2085
          %v2099 = vmul.f32 %v1979, %v2086
          %v2100 = vmul.f32 %v1980, %v2087
          %v2101 = vmul.f32 %v1981, %v2088
          %v2102 = vmul.f32 %v1982, %v2089
          %v2103 = vmul.f32 %v1983, %v2090
          %v2104 = vmul.f32 %v1984, %v2091
          %v2105 = vmul.f32 %v1985, %v2092
          %v2106 = vmul.f32 %v2093, %v545
          %v2107 = vmul.f32 %v2094, %v546
          %v2108 = vmul.f32 %v2095, %v547
          %v2109 = vmul.f32 %v2096, %v548
          %v2110 = vmul.f32 %v2097, %v549
          %v2111 = vmul.f32 %v2098, %v550
          %v2112 = vmul.f32 %v2099, %v551
          %v2113 = vmul.f32 %v2100, %v552
          %v2114 = vmul.f32 %v2101, %v553
          %v2115 = vmul.f32 %v2102, %v554
          %v2116 = vmul.f32 %v2103, %v555
          %v2117 = vmul.f32 %v2104, %v556
          %v2118 = vmul.f32 %v2105, %v557
          %v2119 = vadd.f32 %v2106, %v2107
          %v2120 = vadd.f32 %v2119, %v2108
          %v2121 = vadd.f32 %v2120, %v2109
          %v2122 = vadd.f32 %v2121, %v2110
          %v2123 = vadd.f32 %v2122, %v2111
          %v2124 = vadd.f32 %v2123, %v2112
          %v2125 = vadd.f32 %v2124, %v2113
          %v2126 = vadd.f32 %v2125, %v2114
          %v2127 = vadd.f32 %v2126, %v2115
          %v2128 = vadd.f32 %v2127, %v2116
          %v2129 = vadd.f32 %v2128, %v2117
          %v2130 = vadd.f32 %v2129, %v2118
          %v2131 = vrot.slane %v2130, 4
          %v2132 = vadd.f32 %v2130, %v2131
          %v2133 = vrot.slane %v2132, 2
          %v2134 = vadd.f32 %v2132, %v2133
          %v2135 = vrot.slane %v2134, 1
          %v2136 = vadd.f32 %v2134, %v2135
          %v2137 = vlaneseq
          %v2138 = vshrl.u32 %v2137, 7
          %v2139 = vsub.s32 7, %v2138
          %v2140 = vrot.slane %v262, %v2139
          %v2141 = vsub.s32 %v291, %v2140
          %v2142 = vsub.s32 %v292, %v2140
          %v2143 = vsub.s32 %v293, %v2140
          %v2144 = vsub.s32 %v294, %v2140
          %v2145 = vsub.s32 %v295, %v2140
          %v2146 = vsub.s32 %v296, %v2140
          %v2147 = vsub.s32 %v297, %v2140
          %v2148 = vsub.s32 %v298, %v2140
          %v2149 = vsub.s32 %v299, %v2140
          %v2150 = vsub.s32 %v300, %v2140
          %v2151 = vsub.s32 %v301, %v2140
          %v2152 = vsub.s32 %v302, %v2140
          %v2153 = vsub.s32 %v303, %v2140
          %vm2154 = vcmp.eq.s32.totalorder %v2141, 0
          %vm2155 = vcmp.eq.s32.totalorder %v2142, 0
          %vm2156 = vcmp.eq.s32.totalorder %v2143, 0
          %vm2157 = vcmp.eq.s32.totalorder %v2144, 0
          %vm2158 = vcmp.eq.s32.totalorder %v2145, 0
          %vm2159 = vcmp.eq.s32.totalorder %v2146, 0
          %vm2160 = vcmp.eq.s32.totalorder %v2147, 0
          %vm2161 = vcmp.eq.s32.totalorder %v2148, 0
          %vm2162 = vcmp.eq.s32.totalorder %v2149, 0
          %vm2163 = vcmp.eq.s32.totalorder %v2150, 0
          %vm2164 = vcmp.eq.s32.totalorder %v2151, 0
          %vm2165 = vcmp.eq.s32.totalorder %v2152, 0
          %vm2166 = vcmp.eq.s32.totalorder %v2153, 0
          %v2167 = vlaneseq
          %v2168 = vshrl.u32 %v2167, 7
          %v2169 = vsub.s32 7, %v2168
          %v2170 = vrot.slane %v266, %v2169
          %v2171 = vsel %vm2154, %v2170, 0.0
          %v2172 = vsel %vm2155, %v2170, 0.0
          %v2173 = vsel %vm2156, %v2170, 0.0
          %v2174 = vsel %vm2157, %v2170, 0.0
          %v2175 = vsel %vm2158, %v2170, 0.0
          %v2176 = vsel %vm2159, %v2170, 0.0
          %v2177 = vsel %vm2160, %v2170, 0.0
          %v2178 = vsel %vm2161, %v2170, 0.0
          %v2179 = vsel %vm2162, %v2170, 0.0
          %v2180 = vsel %vm2163, %v2170, 0.0
          %v2181 = vsel %vm2164, %v2170, 0.0
          %v2182 = vsel %vm2165, %v2170, 0.0
          %v2183 = vsel %vm2166, %v2170, 0.0
          %vm2184 = vcmp.eq.s32.totalorder %v2141, 1
          %vm2185 = vcmp.eq.s32.totalorder %v2142, 1
          %vm2186 = vcmp.eq.s32.totalorder %v2143, 1
          %vm2187 = vcmp.eq.s32.totalorder %v2144, 1
          %vm2188 = vcmp.eq.s32.totalorder %v2145, 1
          %vm2189 = vcmp.eq.s32.totalorder %v2146, 1
          %vm2190 = vcmp.eq.s32.totalorder %v2147, 1
          %vm2191 = vcmp.eq.s32.totalorder %v2148, 1
          %vm2192 = vcmp.eq.s32.totalorder %v2149, 1
          %vm2193 = vcmp.eq.s32.totalorder %v2150, 1
          %vm2194 = vcmp.eq.s32.totalorder %v2151, 1
          %vm2195 = vcmp.eq.s32.totalorder %v2152, 1
          %vm2196 = vcmp.eq.s32.totalorder %v2153, 1
          %v2197 = vlaneseq
          %v2198 = vshrl.u32 %v2197, 7
          %v2199 = vsub.s32 7, %v2198
          %v2200 = vrot.slane %v268, %v2199
          %v2201 = vsel %vm2184, %v2200, %v2171
          %v2202 = vsel %vm2185, %v2200, %v2172
          %v2203 = vsel %vm2186, %v2200, %v2173
          %v2204 = vsel %vm2187, %v2200, %v2174
          %v2205 = vsel %vm2188, %v2200, %v2175
          %v2206 = vsel %vm2189, %v2200, %v2176
          %v2207 = vsel %vm2190, %v2200, %v2177
          %v2208 = vsel %vm2191, %v2200, %v2178
          %v2209 = vsel %vm2192, %v2200, %v2179
          %v2210 = vsel %vm2193, %v2200, %v2180
          %v2211 = vsel %vm2194, %v2200, %v2181
          %v2212 = vsel %vm2195, %v2200, %v2182
          %v2213 = vsel %vm2196, %v2200, %v2183
          %vm2214 = vcmp.eq.s32.totalorder %v2141, 2
          %vm2215 = vcmp.eq.s32.totalorder %v2142, 2
          %vm2216 = vcmp.eq.s32.totalorder %v2143, 2
          %vm2217 = vcmp.eq.s32.totalorder %v2144, 2
          %vm2218 = vcmp.eq.s32.totalorder %v2145, 2
          %vm2219 = vcmp.eq.s32.totalorder %v2146, 2
          %vm2220 = vcmp.eq.s32.totalorder %v2147, 2
          %vm2221 = vcmp.eq.s32.totalorder %v2148, 2
          %vm2222 = vcmp.eq.s32.totalorder %v2149, 2
          %vm2223 = vcmp.eq.s32.totalorder %v2150, 2
          %vm2224 = vcmp.eq.s32.totalorder %v2151, 2
          %vm2225 = vcmp.eq.s32.totalorder %v2152, 2
          %vm2226 = vcmp.eq.s32.totalorder %v2153, 2
          %v2227 = vlaneseq
          %v2228 = vshrl.u32 %v2227, 7
          %v2229 = vsub.s32 7, %v2228
          %v2230 = vrot.slane %v270, %v2229
          %v2231 = vsel %vm2214, %v2230, %v2201
          %v2232 = vsel %vm2215, %v2230, %v2202
          %v2233 = vsel %vm2216, %v2230, %v2203
          %v2234 = vsel %vm2217, %v2230, %v2204
          %v2235 = vsel %vm2218, %v2230, %v2205
          %v2236 = vsel %vm2219, %v2230, %v2206
          %v2237 = vsel %vm2220, %v2230, %v2207
          %v2238 = vsel %vm2221, %v2230, %v2208
          %v2239 = vsel %vm2222, %v2230, %v2209
          %v2240 = vsel %vm2223, %v2230, %v2210
          %v2241 = vsel %vm2224, %v2230, %v2211
          %v2242 = vsel %vm2225, %v2230, %v2212
          %v2243 = vsel %vm2226, %v2230, %v2213
          %v2244 = vlaneseq
          %v2245 = vshrl.u32 %v2244, 7
          %v2246 = vsub.s32 7, %v2245
          %v2247 = vrot.slane %v282, %v2246
          %v2248 = vsub.s32 %v412, %v2247
          %v2249 = vsub.s32 %v413, %v2247
          %v2250 = vsub.s32 %v414, %v2247
          %v2251 = vsub.s32 %v415, %v2247
          %v2252 = vsub.s32 %v416, %v2247
          %v2253 = vsub.s32 %v417, %v2247
          %v2254 = vsub.s32 %v418, %v2247
          %v2255 = vsub.s32 %v419, %v2247
          %v2256 = vsub.s32 %v420, %v2247
          %v2257 = vsub.s32 %v421, %v2247
          %v2258 = vsub.s32 %v422, %v2247
          %v2259 = vsub.s32 %v423, %v2247
          %v2260 = vsub.s32 %v424, %v2247
          %vm2261 = vcmp.eq.s32.totalorder %v2248, 0
          %vm2262 = vcmp.eq.s32.totalorder %v2249, 0
          %vm2263 = vcmp.eq.s32.totalorder %v2250, 0
          %vm2264 = vcmp.eq.s32.totalorder %v2251, 0
          %vm2265 = vcmp.eq.s32.totalorder %v2252, 0
          %vm2266 = vcmp.eq.s32.totalorder %v2253, 0
          %vm2267 = vcmp.eq.s32.totalorder %v2254, 0
          %vm2268 = vcmp.eq.s32.totalorder %v2255, 0
          %vm2269 = vcmp.eq.s32.totalorder %v2256, 0
          %vm2270 = vcmp.eq.s32.totalorder %v2257, 0
          %vm2271 = vcmp.eq.s32.totalorder %v2258, 0
          %vm2272 = vcmp.eq.s32.totalorder %v2259, 0
          %vm2273 = vcmp.eq.s32.totalorder %v2260, 0
          %v2274 = vlaneseq
          %v2275 = vshrl.u32 %v2274, 7
          %v2276 = vsub.s32 7, %v2275
          %v2277 = vrot.slane %v286, %v2276
          %v2278 = vsel %vm2261, %v2277, 0.0
          %v2279 = vsel %vm2262, %v2277, 0.0
          %v2280 = vsel %vm2263, %v2277, 0.0
          %v2281 = vsel %vm2264, %v2277, 0.0
          %v2282 = vsel %vm2265, %v2277, 0.0
          %v2283 = vsel %vm2266, %v2277, 0.0
          %v2284 = vsel %vm2267, %v2277, 0.0
          %v2285 = vsel %vm2268, %v2277, 0.0
          %v2286 = vsel %vm2269, %v2277, 0.0
          %v2287 = vsel %vm2270, %v2277, 0.0
          %v2288 = vsel %vm2271, %v2277, 0.0
          %v2289 = vsel %vm2272, %v2277, 0.0
          %v2290 = vsel %vm2273, %v2277, 0.0
          %vm2291 = vcmp.eq.s32.totalorder %v2248, 1
          %vm2292 = vcmp.eq.s32.totalorder %v2249, 1
          %vm2293 = vcmp.eq.s32.totalorder %v2250, 1
          %vm2294 = vcmp.eq.s32.totalorder %v2251, 1
          %vm2295 = vcmp.eq.s32.totalorder %v2252, 1
          %vm2296 = vcmp.eq.s32.totalorder %v2253, 1
          %vm2297 = vcmp.eq.s32.totalorder %v2254, 1
          %vm2298 = vcmp.eq.s32.totalorder %v2255, 1
          %vm2299 = vcmp.eq.s32.totalorder %v2256, 1
          %vm2300 = vcmp.eq.s32.totalorder %v2257, 1
          %vm2301 = vcmp.eq.s32.totalorder %v2258, 1
          %vm2302 = vcmp.eq.s32.totalorder %v2259, 1
          %vm2303 = vcmp.eq.s32.totalorder %v2260, 1
          %v2304 = vlaneseq
          %v2305 = vshrl.u32 %v2304, 7
          %v2306 = vsub.s32 7, %v2305
          %v2307 = vrot.slane %v288, %v2306
          %v2308 = vsel %vm2291, %v2307, %v2278
          %v2309 = vsel %vm2292, %v2307, %v2279
          %v2310 = vsel %vm2293, %v2307, %v2280
          %v2311 = vsel %vm2294, %v2307, %v2281
          %v2312 = vsel %vm2295, %v2307, %v2282
          %v2313 = vsel %vm2296, %v2307, %v2283
          %v2314 = vsel %vm2297, %v2307, %v2284
          %v2315 = vsel %vm2298, %v2307, %v2285
          %v2316 = vsel %vm2299, %v2307, %v2286
          %v2317 = vsel %vm2300, %v2307, %v2287
          %v2318 = vsel %vm2301, %v2307, %v2288
          %v2319 = vsel %vm2302, %v2307, %v2289
          %v2320 = vsel %vm2303, %v2307, %v2290
          %vm2321 = vcmp.eq.s32.totalorder %v2248, 2
          %vm2322 = vcmp.eq.s32.totalorder %v2249, 2
          %vm2323 = vcmp.eq.s32.totalorder %v2250, 2
          %vm2324 = vcmp.eq.s32.totalorder %v2251, 2
          %vm2325 = vcmp.eq.s32.totalorder %v2252, 2
          %vm2326 = vcmp.eq.s32.totalorder %v2253, 2
          %vm2327 = vcmp.eq.s32.totalorder %v2254, 2
          %vm2328 = vcmp.eq.s32.totalorder %v2255, 2
          %vm2329 = vcmp.eq.s32.totalorder %v2256, 2
          %vm2330 = vcmp.eq.s32.totalorder %v2257, 2
          %vm2331 = vcmp.eq.s32.totalorder %v2258, 2
          %vm2332 = vcmp.eq.s32.totalorder %v2259, 2
          %vm2333 = vcmp.eq.s32.totalorder %v2260, 2
          %v2334 = vlaneseq
          %v2335 = vshrl.u32 %v2334, 7
          %v2336 = vsub.s32 7, %v2335
          %v2337 = vrot.slane %v290, %v2336
          %v2338 = vsel %vm2321, %v2337, %v2308
          %v2339 = vsel %vm2322, %v2337, %v2309
          %v2340 = vsel %vm2323, %v2337, %v2310
          %v2341 = vsel %vm2324, %v2337, %v2311
          %v2342 = vsel %vm2325, %v2337, %v2312
          %v2343 = vsel %vm2326, %v2337, %v2313
          %v2344 = vsel %vm2327, %v2337, %v2314
          %v2345 = vsel %vm2328, %v2337, %v2315
          %v2346 = vsel %vm2329, %v2337, %v2316
          %v2347 = vsel %vm2330, %v2337, %v2317
          %v2348 = vsel %vm2331, %v2337, %v2318
          %v2349 = vsel %vm2332, %v2337, %v2319
          %v2350 = vsel %vm2333, %v2337, %v2320
          %v2351 = vmul.f32 %v2231, %v2338
          %v2352 = vmul.f32 %v2232, %v2339
          %v2353 = vmul.f32 %v2233, %v2340
          %v2354 = vmul.f32 %v2234, %v2341
          %v2355 = vmul.f32 %v2235, %v2342
          %v2356 = vmul.f32 %v2236, %v2343
          %v2357 = vmul.f32 %v2237, %v2344
          %v2358 = vmul.f32 %v2238, %v2345
          %v2359 = vmul.f32 %v2239, %v2346
          %v2360 = vmul.f32 %v2240, %v2347
          %v2361 = vmul.f32 %v2241, %v2348
          %v2362 = vmul.f32 %v2242, %v2349
          %v2363 = vmul.f32 %v2243, %v2350
          %v2364 = vmul.f32 %v2351, %v545
          %v2365 = vmul.f32 %v2352, %v546
          %v2366 = vmul.f32 %v2353, %v547
          %v2367 = vmul.f32 %v2354, %v548
          %v2368 = vmul.f32 %v2355, %v549
          %v2369 = vmul.f32 %v2356, %v550
          %v2370 = vmul.f32 %v2357, %v551
          %v2371 = vmul.f32 %v2358, %v552
          %v2372 = vmul.f32 %v2359, %v553
          %v2373 = vmul.f32 %v2360, %v554
          %v2374 = vmul.f32 %v2361, %v555
          %v2375 = vmul.f32 %v2362, %v556
          %v2376 = vmul.f32 %v2363, %v557
          %v2377 = vadd.f32 %v2364, %v2365
          %v2378 = vadd.f32 %v2377, %v2366
          %v2379 = vadd.f32 %v2378, %v2367
          %v2380 = vadd.f32 %v2379, %v2368
          %v2381 = vadd.f32 %v2380, %v2369
          %v2382 = vadd.f32 %v2381, %v2370
          %v2383 = vadd.f32 %v2382, %v2371
          %v2384 = vadd.f32 %v2383, %v2372
          %v2385 = vadd.f32 %v2384, %v2373
          %v2386 = vadd.f32 %v2385, %v2374
          %v2387 = vadd.f32 %v2386, %v2375
          %v2388 = vadd.f32 %v2387, %v2376
          %v2389 = vrot.slane %v2388, 4
          %v2390 = vadd.f32 %v2388, %v2389
          %v2391 = vrot.slane %v2390, 2
          %v2392 = vadd.f32 %v2390, %v2391
          %v2393 = vrot.slane %v2392, 1
          %v2394 = vadd.f32 %v2392, %v2393
          %vm2395 = vcmask 1040384
          %v2396 = vsel %vm2395, %v588, %v846
          %vm2397 = vcmask 1041408
          %v2398 = vsel %vm2397, %v2396, %v1104
          %vm2399 = vcmask 1042432
          %v2400 = vsel %vm2399, %v2398, %v1362
          %vm2401 = vcmask 1043456
          %v2402 = vsel %vm2401, %v2400, %v1620
          %vm2403 = vcmask 1044480
          %v2404 = vsel %vm2403, %v2402, %v1878
          %vm2405 = vcmask 1045504
          %v2406 = vsel %vm2405, %v2404, %v2136
          %vm2407 = vcmask 1046528
          %v2408 = vsel %vm2407, %v2406, %v2394
          %s2409 = scalar_lea.vmem %s242, %s251 [#allocation8]
          %2410 = vst [vmem:[%s2409] sm:$0xff] %v2408
        $region49: #{tpu_custom_call.1} parent=31 // loop_footer
          %s250 = sadd.s32 1, %s246
        $region50: #{tpu_custom_call.1} parent=31 // loop_footer_branch
          %245 = sbr.rel target = $region46
        $region51: #{tpu_custom_call.1} parent=31 // loop_exit
          _
        %s2411 = sand.u32 %s97, 1
        %s2412 = scalar_lea.sflag [#allocation4], %s2411
        %s2413 = sand.u32 %s97, 1
        %s2414 = smul.addr %s2413, 32
        %s2415 = scalar_lea.vmem [#allocation8], %s2414
        // Predicated region
        $region52: #{tpu_custom_call.1} parent=31 // pred_check
          %p2416 = pneg %p107
        $region53: #{tpu_custom_call.1} parent=31 // pred_check_branch
          %2418 = sbr.rel (%p2416) target = $region55
        $region54: #{tpu_custom_call.1} parent=31 // pred_region
          %s2419 = smul.u32 4, %s21
          %s2421 = ssub.s32 512, 512
          %2422 = vsyncadd %s2412, %s2421
          %s2423 = smul.addr %s2419, 128
          %s2424 = scalar_lea.hbm %s3, %s2423
          %s2425 = sshll.u32 %s2415, 4
          %s2426 = int_to_ptr.vmem [resolvable:$true] %s2425
          %2431 = dma.vmem_to_hbm [thread:$0]  %s2426, 512, %s2424, %s2412, 128, 128, 8
        $region55: #{tpu_custom_call.1} parent=31 // pred_fallthru
          _
      $region32: #{tpu_custom_call.1} parent=5 // pred_fallthru
        _
      %p2432 = scmp.le.s32.totalorder 2, %s16
      // Predicated region
      $region56: #{tpu_custom_call.1} parent=5 // pred_check
        %p2433 = pneg %p2432
      $region57: #{tpu_custom_call.1} parent=5 // pred_check_branch
        %2435 = sbr.rel (%p2433) target = $region59
      $region58: #{tpu_custom_call.1} parent=5 // pred_region
        %s2436 = ssub.s32 %s16, 2
        // Predicated region
        $region60: #{tpu_custom_call.1} parent=58 // pred_check
          %p2437 = pneg %p113
        $region61: #{tpu_custom_call.1} parent=58 // pred_check_branch
          %2439 = sbr.rel (%p2437) target = $region63
        $region62: #{tpu_custom_call.1} parent=58 // pred_region
          %s2440 = sand.u32 %s98, 1
          %s2441 = scalar_lea.sflag [#allocation4], %s2440
          %s2442 = sand.u32 %s98, 1
          %s2443 = smul.addr %s2442, 32
          %s2444 = scalar_lea.vmem [#allocation8], %s2443
          %2445 = dma.done %s2441, 512
        $region63: #{tpu_custom_call.1} parent=58 // pred_fallthru
          _
      $region59: #{tpu_custom_call.1} parent=5 // pred_fallthru
        _
    $region6: #{tpu_custom_call.1} parent=1 // loop_footer
      %s20 = sadd.s32 1, %s16
    $region7: #{tpu_custom_call.1} parent=1 // loop_footer_branch
      %15 = sbr.rel target = $region3
    $region8: #{tpu_custom_call.1} parent=1 // loop_exit
      _
    %2446 = vsyncpa [#allocation3], 1
    %s2447 = scalar_lea.sflag [#allocation3], 1
    %2448 = vsyncpa %s2447, 1
    %2449 = vsyncpa [#allocation6], 1
    %2450 = vsyncpa [#allocation4], 1
    %s2451 = scalar_lea.sflag [#allocation4], 1
    %2452 = vsyncpa %s2451, 1

</llo_original>
